<compile_context>
chip_gen: v7x
topology: tpu7x:2x2x1
jax: 0.10.0
libtpu: 0.0.40
codegen_flags: <defaults>
</compile_context>

<pallas_src>
import numpy as np

import jax
import jax.numpy as jnp
from jax import lax
from jax.experimental import pallas as pl
from jax.experimental.pallas import tpu as pltpu


# ------------------------------ Pallas kernel ------------------------------- #

def _cnn_cifar_kernel(x_ref, t1_ref, b1_ref, t2_ref, b2_ref,
                      f1_ref, fb1_ref, fw2_ref, fb2_ref, fw3_ref, fb3_ref,
                      out_ref):
    """Whole CNNCifar forward for a tile of `tb` images.

    x_ref : (tb*32, 96)   rows = (image, h), lanes = (w, cin)   [NHWC, w*3+ci]
    t1    : (5, 96, 224)  conv1 block-Toeplitz (per kh); out lanes = (ow, co_pad8)
    t2    : (5, 224, 160) conv2 block-Toeplitz (per kh); reads the un-compacted
                          pooled lane layout (stride 16); out lanes = (ow2, co16)
    f1    : (5, 160, 128) fc1 weight split per pooled row h2=j, flatten-permuted
    fw2/fw3: (128, 128)   fc2/fc3 weights zero-padded to 128 lanes
    out   : (tb, 1, 128)  logits padded to 128 lanes
    """
    f32 = jnp.float32
    x = x_ref[...]                       # (tb*32, 96)
    n = x.shape[0]
    tb = n // 32

    def iota2(shape, d):
        return lax.broadcasted_iota(jnp.int32, shape, d)

    def row_shift_mat(k):                # (S @ v)[i, :] = v[i + k, :]  (zero-fill)
        return (iota2((n, n), 1) == iota2((n, n), 0) + k).astype(f32)

    def lane_shift_mat(m, k):            # (v @ S)[:, l] = v[:, l + k]  (zero-fill)
        return (iota2((m, m), 0) == iota2((m, m), 1) + k).astype(f32)

    def row_select_mat(j):               # (S @ v)[b, :] = v[32*b + j, :]
        return (iota2((tb, n), 1) == 32 * iota2((tb, n), 0) + j).astype(f32)

    def mm(a, b):
        return jnp.dot(a, b, preferred_element_type=f32)

    # ---- conv1 (5x5 valid, 3->6ch) + bias + ReLU -------------------------------
    # valid output rows: h in [0, 28); lane ow*8 + co (co < 6; lanes 6,7 stay 0).
    a1 = mm(x, t1_ref[0])
    for kh in range(1, 5):
        a1 = a1 + mm(row_shift_mat(kh), mm(x, t1_ref[kh]))
    a1 = jnp.maximum(a1 + b1_ref[...], 0.0)                      # (n, 224)

    # ---- 2x2/2 max-pool #1 (kept un-compacted) ---------------------------------
    # pooled value (h1, w1, c) now sits at row 2*h1, lane 16*w1 + c.
    a1 = jnp.maximum(a1, mm(a1, lane_shift_mat(224, 8)))         # pool over W
    a1 = jnp.maximum(a1, mm(row_shift_mat(1), a1))               # pool over H

    # ---- conv2 (5x5 valid, 6->16ch) + bias + ReLU -------------------------------
    # valid output rows: 2*oh2 (oh2 in [0, 10)); lanes ow2*16 + co.
    a2 = mm(a1, t2_ref[0])
    for kh in range(1, 5):
        a2 = a2 + mm(row_shift_mat(2 * kh), mm(a1, t2_ref[kh]))
    a2 = jnp.maximum(a2 + b2_ref[...], 0.0)                      # (n, 160)

    # ---- 2x2/2 max-pool #2 (kept un-compacted) ---------------------------------
    # pooled value (h2, w2, c) now sits at row 4*h2, lane 32*w2 + c.
    a2 = jnp.maximum(a2, mm(a2, lane_shift_mat(160, 16)))
    a2 = jnp.maximum(a2, mm(row_shift_mat(2), a2))

    # ---- fc1 (PyTorch NCHW flatten folded into per-row weight slices) + ReLU ---
    h = jnp.zeros((tb, 128), f32)
    for j in range(5):
        h = h + mm(mm(row_select_mat(4 * j), a2), f1_ref[j])
    h = jnp.maximum(h + fb1_ref[...], 0.0)                       # (tb, 128)

    # ---- fc2 + ReLU, fc3 --------------------------------------------------------
    h = jnp.maximum(mm(h, fw2_ref[...]) + fb2_ref[...], 0.0)
    logits = mm(h, fw3_ref[...]) + fb3_ref[...]                  # (tb, 128)
    out_ref[:, 0, :] = logits.astype(out_ref.dtype)


# ----------------------------- host-side setup ------------------------------ #

def _build_conv_toeplitz(w, wo, in_lanes, in_stride, out_stride):
    """w: (Cout, Cin, 5, 5) -> (5, in_lanes, wo*out_stride) block-Toeplitz over W.

    T[kh][(ow+kw)*in_stride + ci, ow*out_stride + co] = w[co, ci, kh, kw]
    """
    cout, cin, k, _ = w.shape
    t = np.zeros((k, in_lanes, wo * out_stride), np.float32)
    for kh in range(k):
        for kw in range(k):
            blk = w[:, :, kh, kw].T                      # (Cin, Cout)
            for ow in range(wo):
                r0 = (ow + kw) * in_stride
                c0 = ow * out_stride
                t[kh, r0:r0 + cin, c0:c0 + cout] = blk
    return t


def prepare_kernel_params(params, num_classes=10):
    """One-time re-packing of PyTorch-layout params into kernel-ready constants."""
    f32 = np.float32
    w1 = np.asarray(params["conv1_w"], f32)              # (6, 3, 5, 5)
    b1 = np.asarray(params["conv1_b"], f32)
    w2 = np.asarray(params["conv2_w"], f32)              # (16, 6, 5, 5)
    b2 = np.asarray(params["conv2_b"], f32)
    fw1 = np.asarray(params["fc1_w"], f32)                # (400, 120) rows = c*25+h*5+w
    fb1 = np.asarray(params["fc1_b"], f32)
    fw2 = np.asarray(params["fc2_w"], f32)                # (120, 84)
    fb2 = np.asarray(params["fc2_b"], f32)
    fw3 = np.asarray(params["fc3_w"], f32)                # (84, num_classes)
    fb3 = np.asarray(params["fc3_b"], f32)

    # conv1: input lanes (w*3+ci), output lanes (ow*8+co), co padded 6 -> 8.
    t1 = _build_conv_toeplitz(w1, wo=28, in_lanes=96, in_stride=3, out_stride=8)
    b1r = np.tile(np.pad(b1, (0, 2)), 28)[None, :].astype(f32)        # (1, 224)

    # conv2: reads pooled (un-compacted) lanes 16*w1+ci, writes (ow2*16+co).
    t2 = _build_conv_toeplitz(w2, wo=10, in_lanes=224, in_stride=16, out_stride=16)
    b2r = np.tile(b2, 10)[None, :].astype(f32)                        # (1, 160)

    # fc1: fold the PyTorch NCHW-order flatten (c, h, w) into per-h weight slices
    # that read the pooled lane layout 32*w2 + c.  Output padded 120 -> 128 lanes.
    f1 = np.zeros((5, 160, 128), f32)
    for j in range(5):                  # j == spatial h of the 5x5 pooled map
        for wj in range(5):
            for c in range(16):
                f1[j, 32 * wj + c, :120] = fw1[c * 25 + j * 5 + wj]
    fb1p = np.zeros((1, 128), f32); fb1p[0, :120] = fb1

    fw2p = np.zeros((128, 128), f32); fw2p[:120, :84] = fw2
    fb2p = np.zeros((1, 128), f32); fb2p[0, :84] = fb2
    fw3p = np.zeros((128, 128), f32); fw3p[:84, :num_classes] = fw3
    fb3p = np.zeros((1, 128), f32); fb3p[0, :num_classes] = fb3

    kp = dict(t1=t1, b1=b1r, t2=t2, b2=b2r, f1=f1, fb1=fb1p,
              fw2=fw2p, fb2=fb2p, fw3=fw3p, fb3=fb3p)
    return {k: jnp.asarray(v) for k, v in kp.items()}


def _pick_batch_tile(batch, cap=8):
    tb = min(batch, cap)
    while batch % tb:
        tb -= 1
    return tb


def cnn_cifar_forward(x_nchw, kp, *, num_classes=10, batch_tile=8):
    """Matches CNNCifar.forward: pool(relu(conv1)) -> pool(relu(conv2)) ->
    flatten(NCHW order) -> relu(fc1) -> relu(fc2) -> fc3."""
    batch = x_nchw.shape[0]
    assert x_nchw.shape[1:] == (3, 32, 32), x_nchw.shape
    tb = _pick_batch_tile(batch, batch_tile)

    # NCHW -> rows = (image, h), lanes = (w, cin).  One tiny XLA transpose/reshape.
    x2 = jnp.transpose(x_nchw, (0, 2, 3, 1)).reshape(batch * 32, 32 * 3)

    def full_spec(a):
        return pl.BlockSpec(a.shape, lambda i: (0,) * a.ndim)

    out = pl.pallas_call(
        _cnn_cifar_kernel,
        out_shape=jax.ShapeDtypeStruct((batch, 1, 128), jnp.float32),
        grid=(batch // tb,),
        in_specs=[
            pl.BlockSpec((tb * 32, 96), lambda i: (i, 0)),
            full_spec(kp["t1"]), full_spec(kp["b1"]),
            full_spec(kp["t2"]), full_spec(kp["b2"]),
            full_spec(kp["f1"]), full_spec(kp["fb1"]),
            full_spec(kp["fw2"]), full_spec(kp["fb2"]),
            full_spec(kp["fw3"]), full_spec(kp["fb3"]),
        ],
        out_specs=pl.BlockSpec((tb, 1, 128), lambda i: (i, 0, 0)),
        compiler_params=pltpu.CompilerParams(
            dimension_semantics=("parallel",),        # megacore: shard batch tiles
            vmem_limit_bytes=32 * 1024 * 1024,        # tiny usage; safe on v5e/v6e/v7x
        ),
    )(x2, kp["t1"], kp["b1"], kp["t2"], kp["b2"],
      kp["f1"], kp["fb1"], kp["fw2"], kp["fb2"], kp["fw3"], kp["fb3"])
    return out.reshape(batch, 128)[:, :num_classes]


# ------------------------- parameters & reference --------------------------- #

def init_params(key, num_classes=10):
    """PyTorch-style uniform(-1/sqrt(fan_in), +1/sqrt(fan_in)) init, PyTorch layouts."""
    def uni(k, shape, fan_in):
        bound = 1.0 / jnp.sqrt(jnp.float32(fan_in))
        return jax.random.uniform(k, shape, jnp.float32, -bound, bound)

    ks = jax.random.split(key, 10)
    return {
        "conv1_w": uni(ks[0], (6, 3, 5, 5), 3 * 5 * 5),
        "conv1_b": uni(ks[1], (6,), 3 * 5 * 5),
        "conv2_w": uni(ks[2], (16, 6, 5, 5), 6 * 5 * 5),
        "conv2_b": uni(ks[3], (16,), 6 * 5 * 5),
        "fc1_w": uni(ks[4], (16 * 5 * 5, 120), 16 * 5 * 5),   # stored as weight.T
        "fc1_b": uni(ks[5], (120,), 16 * 5 * 5),
        "fc2_w": uni(ks[6], (120, 84), 120),
        "fc2_b": uni(ks[7], (84,), 120),
        "fc3_w": uni(ks[8], (84, num_classes), 84),
        "fc3_b": uni(ks[9], (num_classes,), 84),
    }


def reference_forward(x_nchw, params):
    """Pure-XLA reference of the same forward pass (for a correctness sanity check)."""
    hp = lax.Precision.HIGHEST
    dn = ("NCHW", "OIHW", "NCHW")
    x = lax.conv_general_dilated(x_nchw, params["conv1_w"], (1, 1), "VALID",
                                 dimension_numbers=dn, precision=hp)
    x = jnp.maximum(x + params["conv1_b"][None, :, None, None], 0.0)
    x = lax.reduce_window(x, -jnp.inf, lax.max, (1, 1, 2, 2), (1, 1, 2, 2), "VALID")
    x = lax.conv_general_dilated(x, params["conv2_w"], (1, 1), "VALID",
                                 dimension_numbers=dn, precision=hp)
    x = jnp.maximum(x + params["conv2_b"][None, :, None, None], 0.0)
    x = lax.reduce_window(x, -jnp.inf, lax.max, (1, 1, 2, 2), (1, 1, 2, 2), "VALID")
    x = x.reshape(x.shape[0], -1)                          # NCHW flatten, like .view
    x = jnp.maximum(jnp.dot(x, params["fc1_w"], precision=hp) + params["fc1_b"], 0.0)
    x = jnp.maximum(jnp.dot(x, params["fc2_w"], precision=hp) + params["fc2_b"], 0.0)
    return jnp.dot(x, params["fc3_w"], precision=hp) + params["fc3_b"]


# ----------------------------------- main ------------------------------------ #

if __name__ == "__main__":
    key = jax.random.PRNGKey(0)
    k_param, k_data = jax.random.split(key)

    num_classes = 10
    params = init_params(k_param, num_classes=num_classes)
    kparams = prepare_kernel_params(params, num_classes=num_classes)

    # CIFAR-shaped input (32x32x3 required by the 16*5*5 flatten); small batch.
    x = jax.random.normal(k_data, (2, 3, 32, 32), jnp.float32)

    fwd = jax.jit(cnn_cifar_forward)
    logits = fwd(x, kparams)
    jax.block_until_ready(logits)
    assert logits.shape == (2, num_classes), logits.shape

    # Sanity-check vs. a pure-XLA reference (loose tol: MXU accumulation modes).
    ref = reference_forward(x, params)
    err = float(jnp.max(jnp.abs(logits - ref)))
    assert err < 1e-1, f"kernel/reference mismatch: max abs err = {err}"

    print("KERNEL_OK")
</pallas_src>

<mosaic_0001>
module attributes {stable_mosaic.version = 11 : i64} {
  func.func @_cnn_cifar_kernel(%arg0: i32, %arg1: memref<64x96xf32, #tpu.memory_space<vmem>>, %arg2: memref<5x96x224xf32, #tpu.memory_space<vmem>>, %arg3: memref<1x224xf32, #tpu.memory_space<vmem>>, %arg4: memref<5x224x160xf32, #tpu.memory_space<vmem>>, %arg5: memref<1x160xf32, #tpu.memory_space<vmem>>, %arg6: memref<5x160x128xf32, #tpu.memory_space<vmem>>, %arg7: memref<1x128xf32, #tpu.memory_space<vmem>>, %arg8: memref<128x128xf32, #tpu.memory_space<vmem>>, %arg9: memref<1x128xf32, #tpu.memory_space<vmem>>, %arg10: memref<128x128xf32, #tpu.memory_space<vmem>>, %arg11: memref<1x128xf32, #tpu.memory_space<vmem>>, %arg12: memref<2x1x128xf32, #tpu.memory_space<vmem>>) attributes {dimension_semantics = [#tpu.dimension_semantics<parallel>], iteration_bounds = array<i64: 1>, scalar_prefetch = 0 : i64, scratch_operands = 0 : i64, tpu.core_type = #tpu.core_type<tc>, window_params = [{transform_indices = @transform_0, window_bounds = array<i64: 64, 96>}, {pipeline_mode = #tpu.pipeline_mode<synchronous>, transform_indices = @transform_1, window_bounds = array<i64: 5, 96, 224>}, {pipeline_mode = #tpu.pipeline_mode<synchronous>, transform_indices = @transform_2, window_bounds = array<i64: 1, 224>}, {pipeline_mode = #tpu.pipeline_mode<synchronous>, transform_indices = @transform_3, window_bounds = array<i64: 5, 224, 160>}, {pipeline_mode = #tpu.pipeline_mode<synchronous>, transform_indices = @transform_4, window_bounds = array<i64: 1, 160>}, {pipeline_mode = #tpu.pipeline_mode<synchronous>, transform_indices = @transform_5, window_bounds = array<i64: 5, 160, 128>}, {pipeline_mode = #tpu.pipeline_mode<synchronous>, transform_indices = @transform_6, window_bounds = array<i64: 1, 128>}, {pipeline_mode = #tpu.pipeline_mode<synchronous>, transform_indices = @transform_7, window_bounds = array<i64: 128, 128>}, {pipeline_mode = #tpu.pipeline_mode<synchronous>, transform_indices = @transform_8, window_bounds = array<i64: 1, 128>}, {pipeline_mode = #tpu.pipeline_mode<synchronous>, transform_indices = @transform_9, window_bounds = array<i64: 128, 128>}, {pipeline_mode = #tpu.pipeline_mode<synchronous>, transform_indices = @transform_10, window_bounds = array<i64: 1, 128>}, {transform_indices = @transform_11, window_bounds = array<i64: 2, 1, 128>}]} {
    %c0 = arith.constant 0 : index
    %c0_0 = arith.constant 0 : index
    %0 = vector.load %arg1[%c0, %c0_0] : memref<64x96xf32, #tpu.memory_space<vmem>>, vector<64x96xf32>
    %c0_1 = arith.constant 0 : index
    %c0_2 = arith.constant 0 : index
    %c0_3 = arith.constant 0 : index
    %1 = vector.load %arg2[%c0_1, %c0_2, %c0_3] : memref<5x96x224xf32, #tpu.memory_space<vmem>>, vector<1x96x224xf32>
    %2 = vector.shape_cast %1 : vector<1x96x224xf32> to vector<96x224xf32>
    %cst = arith.constant dense<0.000000e+00> : vector<64x224xf32>
    %3 = tpu.matmul %0, %2, %cst {dimension_numbers = #tpu.dot_dimension_numbers<[1], [0], [0], [1], [0, 0, 1, 1], [], []>} : vector<64x96xf32>, vector<96x224xf32>, vector<64x224xf32> -> vector<64x224xf32>
    %4 = tpu.iota {dimensions = array<i32: 1>} : vector<64x64xi32>
    %5 = tpu.iota {dimensions = array<i32: 0>} : vector<64x64xi32>
    %c1_i32 = arith.constant 1 : i32
    %6 = vector.broadcast %c1_i32 : i32 to vector<64x64xi32>
    %7 = arith.addi %5, %6 : vector<64x64xi32>
    %8 = arith.cmpi eq, %4, %7 : vector<64x64xi32>
    %9 = arith.extui %8 : vector<64x64xi1> to vector<64x64xi32>
    %10 = arith.sitofp %9 : vector<64x64xi32> to vector<64x64xf32>
    %c1 = arith.constant 1 : index
    %c0_4 = arith.constant 0 : index
    %c0_5 = arith.constant 0 : index
    %11 = vector.load %arg2[%c1, %c0_4, %c0_5] : memref<5x96x224xf32, #tpu.memory_space<vmem>>, vector<1x96x224xf32>
    %12 = vector.shape_cast %11 : vector<1x96x224xf32> to vector<96x224xf32>
    %cst_6 = arith.constant dense<0.000000e+00> : vector<64x224xf32>
    %13 = tpu.matmul %0, %12, %cst_6 {dimension_numbers = #tpu.dot_dimension_numbers<[1], [0], [0], [1], [0, 0, 1, 1], [], []>} : vector<64x96xf32>, vector<96x224xf32>, vector<64x224xf32> -> vector<64x224xf32>
    %cst_7 = arith.constant dense<0.000000e+00> : vector<64x224xf32>
    %14 = tpu.matmul %10, %13, %cst_7 {dimension_numbers = #tpu.dot_dimension_numbers<[1], [0], [0], [1], [0, 0, 1, 1], [], []>} : vector<64x64xf32>, vector<64x224xf32>, vector<64x224xf32> -> vector<64x224xf32>
    %15 = arith.addf %3, %14 : vector<64x224xf32>
    %16 = tpu.iota {dimensions = array<i32: 1>} : vector<64x64xi32>
    %17 = tpu.iota {dimensions = array<i32: 0>} : vector<64x64xi32>
    %c2_i32 = arith.constant 2 : i32
    %18 = vector.broadcast %c2_i32 : i32 to vector<64x64xi32>
    %19 = arith.addi %17, %18 : vector<64x64xi32>
    %20 = arith.cmpi eq, %16, %19 : vector<64x64xi32>
    %21 = arith.extui %20 : vector<64x64xi1> to vector<64x64xi32>
    %22 = arith.sitofp %21 : vector<64x64xi32> to vector<64x64xf32>
    %c2 = arith.constant 2 : index
    %c0_8 = arith.constant 0 : index
    %c0_9 = arith.constant 0 : index
    %23 = vector.load %arg2[%c2, %c0_8, %c0_9] : memref<5x96x224xf32, #tpu.memory_space<vmem>>, vector<1x96x224xf32>
    %24 = vector.shape_cast %23 : vector<1x96x224xf32> to vector<96x224xf32>
    %cst_10 = arith.constant dense<0.000000e+00> : vector<64x224xf32>
    %25 = tpu.matmul %0, %24, %cst_10 {dimension_numbers = #tpu.dot_dimension_numbers<[1], [0], [0], [1], [0, 0, 1, 1], [], []>} : vector<64x96xf32>, vector<96x224xf32>, vector<64x224xf32> -> vector<64x224xf32>
    %cst_11 = arith.constant dense<0.000000e+00> : vector<64x224xf32>
    %26 = tpu.matmul %22, %25, %cst_11 {dimension_numbers = #tpu.dot_dimension_numbers<[1], [0], [0], [1], [0, 0, 1, 1], [], []>} : vector<64x64xf32>, vector<64x224xf32>, vector<64x224xf32> -> vector<64x224xf32>
    %27 = arith.addf %15, %26 : vector<64x224xf32>
    %28 = tpu.iota {dimensions = array<i32: 1>} : vector<64x64xi32>
    %29 = tpu.iota {dimensions = array<i32: 0>} : vector<64x64xi32>
    %c3_i32 = arith.constant 3 : i32
    %30 = vector.broadcast %c3_i32 : i32 to vector<64x64xi32>
    %31 = arith.addi %29, %30 : vector<64x64xi32>
    %32 = arith.cmpi eq, %28, %31 : vector<64x64xi32>
    %33 = arith.extui %32 : vector<64x64xi1> to vector<64x64xi32>
    %34 = arith.sitofp %33 : vector<64x64xi32> to vector<64x64xf32>
    %c3 = arith.constant 3 : index
    %c0_12 = arith.constant 0 : index
    %c0_13 = arith.constant 0 : index
    %35 = vector.load %arg2[%c3, %c0_12, %c0_13] : memref<5x96x224xf32, #tpu.memory_space<vmem>>, vector<1x96x224xf32>
    %36 = vector.shape_cast %35 : vector<1x96x224xf32> to vector<96x224xf32>
    %cst_14 = arith.constant dense<0.000000e+00> : vector<64x224xf32>
    %37 = tpu.matmul %0, %36, %cst_14 {dimension_numbers = #tpu.dot_dimension_numbers<[1], [0], [0], [1], [0, 0, 1, 1], [], []>} : vector<64x96xf32>, vector<96x224xf32>, vector<64x224xf32> -> vector<64x224xf32>
    %cst_15 = arith.constant dense<0.000000e+00> : vector<64x224xf32>
    %38 = tpu.matmul %34, %37, %cst_15 {dimension_numbers = #tpu.dot_dimension_numbers<[1], [0], [0], [1], [0, 0, 1, 1], [], []>} : vector<64x64xf32>, vector<64x224xf32>, vector<64x224xf32> -> vector<64x224xf32>
    %39 = arith.addf %27, %38 : vector<64x224xf32>
    %40 = tpu.iota {dimensions = array<i32: 1>} : vector<64x64xi32>
    %41 = tpu.iota {dimensions = array<i32: 0>} : vector<64x64xi32>
    %c4_i32 = arith.constant 4 : i32
    %42 = vector.broadcast %c4_i32 : i32 to vector<64x64xi32>
    %43 = arith.addi %41, %42 : vector<64x64xi32>
    %44 = arith.cmpi eq, %40, %43 : vector<64x64xi32>
    %45 = arith.extui %44 : vector<64x64xi1> to vector<64x64xi32>
    %46 = arith.sitofp %45 : vector<64x64xi32> to vector<64x64xf32>
    %c4 = arith.constant 4 : index
    %c0_16 = arith.constant 0 : index
    %c0_17 = arith.constant 0 : index
    %47 = vector.load %arg2[%c4, %c0_16, %c0_17] : memref<5x96x224xf32, #tpu.memory_space<vmem>>, vector<1x96x224xf32>
    %48 = vector.shape_cast %47 : vector<1x96x224xf32> to vector<96x224xf32>
    %cst_18 = arith.constant dense<0.000000e+00> : vector<64x224xf32>
    %49 = tpu.matmul %0, %48, %cst_18 {dimension_numbers = #tpu.dot_dimension_numbers<[1], [0], [0], [1], [0, 0, 1, 1], [], []>} : vector<64x96xf32>, vector<96x224xf32>, vector<64x224xf32> -> vector<64x224xf32>
    %cst_19 = arith.constant dense<0.000000e+00> : vector<64x224xf32>
    %50 = tpu.matmul %46, %49, %cst_19 {dimension_numbers = #tpu.dot_dimension_numbers<[1], [0], [0], [1], [0, 0, 1, 1], [], []>} : vector<64x64xf32>, vector<64x224xf32>, vector<64x224xf32> -> vector<64x224xf32>
    %51 = arith.addf %39, %50 : vector<64x224xf32>
    %c0_20 = arith.constant 0 : index
    %c0_21 = arith.constant 0 : index
    %52 = vector.load %arg3[%c0_20, %c0_21] : memref<1x224xf32, #tpu.memory_space<vmem>>, vector<1x224xf32>
    %53 = vector.broadcast %52 : vector<1x224xf32> to vector<64x224xf32>
    %54 = arith.addf %51, %53 : vector<64x224xf32>
    %cst_22 = arith.constant 0.000000e+00 : f32
    %55 = vector.broadcast %cst_22 : f32 to vector<64x224xf32>
    %56 = arith.maximumf %54, %55 : vector<64x224xf32>
    %57 = tpu.iota {dimensions = array<i32: 0>} : vector<224x224xi32>
    %58 = tpu.iota {dimensions = array<i32: 1>} : vector<224x224xi32>
    %c8_i32 = arith.constant 8 : i32
    %59 = vector.broadcast %c8_i32 : i32 to vector<224x224xi32>
    %60 = arith.addi %58, %59 : vector<224x224xi32>
    %61 = arith.cmpi eq, %57, %60 : vector<224x224xi32>
    %62 = arith.extui %61 : vector<224x224xi1> to vector<224x224xi32>
    %63 = arith.sitofp %62 : vector<224x224xi32> to vector<224x224xf32>
    %cst_23 = arith.constant dense<0.000000e+00> : vector<64x224xf32>
    %64 = tpu.matmul %56, %63, %cst_23 {dimension_numbers = #tpu.dot_dimension_numbers<[1], [0], [0], [1], [0, 0, 1, 1], [], []>} : vector<64x224xf32>, vector<224x224xf32>, vector<64x224xf32> -> vector<64x224xf32>
    %65 = arith.maximumf %56, %64 : vector<64x224xf32>
    %66 = tpu.iota {dimensions = array<i32: 1>} : vector<64x64xi32>
    %67 = tpu.iota {dimensions = array<i32: 0>} : vector<64x64xi32>
    %c1_i32_24 = arith.constant 1 : i32
    %68 = vector.broadcast %c1_i32_24 : i32 to vector<64x64xi32>
    %69 = arith.addi %67, %68 : vector<64x64xi32>
    %70 = arith.cmpi eq, %66, %69 : vector<64x64xi32>
    %71 = arith.extui %70 : vector<64x64xi1> to vector<64x64xi32>
    %72 = arith.sitofp %71 : vector<64x64xi32> to vector<64x64xf32>
    %cst_25 = arith.constant dense<0.000000e+00> : vector<64x224xf32>
    %73 = tpu.matmul %72, %65, %cst_25 {dimension_numbers = #tpu.dot_dimension_numbers<[1], [0], [0], [1], [0, 0, 1, 1], [], []>} : vector<64x64xf32>, vector<64x224xf32>, vector<64x224xf32> -> vector<64x224xf32>
    %74 = arith.maximumf %65, %73 : vector<64x224xf32>
    %c0_26 = arith.constant 0 : index
    %c0_27 = arith.constant 0 : index
    %c0_28 = arith.constant 0 : index
    %75 = vector.load %arg4[%c0_26, %c0_27, %c0_28] : memref<5x224x160xf32, #tpu.memory_space<vmem>>, vector<1x224x160xf32>
    %76 = vector.shape_cast %75 : vector<1x224x160xf32> to vector<224x160xf32>
    %cst_29 = arith.constant dense<0.000000e+00> : vector<64x160xf32>
    %77 = tpu.matmul %74, %76, %cst_29 {dimension_numbers = #tpu.dot_dimension_numbers<[1], [0], [0], [1], [0, 0, 1, 1], [], []>} : vector<64x224xf32>, vector<224x160xf32>, vector<64x160xf32> -> vector<64x160xf32>
    %78 = tpu.iota {dimensions = array<i32: 1>} : vector<64x64xi32>
    %79 = tpu.iota {dimensions = array<i32: 0>} : vector<64x64xi32>
    %c2_i32_30 = arith.constant 2 : i32
    %80 = vector.broadcast %c2_i32_30 : i32 to vector<64x64xi32>
    %81 = arith.addi %79, %80 : vector<64x64xi32>
    %82 = arith.cmpi eq, %78, %81 : vector<64x64xi32>
    %83 = arith.extui %82 : vector<64x64xi1> to vector<64x64xi32>
    %84 = arith.sitofp %83 : vector<64x64xi32> to vector<64x64xf32>
    %c1_31 = arith.constant 1 : index
    %c0_32 = arith.constant 0 : index
    %c0_33 = arith.constant 0 : index
    %85 = vector.load %arg4[%c1_31, %c0_32, %c0_33] : memref<5x224x160xf32, #tpu.memory_space<vmem>>, vector<1x224x160xf32>
    %86 = vector.shape_cast %85 : vector<1x224x160xf32> to vector<224x160xf32>
    %cst_34 = arith.constant dense<0.000000e+00> : vector<64x160xf32>
    %87 = tpu.matmul %74, %86, %cst_34 {dimension_numbers = #tpu.dot_dimension_numbers<[1], [0], [0], [1], [0, 0, 1, 1], [], []>} : vector<64x224xf32>, vector<224x160xf32>, vector<64x160xf32> -> vector<64x160xf32>
    %cst_35 = arith.constant dense<0.000000e+00> : vector<64x160xf32>
    %88 = tpu.matmul %84, %87, %cst_35 {dimension_numbers = #tpu.dot_dimension_numbers<[1], [0], [0], [1], [0, 0, 1, 1], [], []>} : vector<64x64xf32>, vector<64x160xf32>, vector<64x160xf32> -> vector<64x160xf32>
    %89 = arith.addf %77, %88 : vector<64x160xf32>
    %90 = tpu.iota {dimensions = array<i32: 1>} : vector<64x64xi32>
    %91 = tpu.iota {dimensions = array<i32: 0>} : vector<64x64xi32>
    %c4_i32_36 = arith.constant 4 : i32
    %92 = vector.broadcast %c4_i32_36 : i32 to vector<64x64xi32>
    %93 = arith.addi %91, %92 : vector<64x64xi32>
    %94 = arith.cmpi eq, %90, %93 : vector<64x64xi32>
    %95 = arith.extui %94 : vector<64x64xi1> to vector<64x64xi32>
    %96 = arith.sitofp %95 : vector<64x64xi32> to vector<64x64xf32>
    %c2_37 = arith.constant 2 : index
    %c0_38 = arith.constant 0 : index
    %c0_39 = arith.constant 0 : index
    %97 = vector.load %arg4[%c2_37, %c0_38, %c0_39] : memref<5x224x160xf32, #tpu.memory_space<vmem>>, vector<1x224x160xf32>
    %98 = vector.shape_cast %97 : vector<1x224x160xf32> to vector<224x160xf32>
    %cst_40 = arith.constant dense<0.000000e+00> : vector<64x160xf32>
    %99 = tpu.matmul %74, %98, %cst_40 {dimension_numbers = #tpu.dot_dimension_numbers<[1], [0], [0], [1], [0, 0, 1, 1], [], []>} : vector<64x224xf32>, vector<224x160xf32>, vector<64x160xf32> -> vector<64x160xf32>
    %cst_41 = arith.constant dense<0.000000e+00> : vector<64x160xf32>
    %100 = tpu.matmul %96, %99, %cst_41 {dimension_numbers = #tpu.dot_dimension_numbers<[1], [0], [0], [1], [0, 0, 1, 1], [], []>} : vector<64x64xf32>, vector<64x160xf32>, vector<64x160xf32> -> vector<64x160xf32>
    %101 = arith.addf %89, %100 : vector<64x160xf32>
    %102 = tpu.iota {dimensions = array<i32: 1>} : vector<64x64xi32>
    %103 = tpu.iota {dimensions = array<i32: 0>} : vector<64x64xi32>
    %c6_i32 = arith.constant 6 : i32
    %104 = vector.broadcast %c6_i32 : i32 to vector<64x64xi32>
    %105 = arith.addi %103, %104 : vector<64x64xi32>
    %106 = arith.cmpi eq, %102, %105 : vector<64x64xi32>
    %107 = arith.extui %106 : vector<64x64xi1> to vector<64x64xi32>
    %108 = arith.sitofp %107 : vector<64x64xi32> to vector<64x64xf32>
    %c3_42 = arith.constant 3 : index
    %c0_43 = arith.constant 0 : index
    %c0_44 = arith.constant 0 : index
    %109 = vector.load %arg4[%c3_42, %c0_43, %c0_44] : memref<5x224x160xf32, #tpu.memory_space<vmem>>, vector<1x224x160xf32>
    %110 = vector.shape_cast %109 : vector<1x224x160xf32> to vector<224x160xf32>
    %cst_45 = arith.constant dense<0.000000e+00> : vector<64x160xf32>
    %111 = tpu.matmul %74, %110, %cst_45 {dimension_numbers = #tpu.dot_dimension_numbers<[1], [0], [0], [1], [0, 0, 1, 1], [], []>} : vector<64x224xf32>, vector<224x160xf32>, vector<64x160xf32> -> vector<64x160xf32>
    %cst_46 = arith.constant dense<0.000000e+00> : vector<64x160xf32>
    %112 = tpu.matmul %108, %111, %cst_46 {dimension_numbers = #tpu.dot_dimension_numbers<[1], [0], [0], [1], [0, 0, 1, 1], [], []>} : vector<64x64xf32>, vector<64x160xf32>, vector<64x160xf32> -> vector<64x160xf32>
    %113 = arith.addf %101, %112 : vector<64x160xf32>
    %114 = tpu.iota {dimensions = array<i32: 1>} : vector<64x64xi32>
    %115 = tpu.iota {dimensions = array<i32: 0>} : vector<64x64xi32>
    %c8_i32_47 = arith.constant 8 : i32
    %116 = vector.broadcast %c8_i32_47 : i32 to vector<64x64xi32>
    %117 = arith.addi %115, %116 : vector<64x64xi32>
    %118 = arith.cmpi eq, %114, %117 : vector<64x64xi32>
    %119 = arith.extui %118 : vector<64x64xi1> to vector<64x64xi32>
    %120 = arith.sitofp %119 : vector<64x64xi32> to vector<64x64xf32>
    %c4_48 = arith.constant 4 : index
    %c0_49 = arith.constant 0 : index
    %c0_50 = arith.constant 0 : index
    %121 = vector.load %arg4[%c4_48, %c0_49, %c0_50] : memref<5x224x160xf32, #tpu.memory_space<vmem>>, vector<1x224x160xf32>
    %122 = vector.shape_cast %121 : vector<1x224x160xf32> to vector<224x160xf32>
    %cst_51 = arith.constant dense<0.000000e+00> : vector<64x160xf32>
    %123 = tpu.matmul %74, %122, %cst_51 {dimension_numbers = #tpu.dot_dimension_numbers<[1], [0], [0], [1], [0, 0, 1, 1], [], []>} : vector<64x224xf32>, vector<224x160xf32>, vector<64x160xf32> -> vector<64x160xf32>
    %cst_52 = arith.constant dense<0.000000e+00> : vector<64x160xf32>
    %124 = tpu.matmul %120, %123, %cst_52 {dimension_numbers = #tpu.dot_dimension_numbers<[1], [0], [0], [1], [0, 0, 1, 1], [], []>} : vector<64x64xf32>, vector<64x160xf32>, vector<64x160xf32> -> vector<64x160xf32>
    %125 = arith.addf %113, %124 : vector<64x160xf32>
    %c0_53 = arith.constant 0 : index
    %c0_54 = arith.constant 0 : index
    %126 = vector.load %arg5[%c0_53, %c0_54] : memref<1x160xf32, #tpu.memory_space<vmem>>, vector<1x160xf32>
    %127 = vector.broadcast %126 : vector<1x160xf32> to vector<64x160xf32>
    %128 = arith.addf %125, %127 : vector<64x160xf32>
    %cst_55 = arith.constant 0.000000e+00 : f32
    %129 = vector.broadcast %cst_55 : f32 to vector<64x160xf32>
    %130 = arith.maximumf %128, %129 : vector<64x160xf32>
    %131 = tpu.iota {dimensions = array<i32: 0>} : vector<160x160xi32>
    %132 = tpu.iota {dimensions = array<i32: 1>} : vector<160x160xi32>
    %c16_i32 = arith.constant 16 : i32
    %133 = vector.broadcast %c16_i32 : i32 to vector<160x160xi32>
    %134 = arith.addi %132, %133 : vector<160x160xi32>
    %135 = arith.cmpi eq, %131, %134 : vector<160x160xi32>
    %136 = arith.extui %135 : vector<160x160xi1> to vector<160x160xi32>
    %137 = arith.sitofp %136 : vector<160x160xi32> to vector<160x160xf32>
    %cst_56 = arith.constant dense<0.000000e+00> : vector<64x160xf32>
    %138 = tpu.matmul %130, %137, %cst_56 {dimension_numbers = #tpu.dot_dimension_numbers<[1], [0], [0], [1], [0, 0, 1, 1], [], []>} : vector<64x160xf32>, vector<160x160xf32>, vector<64x160xf32> -> vector<64x160xf32>
    %139 = arith.maximumf %130, %138 : vector<64x160xf32>
    %140 = tpu.iota {dimensions = array<i32: 1>} : vector<64x64xi32>
    %141 = tpu.iota {dimensions = array<i32: 0>} : vector<64x64xi32>
    %c2_i32_57 = arith.constant 2 : i32
    %142 = vector.broadcast %c2_i32_57 : i32 to vector<64x64xi32>
    %143 = arith.addi %141, %142 : vector<64x64xi32>
    %144 = arith.cmpi eq, %140, %143 : vector<64x64xi32>
    %145 = arith.extui %144 : vector<64x64xi1> to vector<64x64xi32>
    %146 = arith.sitofp %145 : vector<64x64xi32> to vector<64x64xf32>
    %cst_58 = arith.constant dense<0.000000e+00> : vector<64x160xf32>
    %147 = tpu.matmul %146, %139, %cst_58 {dimension_numbers = #tpu.dot_dimension_numbers<[1], [0], [0], [1], [0, 0, 1, 1], [], []>} : vector<64x64xf32>, vector<64x160xf32>, vector<64x160xf32> -> vector<64x160xf32>
    %148 = arith.maximumf %139, %147 : vector<64x160xf32>
    %cst_59 = arith.constant 0.000000e+00 : f32
    %149 = vector.broadcast %cst_59 : f32 to vector<2x128xf32>
    %150 = tpu.iota {dimensions = array<i32: 1>} : vector<2x64xi32>
    %151 = tpu.iota {dimensions = array<i32: 0>} : vector<2x64xi32>
    %c32_i32 = arith.constant 32 : i32
    %152 = vector.broadcast %c32_i32 : i32 to vector<2x64xi32>
    %153 = arith.muli %152, %151 : vector<2x64xi32>
    %c0_i32 = arith.constant 0 : i32
    %154 = vector.broadcast %c0_i32 : i32 to vector<2x64xi32>
    %155 = arith.addi %153, %154 : vector<2x64xi32>
    %156 = arith.cmpi eq, %150, %155 : vector<2x64xi32>
    %157 = arith.extui %156 : vector<2x64xi1> to vector<2x64xi32>
    %158 = arith.sitofp %157 : vector<2x64xi32> to vector<2x64xf32>
    %cst_60 = arith.constant dense<0.000000e+00> : vector<2x160xf32>
    %159 = tpu.matmul %158, %148, %cst_60 {dimension_numbers = #tpu.dot_dimension_numbers<[1], [0], [0], [1], [0, 0, 1, 1], [], []>} : vector<2x64xf32>, vector<64x160xf32>, vector<2x160xf32> -> vector<2x160xf32>
    %c0_61 = arith.constant 0 : index
    %c0_62 = arith.constant 0 : index
    %c0_63 = arith.constant 0 : index
    %160 = vector.load %arg6[%c0_61, %c0_62, %c0_63] : memref<5x160x128xf32, #tpu.memory_space<vmem>>, vector<1x160x128xf32>
    %161 = vector.shape_cast %160 : vector<1x160x128xf32> to vector<160x128xf32>
    %cst_64 = arith.constant dense<0.000000e+00> : vector<2x128xf32>
    %162 = tpu.matmul %159, %161, %cst_64 {dimension_numbers = #tpu.dot_dimension_numbers<[1], [0], [0], [1], [0, 0, 1, 1], [], []>} : vector<2x160xf32>, vector<160x128xf32>, vector<2x128xf32> -> vector<2x128xf32>
    %163 = arith.addf %149, %162 : vector<2x128xf32>
    %164 = tpu.iota {dimensions = array<i32: 1>} : vector<2x64xi32>
    %165 = tpu.iota {dimensions = array<i32: 0>} : vector<2x64xi32>
    %c32_i32_65 = arith.constant 32 : i32
    %166 = vector.broadcast %c32_i32_65 : i32 to vector<2x64xi32>
    %167 = arith.muli %166, %165 : vector<2x64xi32>
    %c4_i32_66 = arith.constant 4 : i32
    %168 = vector.broadcast %c4_i32_66 : i32 to vector<2x64xi32>
    %169 = arith.addi %167, %168 : vector<2x64xi32>
    %170 = arith.cmpi eq, %164, %169 : vector<2x64xi32>
    %171 = arith.extui %170 : vector<2x64xi1> to vector<2x64xi32>
    %172 = arith.sitofp %171 : vector<2x64xi32> to vector<2x64xf32>
    %cst_67 = arith.constant dense<0.000000e+00> : vector<2x160xf32>
    %173 = tpu.matmul %172, %148, %cst_67 {dimension_numbers = #tpu.dot_dimension_numbers<[1], [0], [0], [1], [0, 0, 1, 1], [], []>} : vector<2x64xf32>, vector<64x160xf32>, vector<2x160xf32> -> vector<2x160xf32>
    %c1_68 = arith.constant 1 : index
    %c0_69 = arith.constant 0 : index
    %c0_70 = arith.constant 0 : index
    %174 = vector.load %arg6[%c1_68, %c0_69, %c0_70] : memref<5x160x128xf32, #tpu.memory_space<vmem>>, vector<1x160x128xf32>
    %175 = vector.shape_cast %174 : vector<1x160x128xf32> to vector<160x128xf32>
    %cst_71 = arith.constant dense<0.000000e+00> : vector<2x128xf32>
    %176 = tpu.matmul %173, %175, %cst_71 {dimension_numbers = #tpu.dot_dimension_numbers<[1], [0], [0], [1], [0, 0, 1, 1], [], []>} : vector<2x160xf32>, vector<160x128xf32>, vector<2x128xf32> -> vector<2x128xf32>
    %177 = arith.addf %163, %176 : vector<2x128xf32>
    %178 = tpu.iota {dimensions = array<i32: 1>} : vector<2x64xi32>
    %179 = tpu.iota {dimensions = array<i32: 0>} : vector<2x64xi32>
    %c32_i32_72 = arith.constant 32 : i32
    %180 = vector.broadcast %c32_i32_72 : i32 to vector<2x64xi32>
    %181 = arith.muli %180, %179 : vector<2x64xi32>
    %c8_i32_73 = arith.constant 8 : i32
    %182 = vector.broadcast %c8_i32_73 : i32 to vector<2x64xi32>
    %183 = arith.addi %181, %182 : vector<2x64xi32>
    %184 = arith.cmpi eq, %178, %183 : vector<2x64xi32>
    %185 = arith.extui %184 : vector<2x64xi1> to vector<2x64xi32>
    %186 = arith.sitofp %185 : vector<2x64xi32> to vector<2x64xf32>
    %cst_74 = arith.constant dense<0.000000e+00> : vector<2x160xf32>
    %187 = tpu.matmul %186, %148, %cst_74 {dimension_numbers = #tpu.dot_dimension_numbers<[1], [0], [0], [1], [0, 0, 1, 1], [], []>} : vector<2x64xf32>, vector<64x160xf32>, vector<2x160xf32> -> vector<2x160xf32>
    %c2_75 = arith.constant 2 : index
    %c0_76 = arith.constant 0 : index
    %c0_77 = arith.constant 0 : index
    %188 = vector.load %arg6[%c2_75, %c0_76, %c0_77] : memref<5x160x128xf32, #tpu.memory_space<vmem>>, vector<1x160x128xf32>
    %189 = vector.shape_cast %188 : vector<1x160x128xf32> to vector<160x128xf32>
    %cst_78 = arith.constant dense<0.000000e+00> : vector<2x128xf32>
    %190 = tpu.matmul %187, %189, %cst_78 {dimension_numbers = #tpu.dot_dimension_numbers<[1], [0], [0], [1], [0, 0, 1, 1], [], []>} : vector<2x160xf32>, vector<160x128xf32>, vector<2x128xf32> -> vector<2x128xf32>
    %191 = arith.addf %177, %190 : vector<2x128xf32>
    %192 = tpu.iota {dimensions = array<i32: 1>} : vector<2x64xi32>
    %193 = tpu.iota {dimensions = array<i32: 0>} : vector<2x64xi32>
    %c32_i32_79 = arith.constant 32 : i32
    %194 = vector.broadcast %c32_i32_79 : i32 to vector<2x64xi32>
    %195 = arith.muli %194, %193 : vector<2x64xi32>
    %c12_i32 = arith.constant 12 : i32
    %196 = vector.broadcast %c12_i32 : i32 to vector<2x64xi32>
    %197 = arith.addi %195, %196 : vector<2x64xi32>
    %198 = arith.cmpi eq, %192, %197 : vector<2x64xi32>
    %199 = arith.extui %198 : vector<2x64xi1> to vector<2x64xi32>
    %200 = arith.sitofp %199 : vector<2x64xi32> to vector<2x64xf32>
    %cst_80 = arith.constant dense<0.000000e+00> : vector<2x160xf32>
    %201 = tpu.matmul %200, %148, %cst_80 {dimension_numbers = #tpu.dot_dimension_numbers<[1], [0], [0], [1], [0, 0, 1, 1], [], []>} : vector<2x64xf32>, vector<64x160xf32>, vector<2x160xf32> -> vector<2x160xf32>
    %c3_81 = arith.constant 3 : index
    %c0_82 = arith.constant 0 : index
    %c0_83 = arith.constant 0 : index
    %202 = vector.load %arg6[%c3_81, %c0_82, %c0_83] : memref<5x160x128xf32, #tpu.memory_space<vmem>>, vector<1x160x128xf32>
    %203 = vector.shape_cast %202 : vector<1x160x128xf32> to vector<160x128xf32>
    %cst_84 = arith.constant dense<0.000000e+00> : vector<2x128xf32>
    %204 = tpu.matmul %201, %203, %cst_84 {dimension_numbers = #tpu.dot_dimension_numbers<[1], [0], [0], [1], [0, 0, 1, 1], [], []>} : vector<2x160xf32>, vector<160x128xf32>, vector<2x128xf32> -> vector<2x128xf32>
    %205 = arith.addf %191, %204 : vector<2x128xf32>
    %206 = tpu.iota {dimensions = array<i32: 1>} : vector<2x64xi32>
    %207 = tpu.iota {dimensions = array<i32: 0>} : vector<2x64xi32>
    %c32_i32_85 = arith.constant 32 : i32
    %208 = vector.broadcast %c32_i32_85 : i32 to vector<2x64xi32>
    %209 = arith.muli %208, %207 : vector<2x64xi32>
    %c16_i32_86 = arith.constant 16 : i32
    %210 = vector.broadcast %c16_i32_86 : i32 to vector<2x64xi32>
    %211 = arith.addi %209, %210 : vector<2x64xi32>
    %212 = arith.cmpi eq, %206, %211 : vector<2x64xi32>
    %213 = arith.extui %212 : vector<2x64xi1> to vector<2x64xi32>
    %214 = arith.sitofp %213 : vector<2x64xi32> to vector<2x64xf32>
    %cst_87 = arith.constant dense<0.000000e+00> : vector<2x160xf32>
    %215 = tpu.matmul %214, %148, %cst_87 {dimension_numbers = #tpu.dot_dimension_numbers<[1], [0], [0], [1], [0, 0, 1, 1], [], []>} : vector<2x64xf32>, vector<64x160xf32>, vector<2x160xf32> -> vector<2x160xf32>
    %c4_88 = arith.constant 4 : index
    %c0_89 = arith.constant 0 : index
    %c0_90 = arith.constant 0 : index
    %216 = vector.load %arg6[%c4_88, %c0_89, %c0_90] : memref<5x160x128xf32, #tpu.memory_space<vmem>>, vector<1x160x128xf32>
    %217 = vector.shape_cast %216 : vector<1x160x128xf32> to vector<160x128xf32>
    %cst_91 = arith.constant dense<0.000000e+00> : vector<2x128xf32>
    %218 = tpu.matmul %215, %217, %cst_91 {dimension_numbers = #tpu.dot_dimension_numbers<[1], [0], [0], [1], [0, 0, 1, 1], [], []>} : vector<2x160xf32>, vector<160x128xf32>, vector<2x128xf32> -> vector<2x128xf32>
    %219 = arith.addf %205, %218 : vector<2x128xf32>
    %c0_92 = arith.constant 0 : index
    %c0_93 = arith.constant 0 : index
    %220 = vector.load %arg7[%c0_92, %c0_93] : memref<1x128xf32, #tpu.memory_space<vmem>>, vector<1x128xf32>
    %221 = vector.broadcast %220 : vector<1x128xf32> to vector<2x128xf32>
    %222 = arith.addf %219, %221 : vector<2x128xf32>
    %cst_94 = arith.constant 0.000000e+00 : f32
    %223 = vector.broadcast %cst_94 : f32 to vector<2x128xf32>
    %224 = arith.maximumf %222, %223 : vector<2x128xf32>
    %c0_95 = arith.constant 0 : index
    %c0_96 = arith.constant 0 : index
    %225 = vector.load %arg8[%c0_95, %c0_96] : memref<128x128xf32, #tpu.memory_space<vmem>>, vector<128x128xf32>
    %cst_97 = arith.constant dense<0.000000e+00> : vector<2x128xf32>
    %226 = tpu.matmul %224, %225, %cst_97 {dimension_numbers = #tpu.dot_dimension_numbers<[1], [0], [0], [1], [0, 0, 1, 1], [], []>} : vector<2x128xf32>, vector<128x128xf32>, vector<2x128xf32> -> vector<2x128xf32>
    %c0_98 = arith.constant 0 : index
    %c0_99 = arith.constant 0 : index
    %227 = vector.load %arg9[%c0_98, %c0_99] : memref<1x128xf32, #tpu.memory_space<vmem>>, vector<1x128xf32>
    %228 = vector.broadcast %227 : vector<1x128xf32> to vector<2x128xf32>
    %229 = arith.addf %226, %228 : vector<2x128xf32>
    %cst_100 = arith.constant 0.000000e+00 : f32
    %230 = vector.broadcast %cst_100 : f32 to vector<2x128xf32>
    %231 = arith.maximumf %229, %230 : vector<2x128xf32>
    %c0_101 = arith.constant 0 : index
    %c0_102 = arith.constant 0 : index
    %232 = vector.load %arg10[%c0_101, %c0_102] : memref<128x128xf32, #tpu.memory_space<vmem>>, vector<128x128xf32>
    %cst_103 = arith.constant dense<0.000000e+00> : vector<2x128xf32>
    %233 = tpu.matmul %231, %232, %cst_103 {dimension_numbers = #tpu.dot_dimension_numbers<[1], [0], [0], [1], [0, 0, 1, 1], [], []>} : vector<2x128xf32>, vector<128x128xf32>, vector<2x128xf32> -> vector<2x128xf32>
    %c0_104 = arith.constant 0 : index
    %c0_105 = arith.constant 0 : index
    %234 = vector.load %arg11[%c0_104, %c0_105] : memref<1x128xf32, #tpu.memory_space<vmem>>, vector<1x128xf32>
    %235 = vector.broadcast %234 : vector<1x128xf32> to vector<2x128xf32>
    %236 = arith.addf %233, %235 : vector<2x128xf32>
    %c0_106 = arith.constant 0 : index
    %c0_107 = arith.constant 0 : index
    %c0_108 = arith.constant 0 : index
    %237 = vector.load %arg12[%c0_106, %c0_107, %c0_108] : memref<2x1x128xf32, #tpu.memory_space<vmem>>, vector<2x1x128xf32>
    %238 = vector.shape_cast %237 : vector<2x1x128xf32> to vector<2x128xf32>
    %239 = vector.shape_cast %236 : vector<2x128xf32> to vector<2x1x128xf32>
    tpu.vector_store %arg12[%c0_106, %c0_107, %c0_108], %239 {strides = array<i32>} : memref<2x1x128xf32, #tpu.memory_space<vmem>>, vector<2x1x128xf32>,
    return
  }
  func.func @transform_0(%arg0: i32) -> (i32, i32) {
    %c0_i32 = arith.constant 0 : i32
    %c0_i32_0 = arith.constant 0 : i32
    return %arg0, %c0_i32 : i32, i32
  }
  func.func @transform_1(%arg0: i32) -> (i32, i32, i32) {
    %c0_i32 = arith.constant 0 : i32
    %c0_i32_0 = arith.constant 0 : i32
    %c0_i32_1 = arith.constant 0 : i32
    %c0_i32_2 = arith.constant 0 : i32
    return %c0_i32, %c0_i32_0, %c0_i32_1 : i32, i32, i32
  }
  func.func @transform_2(%arg0: i32) -> (i32, i32) {
    %c0_i32 = arith.constant 0 : i32
    %c0_i32_0 = arith.constant 0 : i32
    %c0_i32_1 = arith.constant 0 : i32
    return %c0_i32, %c0_i32_0 : i32, i32
  }
  func.func @transform_3(%arg0: i32) -> (i32, i32, i32) {
    %c0_i32 = arith.constant 0 : i32
    %c0_i32_0 = arith.constant 0 : i32
    %c0_i32_1 = arith.constant 0 : i32
    %c0_i32_2 = arith.constant 0 : i32
    return %c0_i32, %c0_i32_0, %c0_i32_1 : i32, i32, i32
  }
  func.func @transform_4(%arg0: i32) -> (i32, i32) {
    %c0_i32 = arith.constant 0 : i32
    %c0_i32_0 = arith.constant 0 : i32
    %c0_i32_1 = arith.constant 0 : i32
    return %c0_i32, %c0_i32_0 : i32, i32
  }
  func.func @transform_5(%arg0: i32) -> (i32, i32, i32) {
    %c0_i32 = arith.constant 0 : i32
    %c0_i32_0 = arith.constant 0 : i32
    %c0_i32_1 = arith.constant 0 : i32
    %c0_i32_2 = arith.constant 0 : i32
    return %c0_i32, %c0_i32_0, %c0_i32_1 : i32, i32, i32
  }
  func.func @transform_6(%arg0: i32) -> (i32, i32) {
    %c0_i32 = arith.constant 0 : i32
    %c0_i32_0 = arith.constant 0 : i32
    %c0_i32_1 = arith.constant 0 : i32
    return %c0_i32, %c0_i32_0 : i32, i32
  }
  func.func @transform_7(%arg0: i32) -> (i32, i32) {
    %c0_i32 = arith.constant 0 : i32
    %c0_i32_0 = arith.constant 0 : i32
    %c0_i32_1 = arith.constant 0 : i32
    return %c0_i32, %c0_i32_0 : i32, i32
  }
  func.func @transform_8(%arg0: i32) -> (i32, i32) {
    %c0_i32 = arith.constant 0 : i32
    %c0_i32_0 = arith.constant 0 : i32
    %c0_i32_1 = arith.constant 0 : i32
    return %c0_i32, %c0_i32_0 : i32, i32
  }
  func.func @transform_9(%arg0: i32) -> (i32, i32) {
    %c0_i32 = arith.constant 0 : i32
    %c0_i32_0 = arith.constant 0 : i32
    %c0_i32_1 = arith.constant 0 : i32
    return %c0_i32, %c0_i32_0 : i32, i32
  }
  func.func @transform_10(%arg0: i32) -> (i32, i32) {
    %c0_i32 = arith.constant 0 : i32
    %c0_i32_0 = arith.constant 0 : i32
    %c0_i32_1 = arith.constant 0 : i32
    return %c0_i32, %c0_i32_0 : i32, i32
  }
  func.func @transform_11(%arg0: i32) -> (i32, i32, i32) {
    %c0_i32 = arith.constant 0 : i32
    %c0_i32_0 = arith.constant 0 : i32
    %c0_i32_1 = arith.constant 0 : i32
    return %arg0, %c0_i32, %c0_i32_0 : i32, i32, i32
  }
}

</mosaic_0001>

<llo_original>
// kernel: cnn_cifar_forward.1
$region0: #{cnn_cifar_forward.1}
  #allocation0 [shape = 'u32[]', space=smem, size = 0x4, offset = 0x4, fixed_abs, tag = 'smem constant byte address 0x4 - core index']
  #allocation1 [shape = 'u32[144,128]{1,0:T(1,128)}', space=vmem, size = 0x12000, scoped, tag = 'internal scratch']
  %s0 = inlined_call_operand.vmem [shape: f32[64,96], index: 0, kind: input, shape index: {}]
  %s1 = inlined_call_operand.vmem [shape: f32[5,96,224], index: 1, kind: input, shape index: {}]
  %s2 = inlined_call_operand.vmem [shape: f32[1,224], index: 2, kind: input, shape index: {}]
  %s3 = inlined_call_operand.vmem [shape: f32[5,224,160], index: 3, kind: input, shape index: {}]
  %s4 = inlined_call_operand.vmem [shape: f32[1,160], index: 4, kind: input, shape index: {}]
  %s5 = inlined_call_operand.vmem [shape: f32[5,160,128], index: 5, kind: input, shape index: {}]
  %s6 = inlined_call_operand.vmem [shape: f32[1,128], index: 6, kind: input, shape index: {}]
  %s7 = inlined_call_operand.vmem [shape: f32[128,128], index: 7, kind: input, shape index: {}]
  %s8 = inlined_call_operand.vmem [shape: f32[1,128], index: 8, kind: input, shape index: {}]
  %s9 = inlined_call_operand.vmem [shape: f32[128,128], index: 9, kind: input, shape index: {}]
  %s10 = inlined_call_operand.vmem [shape: f32[1,128], index: 10, kind: input, shape index: {}]
  %s11 = inlined_call_operand.hbm [shape: f32[2,1,128], index: 11, kind: output, shape index: {}]
  %s12 = sld [smem:[#allocation0]]
  $region54: #{cnn_cifar_forward.1} parent=0
    _
  %s14 = ssub.s32 1, %s12
  %s15 = scalar_select 0, %s14, %s12
  $region1: #{cnn_cifar_forward.1} parent=0
    #allocation2 [shape = 'u8[1024]{0}', space=vmem, size = 0x400, scoped, tag = 'output window, operand 0, single buffered']
    #allocation3 [shape = 's32[1]{0}', space=sflag, size = 0x4, scoped, tag = 'scoped memory for cnn_cifar_forward.1']
    %16 = vsyncpa [#allocation3], 0
    // Predicated region
    $region2: #{cnn_cifar_forward.1} parent=1 // pred_check
      _
    $region3: #{cnn_cifar_forward.1} parent=1 // pred_check_branch
      %18 = sbr.rel (0) target = $region5
    $region4: #{cnn_cifar_forward.1} parent=1 // pred_region
      _
    $region5: #{cnn_cifar_forward.1} parent=1 // pred_fallthru
      _
    // Predicated region
    $region6: #{cnn_cifar_forward.1} parent=1 // pred_check
      _
    $region7: #{cnn_cifar_forward.1} parent=1 // pred_check_branch
      %20 = sbr.rel (0) target = $region9
    $region8: #{cnn_cifar_forward.1} parent=1 // pred_region
      _
    $region9: #{cnn_cifar_forward.1} parent=1 // pred_fallthru
      _
    // Predicated region
    $region10: #{cnn_cifar_forward.1} parent=1 // pred_check
      _
    $region11: #{cnn_cifar_forward.1} parent=1 // pred_check_branch
      %22 = sbr.rel (0) target = $region13
    $region12: #{cnn_cifar_forward.1} parent=1 // pred_region
      _
    $region13: #{cnn_cifar_forward.1} parent=1 // pred_fallthru
      _
    // Predicated region
    $region14: #{cnn_cifar_forward.1} parent=1 // pred_check
      _
    $region15: #{cnn_cifar_forward.1} parent=1 // pred_check_branch
      %24 = sbr.rel (0) target = $region17
    $region16: #{cnn_cifar_forward.1} parent=1 // pred_region
      _
    $region17: #{cnn_cifar_forward.1} parent=1 // pred_fallthru
      _
    // Predicated region
    $region18: #{cnn_cifar_forward.1} parent=1 // pred_check
      _
    $region19: #{cnn_cifar_forward.1} parent=1 // pred_check_branch
      %26 = sbr.rel (0) target = $region21
    $region20: #{cnn_cifar_forward.1} parent=1 // pred_region
      _
    $region21: #{cnn_cifar_forward.1} parent=1 // pred_fallthru
      _
    // Predicated region
    $region22: #{cnn_cifar_forward.1} parent=1 // pred_check
      _
    $region23: #{cnn_cifar_forward.1} parent=1 // pred_check_branch
      %28 = sbr.rel (0) target = $region25
    $region24: #{cnn_cifar_forward.1} parent=1 // pred_region
      _
    $region25: #{cnn_cifar_forward.1} parent=1 // pred_fallthru
      _
    // Predicated region
    $region26: #{cnn_cifar_forward.1} parent=1 // pred_check
      _
    $region27: #{cnn_cifar_forward.1} parent=1 // pred_check_branch
      %30 = sbr.rel (0) target = $region29
    $region28: #{cnn_cifar_forward.1} parent=1 // pred_region
      _
    $region29: #{cnn_cifar_forward.1} parent=1 // pred_fallthru
      _
    // Predicated region
    $region30: #{cnn_cifar_forward.1} parent=1 // pred_check
      _
    $region31: #{cnn_cifar_forward.1} parent=1 // pred_check_branch
      %32 = sbr.rel (0) target = $region33
    $region32: #{cnn_cifar_forward.1} parent=1 // pred_region
      _
    $region33: #{cnn_cifar_forward.1} parent=1 // pred_fallthru
      _
    // Predicated region
    $region34: #{cnn_cifar_forward.1} parent=1 // pred_check
      _
    $region35: #{cnn_cifar_forward.1} parent=1 // pred_check_branch
      %34 = sbr.rel (0) target = $region37
    $region36: #{cnn_cifar_forward.1} parent=1 // pred_region
      _
    $region37: #{cnn_cifar_forward.1} parent=1 // pred_fallthru
      _
    // Predicated region
    $region38: #{cnn_cifar_forward.1} parent=1 // pred_check
      _
    $region39: #{cnn_cifar_forward.1} parent=1 // pred_check_branch
      %36 = sbr.rel (0) target = $region41
    $region40: #{cnn_cifar_forward.1} parent=1 // pred_region
      _
    $region41: #{cnn_cifar_forward.1} parent=1 // pred_fallthru
      _
    // Predicated region
    $region42: #{cnn_cifar_forward.1} parent=1 // pred_check
      _
    $region43: #{cnn_cifar_forward.1} parent=1 // pred_check_branch
      %38 = sbr.rel (0) target = $region45
    $region44: #{cnn_cifar_forward.1} parent=1 // pred_region
      _
    $region45: #{cnn_cifar_forward.1} parent=1 // pred_fallthru
      _
    %v39 = vld [vmem:[%s0] sm:$0xff]
    %v40 = vld [vmem:[%s0 + $0x8] sm:$0xff]
    %v41 = vld [vmem:[%s0 + $0x10] sm:$0xff]
    %v42 = vld [vmem:[%s0 + $0x18] sm:$0xff]
    %v43 = vld [vmem:[%s0 + $0x20] sm:$0xff]
    %v44 = vld [vmem:[%s0 + $0x28] sm:$0xff]
    %v45 = vld [vmem:[%s0 + $0x30] sm:$0xff]
    %v46 = vld [vmem:[%s0 + $0x38] sm:$0xff]
    %v47 = vld [vmem:[%s1] sm:$0xff]
    %v48 = vld [vmem:[%s1 + $0x8] sm:$0xff]
    %v49 = vld [vmem:[%s1 + $0x10] sm:$0xff]
    %v50 = vld [vmem:[%s1 + $0x18] sm:$0xff]
    %v51 = vld [vmem:[%s1 + $0x20] sm:$0xff]
    %v52 = vld [vmem:[%s1 + $0x28] sm:$0xff]
    %v53 = vld [vmem:[%s1 + $0x30] sm:$0xff]
    %v54 = vld [vmem:[%s1 + $0x38] sm:$0xff]
    %v55 = vld [vmem:[%s1 + $0x40] sm:$0xff]
    %v56 = vld [vmem:[%s1 + $0x48] sm:$0xff]
    %v57 = vld [vmem:[%s1 + $0x50] sm:$0xff]
    %v58 = vld [vmem:[%s1 + $0x58] sm:$0xff]
    %v59 = vld [vmem:[%s1 + $0x60] sm:$0xff]
    %v60 = vld [vmem:[%s1 + $0x68] sm:$0xff]
    %v61 = vld [vmem:[%s1 + $0x70] sm:$0xff]
    %v62 = vld [vmem:[%s1 + $0x78] sm:$0xff]
    %v63 = vld [vmem:[%s1 + $0x80] sm:$0xff]
    %v64 = vld [vmem:[%s1 + $0x88] sm:$0xff]
    %v65 = vld [vmem:[%s1 + $0x90] sm:$0xff]
    %v66 = vld [vmem:[%s1 + $0x98] sm:$0xff]
    %v67 = vld [vmem:[%s1 + $0xa0] sm:$0xff]
    %v68 = vld [vmem:[%s1 + $0xa8] sm:$0xff]
    %v69 = vld [vmem:[%s1 + $0xb0] sm:$0xff]
    %v70 = vld [vmem:[%s1 + $0xb8] sm:$0xff]
    %v71 = vlaneseq
    %v72 = vand.u32 %v71, 127
    %v73 = vlaneseq
    %v74 = vshrl.u32 %v73, 7
    %v75 = vadd.s32 %v74, 8
    %v76 = vadd.s32 %v74, 16
    %v77 = vadd.s32 %v74, 24
    %v78 = vadd.s32 %v74, 32
    %v79 = vadd.s32 %v74, 40
    %v80 = vadd.s32 %v74, 48
    %v81 = vadd.s32 %v74, 56
    %v82 = vadd.s32 %v74, 1
    %v83 = vadd.s32 %v75, 1
    %v84 = vadd.s32 %v76, 1
    %v85 = vadd.s32 %v77, 1
    %v86 = vadd.s32 %v78, 1
    %v87 = vadd.s32 %v79, 1
    %v88 = vadd.s32 %v80, 1
    %v89 = vadd.s32 %v81, 1
    %vm90 = vcmp.eq.s32.totalorder %v72, %v82
    %vm91 = vcmp.eq.s32.totalorder %v72, %v83
    %vm92 = vcmp.eq.s32.totalorder %v72, %v84
    %vm93 = vcmp.eq.s32.totalorder %v72, %v85
    %vm94 = vcmp.eq.s32.totalorder %v72, %v86
    %vm95 = vcmp.eq.s32.totalorder %v72, %v87
    %vm96 = vcmp.eq.s32.totalorder %v72, %v88
    %vm97 = vcmp.eq.s32.totalorder %v72, %v89
    %v98 = vsel %vm90, 1, 0
    %v99 = vsel %vm91, 1, 0
    %v100 = vsel %vm92, 1, 0
    %v101 = vsel %vm93, 1, 0
    %v102 = vsel %vm94, 1, 0
    %v103 = vsel %vm95, 1, 0
    %v104 = vsel %vm96, 1, 0
    %v105 = vsel %vm97, 1, 0
    %v106 = vcvt.s32.f32 %v98
    %v107 = vcvt.s32.f32 %v99
    %v108 = vcvt.s32.f32 %v100
    %v109 = vcvt.s32.f32 %v101
    %v110 = vcvt.s32.f32 %v102
    %v111 = vcvt.s32.f32 %v103
    %v112 = vcvt.s32.f32 %v104
    %v113 = vcvt.s32.f32 %v105
    %s114 = scalar_lea.vmem %s1, 192
    %v115 = vld [vmem:[%s114] sm:$0xff]
    %v116 = vld [vmem:[%s114 + $0x8] sm:$0xff]
    %v117 = vld [vmem:[%s114 + $0x10] sm:$0xff]
    %v118 = vld [vmem:[%s114 + $0x18] sm:$0xff]
    %v119 = vld [vmem:[%s114 + $0x20] sm:$0xff]
    %v120 = vld [vmem:[%s114 + $0x28] sm:$0xff]
    %v121 = vld [vmem:[%s114 + $0x30] sm:$0xff]
    %v122 = vld [vmem:[%s114 + $0x38] sm:$0xff]
    %v123 = vld [vmem:[%s114 + $0x40] sm:$0xff]
    %v124 = vld [vmem:[%s114 + $0x48] sm:$0xff]
    %v125 = vld [vmem:[%s114 + $0x50] sm:$0xff]
    %v126 = vld [vmem:[%s114 + $0x58] sm:$0xff]
    %v127 = vld [vmem:[%s114 + $0x60] sm:$0xff]
    %v128 = vld [vmem:[%s114 + $0x68] sm:$0xff]
    %v129 = vld [vmem:[%s114 + $0x70] sm:$0xff]
    %v130 = vld [vmem:[%s114 + $0x78] sm:$0xff]
    %v131 = vld [vmem:[%s114 + $0x80] sm:$0xff]
    %v132 = vld [vmem:[%s114 + $0x88] sm:$0xff]
    %v133 = vld [vmem:[%s114 + $0x90] sm:$0xff]
    %v134 = vld [vmem:[%s114 + $0x98] sm:$0xff]
    %v135 = vld [vmem:[%s114 + $0xa0] sm:$0xff]
    %v136 = vld [vmem:[%s114 + $0xa8] sm:$0xff]
    %v137 = vld [vmem:[%s114 + $0xb0] sm:$0xff]
    %v138 = vld [vmem:[%s114 + $0xb8] sm:$0xff]
    %vm139 = vcmask 785408
    %v141 = vsel %vm139, %v39, 0
    %v144 = vsel %vm139, %v40, 0
    %v147 = vsel %vm139, %v41, 0
    %v150 = vsel %vm139, %v42, 0
    %v153 = vsel %vm139, %v43, 0
    %v156 = vsel %vm139, %v44, 0
    %v159 = vsel %vm139, %v45, 0
    %v162 = vsel %vm139, %v46, 0
    %164 = vmatprep.subr.mxu0 %v116
    %165 = vmatpush1.msra.mxu0 %v115
    %166 = vmatprep.subr.mxu0 %v118
    %167 = vmatpush1.msra.mxu0 %v117
    %168 = vmatprep.subr.mxu0 %v120
    %169 = vmatpush1.msra.mxu0 %v119
    %170 = vmatprep.subr.mxu0 %v122
    %171 = vmatpush1.msra.mxu0 %v121
    %172 = vmatprep.subr.mxu0 %v124
    %173 = vmatpush1.msra.mxu0 %v123
    %174 = vmatprep.subr.mxu0 %v126
    %175 = vmatpush1.msra.mxu0 %v125
    %176 = vmatprep.subr.mxu0 %v128
    %177 = vmatpush1.msra.mxu0 %v127
    %178 = vmatprep.subr.mxu0 %v130
    %179 = vmatpush1.msra.mxu0 %v129
    %180 = vmatprep.subr.mxu0 %v132
    %181 = vmatpush1.msra.mxu0 %v131
    %182 = vmatprep.subr.mxu0 %v134
    %183 = vmatpush1.msra.mxu0 %v133
    %184 = vmatprep.subr.mxu0 %v136
    %185 = vmatpush1.msra.mxu0 %v135
    %186 = vmatprep.subr.mxu0 %v138
    %187 = vmatpush1.msra.mxu0 %v137
    %188 = vmatprep.subr.mxu0 0.0
    %189 = vmatpush1.msra.mxu0 0.0
    %190 = vmatprep.subr.mxu0 0.0
    %191 = vmatpush1.msra.mxu0 0.0
    %192 = vmatprep.subr.mxu0 0.0
    %193 = vmatpush1.msra.mxu0 0.0
    %194 = vmatprep.subr.mxu0 0.0
    %195 = vmatpush1.msra.mxu0 0.0
    %196 = vmatprep.subr.mxu0 0.0
    %197 = vmatpush1.msra.mxu0 0.0
    %198 = vmatprep.subr.mxu0 0.0
    %199 = vmatpush1.msra.mxu0 0.0
    %200 = vmatprep.subr.mxu0 0.0
    %201 = vmatpush1.msra.mxu0 0.0
    %202 = vmatprep.subr.mxu0 0.0
    %203 = vmatpush1.msra.mxu0 0.0
    %204 = vmatprep.subr.mxu0 0.0
    %205 = vmatpush1.msra.mxu0 0.0
    %206 = vmatprep.subr.mxu0 0.0
    %207 = vmatpush1.msra.mxu0 0.0
    %208 = vmatprep.subr.mxu0 0.0
    %209 = vmatpush1.msra.mxu0 0.0
    %210 = vmatprep.subr.mxu0 0.0
    %211 = vmatpush1.msra.mxu0 0.0
    %212 = vmatprep.subr.mxu0 0.0
    %213 = vmatpush1.msra.mxu0 0.0
    %214 = vmatprep.subr.mxu0 0.0
    %215 = vmatpush1.msra.mxu0 0.0
    %216 = vmatprep.subr.mxu0 0.0
    %217 = vmatpush1.msra.mxu0 0.0
    %218 = vmatprep.subr.mxu0 0.0
    %219 = vmatpush1.msra.mxu0 0.0
    %220 = vmatprep.subr.mxu0 0.0
    %221 = vmatpush1.msra.mxu0 0.0
    %222 = vmatprep.subr.mxu0 0.0
    %223 = vmatpush1.msra.mxu0 0.0
    %224 = vmatprep.subr.mxu0 0.0
    %225 = vmatpush1.msra.mxu0 0.0
    %226 = vmatprep.subr.mxu0 0.0
    %227 = vmatpush1.msra.mxu0 0.0
    %228 = vmatprep.mubr.f32.mxu0 0.0
    %229 = vmatmul.mubr.f32.gmra.mrb[0].mxu0 %v141
    %v230 = vpop.f32.mrb[0].mxu0
    %v231 = vadd.f32 0.0, %v230
    %v232 = vpop.f32.mrb[0].mxu0
    %v233 = vadd.f32 0.0, %v232
    %234 = vmatprep.mubr.f32.mxu0 0.0
    %235 = vmatmul.mubr.f32.gmra.mrb[0].mxu0 %v144
    %v236 = vpop.f32.mrb[0].mxu0
    %v237 = vadd.f32 0.0, %v236
    %v238 = vpop.f32.mrb[0].mxu0
    %v239 = vadd.f32 0.0, %v238
    %240 = vmatprep.mubr.f32.mxu0 0.0
    %241 = vmatmul.mubr.f32.gmra.mrb[0].mxu0 %v147
    %v242 = vpop.f32.mrb[0].mxu0
    %v243 = vadd.f32 0.0, %v242
    %v244 = vpop.f32.mrb[0].mxu0
    %v245 = vadd.f32 0.0, %v244
    %246 = vmatprep.mubr.f32.mxu0 0.0
    %247 = vmatmul.mubr.f32.gmra.mrb[0].mxu0 %v150
    %v248 = vpop.f32.mrb[0].mxu0
    %v249 = vadd.f32 0.0, %v248
    %v250 = vpop.f32.mrb[0].mxu0
    %v251 = vadd.f32 0.0, %v250
    %252 = vmatprep.mubr.f32.mxu0 0.0
    %253 = vmatmul.mubr.f32.gmra.mrb[0].mxu0 %v153
    %v254 = vpop.f32.mrb[0].mxu0
    %v255 = vadd.f32 0.0, %v254
    %v256 = vpop.f32.mrb[0].mxu0
    %v257 = vadd.f32 0.0, %v256
    %258 = vmatprep.mubr.f32.mxu0 0.0
    %259 = vmatmul.mubr.f32.gmra.mrb[0].mxu0 %v156
    %v260 = vpop.f32.mrb[0].mxu0
    %v261 = vadd.f32 0.0, %v260
    %v262 = vpop.f32.mrb[0].mxu0
    %v263 = vadd.f32 0.0, %v262
    %264 = vmatprep.mubr.f32.mxu0 0.0
    %265 = vmatmul.mubr.f32.gmra.mrb[0].mxu0 %v159
    %v266 = vpop.f32.mrb[0].mxu0
    %v267 = vadd.f32 0.0, %v266
    %v268 = vpop.f32.mrb[0].mxu0
    %v269 = vadd.f32 0.0, %v268
    %270 = vmatprep.mubr.f32.mxu0 0.0
    %271 = vmatmul.mubr.f32.gmra.mrb[0].mxu0 %v162
    %v272 = vpop.f32.mrb[0].mxu0
    %v273 = vadd.f32 0.0, %v272
    %v274 = vpop.f32.mrb[0].mxu0
    %v275 = vadd.f32 0.0, %v274
    %276 = vdwg.mxu0
    %vm277 = vcmask 523264
    %v279 = vsel %vm277, %v106, 0
    %v282 = vsel %vm277, %v107, 0
    %v285 = vsel %vm277, %v108, 0
    %v288 = vsel %vm277, %v109, 0
    %v291 = vsel %vm277, %v110, 0
    %v294 = vsel %vm277, %v111, 0
    %v297 = vsel %vm277, %v112, 0
    %v300 = vsel %vm277, %v113, 0
    %302 = vmatprep.subr.mxu0 %v233
    %303 = vmatpush1.msra.mxu0 %v231
    %304 = vmatprep.subr.mxu0 %v239
    %305 = vmatpush1.msra.mxu0 %v237
    %306 = vmatprep.subr.mxu0 %v245
    %307 = vmatpush1.msra.mxu0 %v243
    %308 = vmatprep.subr.mxu0 %v251
    %309 = vmatpush1.msra.mxu0 %v249
    %310 = vmatprep.subr.mxu0 %v257
    %311 = vmatpush1.msra.mxu0 %v255
    %312 = vmatprep.subr.mxu0 %v263
    %313 = vmatpush1.msra.mxu0 %v261
    %314 = vmatprep.subr.mxu0 %v269
    %315 = vmatpush1.msra.mxu0 %v267
    %316 = vmatprep.subr.mxu0 %v275
    %317 = vmatpush1.msra.mxu0 %v273
    %318 = vmatprep.subr.mxu0 0.0
    %319 = vmatpush1.msra.mxu0 0.0
    %320 = vmatprep.subr.mxu0 0.0
    %321 = vmatpush1.msra.mxu0 0.0
    %322 = vmatprep.subr.mxu0 0.0
    %323 = vmatpush1.msra.mxu0 0.0
    %324 = vmatprep.subr.mxu0 0.0
    %325 = vmatpush1.msra.mxu0 0.0
    %326 = vmatprep.subr.mxu0 0.0
    %327 = vmatpush1.msra.mxu0 0.0
    %328 = vmatprep.subr.mxu0 0.0
    %329 = vmatpush1.msra.mxu0 0.0
    %330 = vmatprep.subr.mxu0 0.0
    %331 = vmatpush1.msra.mxu0 0.0
    %332 = vmatprep.subr.mxu0 0.0
    %333 = vmatpush1.msra.mxu0 0.0
    %334 = vmatprep.subr.mxu0 0.0
    %335 = vmatpush1.msra.mxu0 0.0
    %336 = vmatprep.subr.mxu0 0.0
    %337 = vmatpush1.msra.mxu0 0.0
    %338 = vmatprep.subr.mxu0 0.0
    %339 = vmatpush1.msra.mxu0 0.0
    %340 = vmatprep.subr.mxu0 0.0
    %341 = vmatpush1.msra.mxu0 0.0
    %342 = vmatprep.subr.mxu0 0.0
    %343 = vmatpush1.msra.mxu0 0.0
    %344 = vmatprep.subr.mxu0 0.0
    %345 = vmatpush1.msra.mxu0 0.0
    %346 = vmatprep.subr.mxu0 0.0
    %347 = vmatpush1.msra.mxu0 0.0
    %348 = vmatprep.subr.mxu0 0.0
    %349 = vmatpush1.msra.mxu0 0.0
    %350 = vmatprep.subr.mxu0 0.0
    %351 = vmatpush1.msra.mxu0 0.0
    %352 = vmatprep.subr.mxu0 0.0
    %353 = vmatpush1.msra.mxu0 0.0
    %354 = vmatprep.subr.mxu0 0.0
    %355 = vmatpush1.msra.mxu0 0.0
    %356 = vmatprep.subr.mxu0 0.0
    %357 = vmatpush1.msra.mxu0 0.0
    %358 = vmatprep.subr.mxu0 0.0
    %359 = vmatpush1.msra.mxu0 0.0
    %360 = vmatprep.subr.mxu0 0.0
    %361 = vmatpush1.msra.mxu0 0.0
    %362 = vmatprep.subr.mxu0 0.0
    %363 = vmatpush1.msra.mxu0 0.0
    %364 = vmatprep.subr.mxu0 0.0
    %365 = vmatpush1.msra.mxu0 0.0
    %366 = vmatprep.mubr.f32.mxu0 0.0
    %367 = vmatmul.mubr.f32.gmra.mrb[0].mxu0 %v279
    %v368 = vpop.f32.mrb[0].mxu0
    %v369 = vadd.f32 0.0, %v368
    %v370 = vpop.f32.mrb[0].mxu0
    %v371 = vadd.f32 0.0, %v370
    %372 = vmatprep.mubr.f32.mxu0 0.0
    %373 = vmatmul.mubr.f32.gmra.mrb[0].mxu0 %v282
    %v374 = vpop.f32.mrb[0].mxu0
    %v375 = vadd.f32 0.0, %v374
    %v376 = vpop.f32.mrb[0].mxu0
    %v377 = vadd.f32 0.0, %v376
    %378 = vmatprep.mubr.f32.mxu0 0.0
    %379 = vmatmul.mubr.f32.gmra.mrb[0].mxu0 %v285
    %v380 = vpop.f32.mrb[0].mxu0
    %v381 = vadd.f32 0.0, %v380
    %v382 = vpop.f32.mrb[0].mxu0
    %v383 = vadd.f32 0.0, %v382
    %384 = vmatprep.mubr.f32.mxu0 0.0
    %385 = vmatmul.mubr.f32.gmra.mrb[0].mxu0 %v288
    %v386 = vpop.f32.mrb[0].mxu0
    %v387 = vadd.f32 0.0, %v386
    %v388 = vpop.f32.mrb[0].mxu0
    %v389 = vadd.f32 0.0, %v388
    %390 = vmatprep.mubr.f32.mxu0 0.0
    %391 = vmatmul.mubr.f32.gmra.mrb[0].mxu0 %v291
    %v392 = vpop.f32.mrb[0].mxu0
    %v393 = vadd.f32 0.0, %v392
    %v394 = vpop.f32.mrb[0].mxu0
    %v395 = vadd.f32 0.0, %v394
    %396 = vmatprep.mubr.f32.mxu0 0.0
    %397 = vmatmul.mubr.f32.gmra.mrb[0].mxu0 %v294
    %v398 = vpop.f32.mrb[0].mxu0
    %v399 = vadd.f32 0.0, %v398
    %v400 = vpop.f32.mrb[0].mxu0
    %v401 = vadd.f32 0.0, %v400
    %402 = vmatprep.mubr.f32.mxu0 0.0
    %403 = vmatmul.mubr.f32.gmra.mrb[0].mxu0 %v297
    %v404 = vpop.f32.mrb[0].mxu0
    %v405 = vadd.f32 0.0, %v404
    %v406 = vpop.f32.mrb[0].mxu0
    %v407 = vadd.f32 0.0, %v406
    %408 = vmatprep.mubr.f32.mxu0 0.0
    %409 = vmatmul.mubr.f32.gmra.mrb[0].mxu0 %v300
    %v410 = vpop.f32.mrb[0].mxu0
    %v411 = vadd.f32 0.0, %v410
    %v412 = vpop.f32.mrb[0].mxu0
    %v413 = vadd.f32 0.0, %v412
    %414 = vdwg.mxu0
    %415 = vmatprep.subr.mxu0 %v48
    %416 = vmatpush1.msra.mxu0 %v47
    %417 = vmatprep.subr.mxu0 %v50
    %418 = vmatpush1.msra.mxu0 %v49
    %419 = vmatprep.subr.mxu0 %v52
    %420 = vmatpush1.msra.mxu0 %v51
    %421 = vmatprep.subr.mxu0 %v54
    %422 = vmatpush1.msra.mxu0 %v53
    %423 = vmatprep.subr.mxu0 %v56
    %424 = vmatpush1.msra.mxu0 %v55
    %425 = vmatprep.subr.mxu0 %v58
    %426 = vmatpush1.msra.mxu0 %v57
    %427 = vmatprep.subr.mxu0 %v60
    %428 = vmatpush1.msra.mxu0 %v59
    %429 = vmatprep.subr.mxu0 %v62
    %430 = vmatpush1.msra.mxu0 %v61
    %431 = vmatprep.subr.mxu0 %v64
    %432 = vmatpush1.msra.mxu0 %v63
    %433 = vmatprep.subr.mxu0 %v66
    %434 = vmatpush1.msra.mxu0 %v65
    %435 = vmatprep.subr.mxu0 %v68
    %436 = vmatpush1.msra.mxu0 %v67
    %437 = vmatprep.subr.mxu0 %v70
    %438 = vmatpush1.msra.mxu0 %v69
    %439 = vmatprep.subr.mxu0 0.0
    %440 = vmatpush1.msra.mxu0 0.0
    %441 = vmatprep.subr.mxu0 0.0
    %442 = vmatpush1.msra.mxu0 0.0
    %443 = vmatprep.subr.mxu0 0.0
    %444 = vmatpush1.msra.mxu0 0.0
    %445 = vmatprep.subr.mxu0 0.0
    %446 = vmatpush1.msra.mxu0 0.0
    %447 = vmatprep.subr.mxu0 0.0
    %448 = vmatpush1.msra.mxu0 0.0
    %449 = vmatprep.subr.mxu0 0.0
    %450 = vmatpush1.msra.mxu0 0.0
    %451 = vmatprep.subr.mxu0 0.0
    %452 = vmatpush1.msra.mxu0 0.0
    %453 = vmatprep.subr.mxu0 0.0
    %454 = vmatpush1.msra.mxu0 0.0
    %455 = vmatprep.subr.mxu0 0.0
    %456 = vmatpush1.msra.mxu0 0.0
    %457 = vmatprep.subr.mxu0 0.0
    %458 = vmatpush1.msra.mxu0 0.0
    %459 = vmatprep.subr.mxu0 0.0
    %460 = vmatpush1.msra.mxu0 0.0
    %461 = vmatprep.subr.mxu0 0.0
    %462 = vmatpush1.msra.mxu0 0.0
    %463 = vmatprep.subr.mxu0 0.0
    %464 = vmatpush1.msra.mxu0 0.0
    %465 = vmatprep.subr.mxu0 0.0
    %466 = vmatpush1.msra.mxu0 0.0
    %467 = vmatprep.subr.mxu0 0.0
    %468 = vmatpush1.msra.mxu0 0.0
    %469 = vmatprep.subr.mxu0 0.0
    %470 = vmatpush1.msra.mxu0 0.0
    %471 = vmatprep.subr.mxu0 0.0
    %472 = vmatpush1.msra.mxu0 0.0
    %473 = vmatprep.subr.mxu0 0.0
    %474 = vmatpush1.msra.mxu0 0.0
    %475 = vmatprep.subr.mxu0 0.0
    %476 = vmatpush1.msra.mxu0 0.0
    %477 = vmatprep.subr.mxu0 0.0
    %478 = vmatpush1.msra.mxu0 0.0
    %479 = vmatprep.mubr.f32.mxu0 0.0
    %480 = vmatmul.mubr.f32.gmra.mrb[0].mxu0 %v141
    %v481 = vpop.f32.mrb[0].mxu0
    %v482 = vadd.f32 %v369, %v481
    %v483 = vpop.f32.mrb[0].mxu0
    %v484 = vadd.f32 %v371, %v483
    %485 = vmatprep.mubr.f32.mxu0 0.0
    %486 = vmatmul.mubr.f32.gmra.mrb[0].mxu0 %v144
    %v487 = vpop.f32.mrb[0].mxu0
    %v488 = vadd.f32 %v375, %v487
    %v489 = vpop.f32.mrb[0].mxu0
    %v490 = vadd.f32 %v377, %v489
    %491 = vmatprep.mubr.f32.mxu0 0.0
    %492 = vmatmul.mubr.f32.gmra.mrb[0].mxu0 %v147
    %v493 = vpop.f32.mrb[0].mxu0
    %v494 = vadd.f32 %v381, %v493
    %v495 = vpop.f32.mrb[0].mxu0
    %v496 = vadd.f32 %v383, %v495
    %497 = vmatprep.mubr.f32.mxu0 0.0
    %498 = vmatmul.mubr.f32.gmra.mrb[0].mxu0 %v150
    %v499 = vpop.f32.mrb[0].mxu0
    %v500 = vadd.f32 %v387, %v499
    %v501 = vpop.f32.mrb[0].mxu0
    %v502 = vadd.f32 %v389, %v501
    %503 = vmatprep.mubr.f32.mxu0 0.0
    %504 = vmatmul.mubr.f32.gmra.mrb[0].mxu0 %v153
    %v505 = vpop.f32.mrb[0].mxu0
    %v506 = vadd.f32 %v393, %v505
    %v507 = vpop.f32.mrb[0].mxu0
    %v508 = vadd.f32 %v395, %v507
    %509 = vmatprep.mubr.f32.mxu0 0.0
    %510 = vmatmul.mubr.f32.gmra.mrb[0].mxu0 %v156
    %v511 = vpop.f32.mrb[0].mxu0
    %v512 = vadd.f32 %v399, %v511
    %v513 = vpop.f32.mrb[0].mxu0
    %v514 = vadd.f32 %v401, %v513
    %515 = vmatprep.mubr.f32.mxu0 0.0
    %516 = vmatmul.mubr.f32.gmra.mrb[0].mxu0 %v159
    %v517 = vpop.f32.mrb[0].mxu0
    %v518 = vadd.f32 %v405, %v517
    %v519 = vpop.f32.mrb[0].mxu0
    %v520 = vadd.f32 %v407, %v519
    %521 = vmatprep.mubr.f32.mxu0 0.0
    %522 = vmatmul.mubr.f32.gmra.mrb[0].mxu0 %v162
    %v523 = vpop.f32.mrb[0].mxu0
    %v524 = vadd.f32 %v411, %v523
    %v525 = vpop.f32.mrb[0].mxu0
    %v526 = vadd.f32 %v413, %v525
    %527 = vdwg.mxu0
    %v528 = vadd.s32 %v74, 2
    %v529 = vadd.s32 %v75, 2
    %v530 = vadd.s32 %v76, 2
    %v531 = vadd.s32 %v77, 2
    %v532 = vadd.s32 %v78, 2
    %v533 = vadd.s32 %v79, 2
    %v534 = vadd.s32 %v80, 2
    %v535 = vadd.s32 %v81, 2
    %vm536 = vcmp.eq.s32.totalorder %v72, %v528
    %vm537 = vcmp.eq.s32.totalorder %v72, %v529
    %vm538 = vcmp.eq.s32.totalorder %v72, %v530
    %vm539 = vcmp.eq.s32.totalorder %v72, %v531
    %vm540 = vcmp.eq.s32.totalorder %v72, %v532
    %vm541 = vcmp.eq.s32.totalorder %v72, %v533
    %vm542 = vcmp.eq.s32.totalorder %v72, %v534
    %vm543 = vcmp.eq.s32.totalorder %v72, %v535
    %v544 = vsel %vm536, 1, 0
    %v545 = vsel %vm537, 1, 0
    %v546 = vsel %vm538, 1, 0
    %v547 = vsel %vm539, 1, 0
    %v548 = vsel %vm540, 1, 0
    %v549 = vsel %vm541, 1, 0
    %v550 = vsel %vm542, 1, 0
    %v551 = vsel %vm543, 1, 0
    %v552 = vcvt.s32.f32 %v544
    %v553 = vcvt.s32.f32 %v545
    %v554 = vcvt.s32.f32 %v546
    %v555 = vcvt.s32.f32 %v547
    %v556 = vcvt.s32.f32 %v548
    %v557 = vcvt.s32.f32 %v549
    %v558 = vcvt.s32.f32 %v550
    %v559 = vcvt.s32.f32 %v551
    %s560 = scalar_lea.vmem %s1, 384
    %v561 = vld [vmem:[%s560] sm:$0xff]
    %v562 = vld [vmem:[%s560 + $0x8] sm:$0xff]
    %v563 = vld [vmem:[%s560 + $0x10] sm:$0xff]
    %v564 = vld [vmem:[%s560 + $0x18] sm:$0xff]
    %v565 = vld [vmem:[%s560 + $0x20] sm:$0xff]
    %v566 = vld [vmem:[%s560 + $0x28] sm:$0xff]
    %v567 = vld [vmem:[%s560 + $0x30] sm:$0xff]
    %v568 = vld [vmem:[%s560 + $0x38] sm:$0xff]
    %v569 = vld [vmem:[%s560 + $0x40] sm:$0xff]
    %v570 = vld [vmem:[%s560 + $0x48] sm:$0xff]
    %v571 = vld [vmem:[%s560 + $0x50] sm:$0xff]
    %v572 = vld [vmem:[%s560 + $0x58] sm:$0xff]
    %v573 = vld [vmem:[%s560 + $0x60] sm:$0xff]
    %v574 = vld [vmem:[%s560 + $0x68] sm:$0xff]
    %v575 = vld [vmem:[%s560 + $0x70] sm:$0xff]
    %v576 = vld [vmem:[%s560 + $0x78] sm:$0xff]
    %v577 = vld [vmem:[%s560 + $0x80] sm:$0xff]
    %v578 = vld [vmem:[%s560 + $0x88] sm:$0xff]
    %v579 = vld [vmem:[%s560 + $0x90] sm:$0xff]
    %v580 = vld [vmem:[%s560 + $0x98] sm:$0xff]
    %v581 = vld [vmem:[%s560 + $0xa0] sm:$0xff]
    %v582 = vld [vmem:[%s560 + $0xa8] sm:$0xff]
    %v583 = vld [vmem:[%s560 + $0xb0] sm:$0xff]
    %v584 = vld [vmem:[%s560 + $0xb8] sm:$0xff]
    %585 = vmatprep.subr.mxu0 %v562
    %586 = vmatpush1.msra.mxu0 %v561
    %587 = vmatprep.subr.mxu0 %v564
    %588 = vmatpush1.msra.mxu0 %v563
    %589 = vmatprep.subr.mxu0 %v566
    %590 = vmatpush1.msra.mxu0 %v565
    %591 = vmatprep.subr.mxu0 %v568
    %592 = vmatpush1.msra.mxu0 %v567
    %593 = vmatprep.subr.mxu0 %v570
    %594 = vmatpush1.msra.mxu0 %v569
    %595 = vmatprep.subr.mxu0 %v572
    %596 = vmatpush1.msra.mxu0 %v571
    %597 = vmatprep.subr.mxu0 %v574
    %598 = vmatpush1.msra.mxu0 %v573
    %599 = vmatprep.subr.mxu0 %v576
    %600 = vmatpush1.msra.mxu0 %v575
    %601 = vmatprep.subr.mxu0 %v578
    %602 = vmatpush1.msra.mxu0 %v577
    %603 = vmatprep.subr.mxu0 %v580
    %604 = vmatpush1.msra.mxu0 %v579
    %605 = vmatprep.subr.mxu0 %v582
    %606 = vmatpush1.msra.mxu0 %v581
    %607 = vmatprep.subr.mxu0 %v584
    %608 = vmatpush1.msra.mxu0 %v583
    %609 = vmatprep.subr.mxu0 0.0
    %610 = vmatpush1.msra.mxu0 0.0
    %611 = vmatprep.subr.mxu0 0.0
    %612 = vmatpush1.msra.mxu0 0.0
    %613 = vmatprep.subr.mxu0 0.0
    %614 = vmatpush1.msra.mxu0 0.0
    %615 = vmatprep.subr.mxu0 0.0
    %616 = vmatpush1.msra.mxu0 0.0
    %617 = vmatprep.subr.mxu0 0.0
    %618 = vmatpush1.msra.mxu0 0.0
    %619 = vmatprep.subr.mxu0 0.0
    %620 = vmatpush1.msra.mxu0 0.0
    %621 = vmatprep.subr.mxu0 0.0
    %622 = vmatpush1.msra.mxu0 0.0
    %623 = vmatprep.subr.mxu0 0.0
    %624 = vmatpush1.msra.mxu0 0.0
    %625 = vmatprep.subr.mxu0 0.0
    %626 = vmatpush1.msra.mxu0 0.0
    %627 = vmatprep.subr.mxu0 0.0
    %628 = vmatpush1.msra.mxu0 0.0
    %629 = vmatprep.subr.mxu0 0.0
    %630 = vmatpush1.msra.mxu0 0.0
    %631 = vmatprep.subr.mxu0 0.0
    %632 = vmatpush1.msra.mxu0 0.0
    %633 = vmatprep.subr.mxu0 0.0
    %634 = vmatpush1.msra.mxu0 0.0
    %635 = vmatprep.subr.mxu0 0.0
    %636 = vmatpush1.msra.mxu0 0.0
    %637 = vmatprep.subr.mxu0 0.0
    %638 = vmatpush1.msra.mxu0 0.0
    %639 = vmatprep.subr.mxu0 0.0
    %640 = vmatpush1.msra.mxu0 0.0
    %641 = vmatprep.subr.mxu0 0.0
    %642 = vmatpush1.msra.mxu0 0.0
    %643 = vmatprep.subr.mxu0 0.0
    %644 = vmatpush1.msra.mxu0 0.0
    %645 = vmatprep.subr.mxu0 0.0
    %646 = vmatpush1.msra.mxu0 0.0
    %647 = vmatprep.subr.mxu0 0.0
    %648 = vmatpush1.msra.mxu0 0.0
    %649 = vmatprep.mubr.f32.mxu0 0.0
    %650 = vmatmul.mubr.f32.gmra.mrb[0].mxu0 %v141
    %v651 = vpop.f32.mrb[0].mxu0
    %v652 = vadd.f32 0.0, %v651
    %v653 = vpop.f32.mrb[0].mxu0
    %v654 = vadd.f32 0.0, %v653
    %655 = vmatprep.mubr.f32.mxu0 0.0
    %656 = vmatmul.mubr.f32.gmra.mrb[0].mxu0 %v144
    %v657 = vpop.f32.mrb[0].mxu0
    %v658 = vadd.f32 0.0, %v657
    %v659 = vpop.f32.mrb[0].mxu0
    %v660 = vadd.f32 0.0, %v659
    %661 = vmatprep.mubr.f32.mxu0 0.0
    %662 = vmatmul.mubr.f32.gmra.mrb[0].mxu0 %v147
    %v663 = vpop.f32.mrb[0].mxu0
    %v664 = vadd.f32 0.0, %v663
    %v665 = vpop.f32.mrb[0].mxu0
    %v666 = vadd.f32 0.0, %v665
    %667 = vmatprep.mubr.f32.mxu0 0.0
    %668 = vmatmul.mubr.f32.gmra.mrb[0].mxu0 %v150
    %v669 = vpop.f32.mrb[0].mxu0
    %v670 = vadd.f32 0.0, %v669
    %v671 = vpop.f32.mrb[0].mxu0
    %v672 = vadd.f32 0.0, %v671
    %673 = vmatprep.mubr.f32.mxu0 0.0
    %674 = vmatmul.mubr.f32.gmra.mrb[0].mxu0 %v153
    %v675 = vpop.f32.mrb[0].mxu0
    %v676 = vadd.f32 0.0, %v675
    %v677 = vpop.f32.mrb[0].mxu0
    %v678 = vadd.f32 0.0, %v677
    %679 = vmatprep.mubr.f32.mxu0 0.0
    %680 = vmatmul.mubr.f32.gmra.mrb[0].mxu0 %v156
    %v681 = vpop.f32.mrb[0].mxu0
    %v682 = vadd.f32 0.0, %v681
    %v683 = vpop.f32.mrb[0].mxu0
    %v684 = vadd.f32 0.0, %v683
    %685 = vmatprep.mubr.f32.mxu0 0.0
    %686 = vmatmul.mubr.f32.gmra.mrb[0].mxu0 %v159
    %v687 = vpop.f32.mrb[0].mxu0
    %v688 = vadd.f32 0.0, %v687
    %v689 = vpop.f32.mrb[0].mxu0
    %v690 = vadd.f32 0.0, %v689
    %691 = vmatprep.mubr.f32.mxu0 0.0
    %692 = vmatmul.mubr.f32.gmra.mrb[0].mxu0 %v162
    %v693 = vpop.f32.mrb[0].mxu0
    %v694 = vadd.f32 0.0, %v693
    %v695 = vpop.f32.mrb[0].mxu0
    %v696 = vadd.f32 0.0, %v695
    %697 = vdwg.mxu0
    %v699 = vsel %vm277, %v552, 0
    %v702 = vsel %vm277, %v553, 0
    %v705 = vsel %vm277, %v554, 0
    %v708 = vsel %vm277, %v555, 0
    %v711 = vsel %vm277, %v556, 0
    %v714 = vsel %vm277, %v557, 0
    %v717 = vsel %vm277, %v558, 0
    %v720 = vsel %vm277, %v559, 0
    %722 = vmatprep.subr.mxu0 %v654
    %723 = vmatpush1.msra.mxu0 %v652
    %724 = vmatprep.subr.mxu0 %v660
    %725 = vmatpush1.msra.mxu0 %v658
    %726 = vmatprep.subr.mxu0 %v666
    %727 = vmatpush1.msra.mxu0 %v664
    %728 = vmatprep.subr.mxu0 %v672
    %729 = vmatpush1.msra.mxu0 %v670
    %730 = vmatprep.subr.mxu0 %v678
    %731 = vmatpush1.msra.mxu0 %v676
    %732 = vmatprep.subr.mxu0 %v684
    %733 = vmatpush1.msra.mxu0 %v682
    %734 = vmatprep.subr.mxu0 %v690
    %735 = vmatpush1.msra.mxu0 %v688
    %736 = vmatprep.subr.mxu0 %v696
    %737 = vmatpush1.msra.mxu0 %v694
    %738 = vmatprep.subr.mxu0 0.0
    %739 = vmatpush1.msra.mxu0 0.0
    %740 = vmatprep.subr.mxu0 0.0
    %741 = vmatpush1.msra.mxu0 0.0
    %742 = vmatprep.subr.mxu0 0.0
    %743 = vmatpush1.msra.mxu0 0.0
    %744 = vmatprep.subr.mxu0 0.0
    %745 = vmatpush1.msra.mxu0 0.0
    %746 = vmatprep.subr.mxu0 0.0
    %747 = vmatpush1.msra.mxu0 0.0
    %748 = vmatprep.subr.mxu0 0.0
    %749 = vmatpush1.msra.mxu0 0.0
    %750 = vmatprep.subr.mxu0 0.0
    %751 = vmatpush1.msra.mxu0 0.0
    %752 = vmatprep.subr.mxu0 0.0
    %753 = vmatpush1.msra.mxu0 0.0
    %754 = vmatprep.subr.mxu0 0.0
    %755 = vmatpush1.msra.mxu0 0.0
    %756 = vmatprep.subr.mxu0 0.0
    %757 = vmatpush1.msra.mxu0 0.0
    %758 = vmatprep.subr.mxu0 0.0
    %759 = vmatpush1.msra.mxu0 0.0
    %760 = vmatprep.subr.mxu0 0.0
    %761 = vmatpush1.msra.mxu0 0.0
    %762 = vmatprep.subr.mxu0 0.0
    %763 = vmatpush1.msra.mxu0 0.0
    %764 = vmatprep.subr.mxu0 0.0
    %765 = vmatpush1.msra.mxu0 0.0
    %766 = vmatprep.subr.mxu0 0.0
    %767 = vmatpush1.msra.mxu0 0.0
    %768 = vmatprep.subr.mxu0 0.0
    %769 = vmatpush1.msra.mxu0 0.0
    %770 = vmatprep.subr.mxu0 0.0
    %771 = vmatpush1.msra.mxu0 0.0
    %772 = vmatprep.subr.mxu0 0.0
    %773 = vmatpush1.msra.mxu0 0.0
    %774 = vmatprep.subr.mxu0 0.0
    %775 = vmatpush1.msra.mxu0 0.0
    %776 = vmatprep.subr.mxu0 0.0
    %777 = vmatpush1.msra.mxu0 0.0
    %778 = vmatprep.subr.mxu0 0.0
    %779 = vmatpush1.msra.mxu0 0.0
    %780 = vmatprep.subr.mxu0 0.0
    %781 = vmatpush1.msra.mxu0 0.0
    %782 = vmatprep.subr.mxu0 0.0
    %783 = vmatpush1.msra.mxu0 0.0
    %784 = vmatprep.subr.mxu0 0.0
    %785 = vmatpush1.msra.mxu0 0.0
    %786 = vmatprep.mubr.f32.mxu0 0.0
    %787 = vmatmul.mubr.f32.gmra.mrb[0].mxu0 %v699
    %v788 = vpop.f32.mrb[0].mxu0
    %v789 = vadd.f32 0.0, %v788
    %v790 = vpop.f32.mrb[0].mxu0
    %v791 = vadd.f32 0.0, %v790
    %792 = vmatprep.mubr.f32.mxu0 0.0
    %793 = vmatmul.mubr.f32.gmra.mrb[0].mxu0 %v702
    %v794 = vpop.f32.mrb[0].mxu0
    %v795 = vadd.f32 0.0, %v794
    %v796 = vpop.f32.mrb[0].mxu0
    %v797 = vadd.f32 0.0, %v796
    %798 = vmatprep.mubr.f32.mxu0 0.0
    %799 = vmatmul.mubr.f32.gmra.mrb[0].mxu0 %v705
    %v800 = vpop.f32.mrb[0].mxu0
    %v801 = vadd.f32 0.0, %v800
    %v802 = vpop.f32.mrb[0].mxu0
    %v803 = vadd.f32 0.0, %v802
    %804 = vmatprep.mubr.f32.mxu0 0.0
    %805 = vmatmul.mubr.f32.gmra.mrb[0].mxu0 %v708
    %v806 = vpop.f32.mrb[0].mxu0
    %v807 = vadd.f32 0.0, %v806
    %v808 = vpop.f32.mrb[0].mxu0
    %v809 = vadd.f32 0.0, %v808
    %810 = vmatprep.mubr.f32.mxu0 0.0
    %811 = vmatmul.mubr.f32.gmra.mrb[0].mxu0 %v711
    %v812 = vpop.f32.mrb[0].mxu0
    %v813 = vadd.f32 0.0, %v812
    %v814 = vpop.f32.mrb[0].mxu0
    %v815 = vadd.f32 0.0, %v814
    %816 = vmatprep.mubr.f32.mxu0 0.0
    %817 = vmatmul.mubr.f32.gmra.mrb[0].mxu0 %v714
    %v818 = vpop.f32.mrb[0].mxu0
    %v819 = vadd.f32 0.0, %v818
    %v820 = vpop.f32.mrb[0].mxu0
    %v821 = vadd.f32 0.0, %v820
    %822 = vmatprep.mubr.f32.mxu0 0.0
    %823 = vmatmul.mubr.f32.gmra.mrb[0].mxu0 %v717
    %v824 = vpop.f32.mrb[0].mxu0
    %v825 = vadd.f32 0.0, %v824
    %v826 = vpop.f32.mrb[0].mxu0
    %v827 = vadd.f32 0.0, %v826
    %828 = vmatprep.mubr.f32.mxu0 0.0
    %829 = vmatmul.mubr.f32.gmra.mrb[0].mxu0 %v720
    %v830 = vpop.f32.mrb[0].mxu0
    %v831 = vadd.f32 0.0, %v830
    %v832 = vpop.f32.mrb[0].mxu0
    %v833 = vadd.f32 0.0, %v832
    %834 = vdwg.mxu0
    %v835 = vadd.f32 %v482, %v789
    %v836 = vadd.f32 %v484, %v791
    %v837 = vadd.f32 %v488, %v795
    %v838 = vadd.f32 %v490, %v797
    %v839 = vadd.f32 %v494, %v801
    %v840 = vadd.f32 %v496, %v803
    %v841 = vadd.f32 %v500, %v807
    %v842 = vadd.f32 %v502, %v809
    %v843 = vadd.f32 %v506, %v813
    %v844 = vadd.f32 %v508, %v815
    %v845 = vadd.f32 %v512, %v819
    %v846 = vadd.f32 %v514, %v821
    %v847 = vadd.f32 %v518, %v825
    %v848 = vadd.f32 %v520, %v827
    %v849 = vadd.f32 %v524, %v831
    %v850 = vadd.f32 %v526, %v833
    %v851 = vadd.s32 %v74, 3
    %v852 = vadd.s32 %v75, 3
    %v853 = vadd.s32 %v76, 3
    %v854 = vadd.s32 %v77, 3
    %v855 = vadd.s32 %v78, 3
    %v856 = vadd.s32 %v79, 3
    %v857 = vadd.s32 %v80, 3
    %v858 = vadd.s32 %v81, 3
    %vm859 = vcmp.eq.s32.totalorder %v72, %v851
    %vm860 = vcmp.eq.s32.totalorder %v72, %v852
    %vm861 = vcmp.eq.s32.totalorder %v72, %v853
    %vm862 = vcmp.eq.s32.totalorder %v72, %v854
    %vm863 = vcmp.eq.s32.totalorder %v72, %v855
    %vm864 = vcmp.eq.s32.totalorder %v72, %v856
    %vm865 = vcmp.eq.s32.totalorder %v72, %v857
    %vm866 = vcmp.eq.s32.totalorder %v72, %v858
    %v867 = vsel %vm859, 1, 0
    %v868 = vsel %vm860, 1, 0
    %v869 = vsel %vm861, 1, 0
    %v870 = vsel %vm862, 1, 0
    %v871 = vsel %vm863, 1, 0
    %v872 = vsel %vm864, 1, 0
    %v873 = vsel %vm865, 1, 0
    %v874 = vsel %vm866, 1, 0
    %v875 = vcvt.s32.f32 %v867
    %v876 = vcvt.s32.f32 %v868
    %v877 = vcvt.s32.f32 %v869
    %v878 = vcvt.s32.f32 %v870
    %v879 = vcvt.s32.f32 %v871
    %v880 = vcvt.s32.f32 %v872
    %v881 = vcvt.s32.f32 %v873
    %v882 = vcvt.s32.f32 %v874
    %s883 = scalar_lea.vmem %s1, 576
    %v884 = vld [vmem:[%s883] sm:$0xff]
    %v885 = vld [vmem:[%s883 + $0x8] sm:$0xff]
    %v886 = vld [vmem:[%s883 + $0x10] sm:$0xff]
    %v887 = vld [vmem:[%s883 + $0x18] sm:$0xff]
    %v888 = vld [vmem:[%s883 + $0x20] sm:$0xff]
    %v889 = vld [vmem:[%s883 + $0x28] sm:$0xff]
    %v890 = vld [vmem:[%s883 + $0x30] sm:$0xff]
    %v891 = vld [vmem:[%s883 + $0x38] sm:$0xff]
    %v892 = vld [vmem:[%s883 + $0x40] sm:$0xff]
    %v893 = vld [vmem:[%s883 + $0x48] sm:$0xff]
    %v894 = vld [vmem:[%s883 + $0x50] sm:$0xff]
    %v895 = vld [vmem:[%s883 + $0x58] sm:$0xff]
    %v896 = vld [vmem:[%s883 + $0x60] sm:$0xff]
    %v897 = vld [vmem:[%s883 + $0x68] sm:$0xff]
    %v898 = vld [vmem:[%s883 + $0x70] sm:$0xff]
    %v899 = vld [vmem:[%s883 + $0x78] sm:$0xff]
    %v900 = vld [vmem:[%s883 + $0x80] sm:$0xff]
    %v901 = vld [vmem:[%s883 + $0x88] sm:$0xff]
    %v902 = vld [vmem:[%s883 + $0x90] sm:$0xff]
    %v903 = vld [vmem:[%s883 + $0x98] sm:$0xff]
    %v904 = vld [vmem:[%s883 + $0xa0] sm:$0xff]
    %v905 = vld [vmem:[%s883 + $0xa8] sm:$0xff]
    %v906 = vld [vmem:[%s883 + $0xb0] sm:$0xff]
    %v907 = vld [vmem:[%s883 + $0xb8] sm:$0xff]
    %908 = vmatprep.subr.mxu0 %v885
    %909 = vmatpush1.msra.mxu0 %v884
    %910 = vmatprep.subr.mxu0 %v887
    %911 = vmatpush1.msra.mxu0 %v886
    %912 = vmatprep.subr.mxu0 %v889
    %913 = vmatpush1.msra.mxu0 %v888
    %914 = vmatprep.subr.mxu0 %v891
    %915 = vmatpush1.msra.mxu0 %v890
    %916 = vmatprep.subr.mxu0 %v893
    %917 = vmatpush1.msra.mxu0 %v892
    %918 = vmatprep.subr.mxu0 %v895
    %919 = vmatpush1.msra.mxu0 %v894
    %920 = vmatprep.subr.mxu0 %v897
    %921 = vmatpush1.msra.mxu0 %v896
    %922 = vmatprep.subr.mxu0 %v899
    %923 = vmatpush1.msra.mxu0 %v898
    %924 = vmatprep.subr.mxu0 %v901
    %925 = vmatpush1.msra.mxu0 %v900
    %926 = vmatprep.subr.mxu0 %v903
    %927 = vmatpush1.msra.mxu0 %v902
    %928 = vmatprep.subr.mxu0 %v905
    %929 = vmatpush1.msra.mxu0 %v904
    %930 = vmatprep.subr.mxu0 %v907
    %931 = vmatpush1.msra.mxu0 %v906
    %932 = vmatprep.subr.mxu0 0.0
    %933 = vmatpush1.msra.mxu0 0.0
    %934 = vmatprep.subr.mxu0 0.0
    %935 = vmatpush1.msra.mxu0 0.0
    %936 = vmatprep.subr.mxu0 0.0
    %937 = vmatpush1.msra.mxu0 0.0
    %938 = vmatprep.subr.mxu0 0.0
    %939 = vmatpush1.msra.mxu0 0.0
    %940 = vmatprep.subr.mxu0 0.0
    %941 = vmatpush1.msra.mxu0 0.0
    %942 = vmatprep.subr.mxu0 0.0
    %943 = vmatpush1.msra.mxu0 0.0
    %944 = vmatprep.subr.mxu0 0.0
    %945 = vmatpush1.msra.mxu0 0.0
    %946 = vmatprep.subr.mxu0 0.0
    %947 = vmatpush1.msra.mxu0 0.0
    %948 = vmatprep.subr.mxu0 0.0
    %949 = vmatpush1.msra.mxu0 0.0
    %950 = vmatprep.subr.mxu0 0.0
    %951 = vmatpush1.msra.mxu0 0.0
    %952 = vmatprep.subr.mxu0 0.0
    %953 = vmatpush1.msra.mxu0 0.0
    %954 = vmatprep.subr.mxu0 0.0
    %955 = vmatpush1.msra.mxu0 0.0
    %956 = vmatprep.subr.mxu0 0.0
    %957 = vmatpush1.msra.mxu0 0.0
    %958 = vmatprep.subr.mxu0 0.0
    %959 = vmatpush1.msra.mxu0 0.0
    %960 = vmatprep.subr.mxu0 0.0
    %961 = vmatpush1.msra.mxu0 0.0
    %962 = vmatprep.subr.mxu0 0.0
    %963 = vmatpush1.msra.mxu0 0.0
    %964 = vmatprep.subr.mxu0 0.0
    %965 = vmatpush1.msra.mxu0 0.0
    %966 = vmatprep.subr.mxu0 0.0
    %967 = vmatpush1.msra.mxu0 0.0
    %968 = vmatprep.subr.mxu0 0.0
    %969 = vmatpush1.msra.mxu0 0.0
    %970 = vmatprep.subr.mxu0 0.0
    %971 = vmatpush1.msra.mxu0 0.0
    %972 = vmatprep.mubr.f32.mxu0 0.0
    %973 = vmatmul.mubr.f32.gmra.mrb[0].mxu0 %v141
    %v974 = vpop.f32.mrb[0].mxu0
    %v975 = vadd.f32 0.0, %v974
    %v976 = vpop.f32.mrb[0].mxu0
    %v977 = vadd.f32 0.0, %v976
    %978 = vmatprep.mubr.f32.mxu0 0.0
    %979 = vmatmul.mubr.f32.gmra.mrb[0].mxu0 %v144
    %v980 = vpop.f32.mrb[0].mxu0
    %v981 = vadd.f32 0.0, %v980
    %v982 = vpop.f32.mrb[0].mxu0
    %v983 = vadd.f32 0.0, %v982
    %984 = vmatprep.mubr.f32.mxu0 0.0
    %985 = vmatmul.mubr.f32.gmra.mrb[0].mxu0 %v147
    %v986 = vpop.f32.mrb[0].mxu0
    %v987 = vadd.f32 0.0, %v986
    %v988 = vpop.f32.mrb[0].mxu0
    %v989 = vadd.f32 0.0, %v988
    %990 = vmatprep.mubr.f32.mxu0 0.0
    %991 = vmatmul.mubr.f32.gmra.mrb[0].mxu0 %v150
    %v992 = vpop.f32.mrb[0].mxu0
    %v993 = vadd.f32 0.0, %v992
    %v994 = vpop.f32.mrb[0].mxu0
    %v995 = vadd.f32 0.0, %v994
    %996 = vmatprep.mubr.f32.mxu0 0.0
    %997 = vmatmul.mubr.f32.gmra.mrb[0].mxu0 %v153
    %v998 = vpop.f32.mrb[0].mxu0
    %v999 = vadd.f32 0.0, %v998
    %v1000 = vpop.f32.mrb[0].mxu0
    %v1001 = vadd.f32 0.0, %v1000
    %1002 = vmatprep.mubr.f32.mxu0 0.0
    %1003 = vmatmul.mubr.f32.gmra.mrb[0].mxu0 %v156
    %v1004 = vpop.f32.mrb[0].mxu0
    %v1005 = vadd.f32 0.0, %v1004
    %v1006 = vpop.f32.mrb[0].mxu0
    %v1007 = vadd.f32 0.0, %v1006
    %1008 = vmatprep.mubr.f32.mxu0 0.0
    %1009 = vmatmul.mubr.f32.gmra.mrb[0].mxu0 %v159
    %v1010 = vpop.f32.mrb[0].mxu0
    %v1011 = vadd.f32 0.0, %v1010
    %v1012 = vpop.f32.mrb[0].mxu0
    %v1013 = vadd.f32 0.0, %v1012
    %1014 = vmatprep.mubr.f32.mxu0 0.0
    %1015 = vmatmul.mubr.f32.gmra.mrb[0].mxu0 %v162
    %v1016 = vpop.f32.mrb[0].mxu0
    %v1017 = vadd.f32 0.0, %v1016
    %v1018 = vpop.f32.mrb[0].mxu0
    %v1019 = vadd.f32 0.0, %v1018
    %1020 = vdwg.mxu0
    %v1022 = vsel %vm277, %v875, 0
    %v1025 = vsel %vm277, %v876, 0
    %v1028 = vsel %vm277, %v877, 0
    %v1031 = vsel %vm277, %v878, 0
    %v1034 = vsel %vm277, %v879, 0
    %v1037 = vsel %vm277, %v880, 0
    %v1040 = vsel %vm277, %v881, 0
    %v1043 = vsel %vm277, %v882, 0
    %1045 = vmatprep.subr.mxu0 %v977
    %1046 = vmatpush1.msra.mxu0 %v975
    %1047 = vmatprep.subr.mxu0 %v983
    %1048 = vmatpush1.msra.mxu0 %v981
    %1049 = vmatprep.subr.mxu0 %v989
    %1050 = vmatpush1.msra.mxu0 %v987
    %1051 = vmatprep.subr.mxu0 %v995
    %1052 = vmatpush1.msra.mxu0 %v993
    %1053 = vmatprep.subr.mxu0 %v1001
    %1054 = vmatpush1.msra.mxu0 %v999
    %1055 = vmatprep.subr.mxu0 %v1007
    %1056 = vmatpush1.msra.mxu0 %v1005
    %1057 = vmatprep.subr.mxu0 %v1013
    %1058 = vmatpush1.msra.mxu0 %v1011
    %1059 = vmatprep.subr.mxu0 %v1019
    %1060 = vmatpush1.msra.mxu0 %v1017
    %1061 = vmatprep.subr.mxu0 0.0
    %1062 = vmatpush1.msra.mxu0 0.0
    %1063 = vmatprep.subr.mxu0 0.0
    %1064 = vmatpush1.msra.mxu0 0.0
    %1065 = vmatprep.subr.mxu0 0.0
    %1066 = vmatpush1.msra.mxu0 0.0
    %1067 = vmatprep.subr.mxu0 0.0
    %1068 = vmatpush1.msra.mxu0 0.0
    %1069 = vmatprep.subr.mxu0 0.0
    %1070 = vmatpush1.msra.mxu0 0.0
    %1071 = vmatprep.subr.mxu0 0.0
    %1072 = vmatpush1.msra.mxu0 0.0
    %1073 = vmatprep.subr.mxu0 0.0
    %1074 = vmatpush1.msra.mxu0 0.0
    %1075 = vmatprep.subr.mxu0 0.0
    %1076 = vmatpush1.msra.mxu0 0.0
    %1077 = vmatprep.subr.mxu0 0.0
    %1078 = vmatpush1.msra.mxu0 0.0
    %1079 = vmatprep.subr.mxu0 0.0
    %1080 = vmatpush1.msra.mxu0 0.0
    %1081 = vmatprep.subr.mxu0 0.0
    %1082 = vmatpush1.msra.mxu0 0.0
    %1083 = vmatprep.subr.mxu0 0.0
    %1084 = vmatpush1.msra.mxu0 0.0
    %1085 = vmatprep.subr.mxu0 0.0
    %1086 = vmatpush1.msra.mxu0 0.0
    %1087 = vmatprep.subr.mxu0 0.0
    %1088 = vmatpush1.msra.mxu0 0.0
    %1089 = vmatprep.subr.mxu0 0.0
    %1090 = vmatpush1.msra.mxu0 0.0
    %1091 = vmatprep.subr.mxu0 0.0
    %1092 = vmatpush1.msra.mxu0 0.0
    %1093 = vmatprep.subr.mxu0 0.0
    %1094 = vmatpush1.msra.mxu0 0.0
    %1095 = vmatprep.subr.mxu0 0.0
    %1096 = vmatpush1.msra.mxu0 0.0
    %1097 = vmatprep.subr.mxu0 0.0
    %1098 = vmatpush1.msra.mxu0 0.0
    %1099 = vmatprep.subr.mxu0 0.0
    %1100 = vmatpush1.msra.mxu0 0.0
    %1101 = vmatprep.subr.mxu0 0.0
    %1102 = vmatpush1.msra.mxu0 0.0
    %1103 = vmatprep.subr.mxu0 0.0
    %1104 = vmatpush1.msra.mxu0 0.0
    %1105 = vmatprep.subr.mxu0 0.0
    %1106 = vmatpush1.msra.mxu0 0.0
    %1107 = vmatprep.subr.mxu0 0.0
    %1108 = vmatpush1.msra.mxu0 0.0
    %1109 = vmatprep.mubr.f32.mxu0 0.0
    %1110 = vmatmul.mubr.f32.gmra.mrb[0].mxu0 %v1022
    %v1111 = vpop.f32.mrb[0].mxu0
    %v1112 = vadd.f32 0.0, %v1111
    %v1113 = vpop.f32.mrb[0].mxu0
    %v1114 = vadd.f32 0.0, %v1113
    %1115 = vmatprep.mubr.f32.mxu0 0.0
    %1116 = vmatmul.mubr.f32.gmra.mrb[0].mxu0 %v1025
    %v1117 = vpop.f32.mrb[0].mxu0
    %v1118 = vadd.f32 0.0, %v1117
    %v1119 = vpop.f32.mrb[0].mxu0
    %v1120 = vadd.f32 0.0, %v1119
    %1121 = vmatprep.mubr.f32.mxu0 0.0
    %1122 = vmatmul.mubr.f32.gmra.mrb[0].mxu0 %v1028
    %v1123 = vpop.f32.mrb[0].mxu0
    %v1124 = vadd.f32 0.0, %v1123
    %v1125 = vpop.f32.mrb[0].mxu0
    %v1126 = vadd.f32 0.0, %v1125
    %1127 = vmatprep.mubr.f32.mxu0 0.0
    %1128 = vmatmul.mubr.f32.gmra.mrb[0].mxu0 %v1031
    %v1129 = vpop.f32.mrb[0].mxu0
    %v1130 = vadd.f32 0.0, %v1129
    %v1131 = vpop.f32.mrb[0].mxu0
    %v1132 = vadd.f32 0.0, %v1131
    %1133 = vmatprep.mubr.f32.mxu0 0.0
    %1134 = vmatmul.mubr.f32.gmra.mrb[0].mxu0 %v1034
    %v1135 = vpop.f32.mrb[0].mxu0
    %v1136 = vadd.f32 0.0, %v1135
    %v1137 = vpop.f32.mrb[0].mxu0
    %v1138 = vadd.f32 0.0, %v1137
    %1139 = vmatprep.mubr.f32.mxu0 0.0
    %1140 = vmatmul.mubr.f32.gmra.mrb[0].mxu0 %v1037
    %v1141 = vpop.f32.mrb[0].mxu0
    %v1142 = vadd.f32 0.0, %v1141
    %v1143 = vpop.f32.mrb[0].mxu0
    %v1144 = vadd.f32 0.0, %v1143
    %1145 = vmatprep.mubr.f32.mxu0 0.0
    %1146 = vmatmul.mubr.f32.gmra.mrb[0].mxu0 %v1040
    %v1147 = vpop.f32.mrb[0].mxu0
    %v1148 = vadd.f32 0.0, %v1147
    %v1149 = vpop.f32.mrb[0].mxu0
    %v1150 = vadd.f32 0.0, %v1149
    %1151 = vmatprep.mubr.f32.mxu0 0.0
    %1152 = vmatmul.mubr.f32.gmra.mrb[0].mxu0 %v1043
    %v1153 = vpop.f32.mrb[0].mxu0
    %v1154 = vadd.f32 0.0, %v1153
    %v1155 = vpop.f32.mrb[0].mxu0
    %v1156 = vadd.f32 0.0, %v1155
    %1157 = vdwg.mxu0
    %v1158 = vadd.f32 %v835, %v1112
    %v1159 = vadd.f32 %v836, %v1114
    %v1160 = vadd.f32 %v837, %v1118
    %v1161 = vadd.f32 %v838, %v1120
    %v1162 = vadd.f32 %v839, %v1124
    %v1163 = vadd.f32 %v840, %v1126
    %v1164 = vadd.f32 %v841, %v1130
    %v1165 = vadd.f32 %v842, %v1132
    %v1166 = vadd.f32 %v843, %v1136
    %v1167 = vadd.f32 %v844, %v1138
    %v1168 = vadd.f32 %v845, %v1142
    %v1169 = vadd.f32 %v846, %v1144
    %v1170 = vadd.f32 %v847, %v1148
    %v1171 = vadd.f32 %v848, %v1150
    %v1172 = vadd.f32 %v849, %v1154
    %v1173 = vadd.f32 %v850, %v1156
    %v1174 = vadd.s32 %v74, 4
    %v1175 = vadd.s32 %v75, 4
    %v1176 = vadd.s32 %v76, 4
    %v1177 = vadd.s32 %v77, 4
    %v1178 = vadd.s32 %v78, 4
    %v1179 = vadd.s32 %v79, 4
    %v1180 = vadd.s32 %v80, 4
    %v1181 = vadd.s32 %v81, 4
    %vm1182 = vcmp.eq.s32.totalorder %v72, %v1174
    %vm1183 = vcmp.eq.s32.totalorder %v72, %v1175
    %vm1184 = vcmp.eq.s32.totalorder %v72, %v1176
    %vm1185 = vcmp.eq.s32.totalorder %v72, %v1177
    %vm1186 = vcmp.eq.s32.totalorder %v72, %v1178
    %vm1187 = vcmp.eq.s32.totalorder %v72, %v1179
    %vm1188 = vcmp.eq.s32.totalorder %v72, %v1180
    %vm1189 = vcmp.eq.s32.totalorder %v72, %v1181
    %v1190 = vsel %vm1182, 1, 0
    %v1191 = vsel %vm1183, 1, 0
    %v1192 = vsel %vm1184, 1, 0
    %v1193 = vsel %vm1185, 1, 0
    %v1194 = vsel %vm1186, 1, 0
    %v1195 = vsel %vm1187, 1, 0
    %v1196 = vsel %vm1188, 1, 0
    %v1197 = vsel %vm1189, 1, 0
    %v1198 = vcvt.s32.f32 %v1190
    %v1199 = vcvt.s32.f32 %v1191
    %v1200 = vcvt.s32.f32 %v1192
    %v1201 = vcvt.s32.f32 %v1193
    %v1202 = vcvt.s32.f32 %v1194
    %v1203 = vcvt.s32.f32 %v1195
    %v1204 = vcvt.s32.f32 %v1196
    %v1205 = vcvt.s32.f32 %v1197
    %s1206 = scalar_lea.vmem %s1, 768
    %v1207 = vld [vmem:[%s1206] sm:$0xff]
    %v1208 = vld [vmem:[%s1206 + $0x8] sm:$0xff]
    %v1209 = vld [vmem:[%s1206 + $0x10] sm:$0xff]
    %v1210 = vld [vmem:[%s1206 + $0x18] sm:$0xff]
    %v1211 = vld [vmem:[%s1206 + $0x20] sm:$0xff]
    %v1212 = vld [vmem:[%s1206 + $0x28] sm:$0xff]
    %v1213 = vld [vmem:[%s1206 + $0x30] sm:$0xff]
    %v1214 = vld [vmem:[%s1206 + $0x38] sm:$0xff]
    %v1215 = vld [vmem:[%s1206 + $0x40] sm:$0xff]
    %v1216 = vld [vmem:[%s1206 + $0x48] sm:$0xff]
    %v1217 = vld [vmem:[%s1206 + $0x50] sm:$0xff]
    %v1218 = vld [vmem:[%s1206 + $0x58] sm:$0xff]
    %v1219 = vld [vmem:[%s1206 + $0x60] sm:$0xff]
    %v1220 = vld [vmem:[%s1206 + $0x68] sm:$0xff]
    %v1221 = vld [vmem:[%s1206 + $0x70] sm:$0xff]
    %v1222 = vld [vmem:[%s1206 + $0x78] sm:$0xff]
    %v1223 = vld [vmem:[%s1206 + $0x80] sm:$0xff]
    %v1224 = vld [vmem:[%s1206 + $0x88] sm:$0xff]
    %v1225 = vld [vmem:[%s1206 + $0x90] sm:$0xff]
    %v1226 = vld [vmem:[%s1206 + $0x98] sm:$0xff]
    %v1227 = vld [vmem:[%s1206 + $0xa0] sm:$0xff]
    %v1228 = vld [vmem:[%s1206 + $0xa8] sm:$0xff]
    %v1229 = vld [vmem:[%s1206 + $0xb0] sm:$0xff]
    %v1230 = vld [vmem:[%s1206 + $0xb8] sm:$0xff]
    %1231 = vmatprep.subr.mxu0 %v1208
    %1232 = vmatpush1.msra.mxu0 %v1207
    %1233 = vmatprep.subr.mxu0 %v1210
    %1234 = vmatpush1.msra.mxu0 %v1209
    %1235 = vmatprep.subr.mxu0 %v1212
    %1236 = vmatpush1.msra.mxu0 %v1211
    %1237 = vmatprep.subr.mxu0 %v1214
    %1238 = vmatpush1.msra.mxu0 %v1213
    %1239 = vmatprep.subr.mxu0 %v1216
    %1240 = vmatpush1.msra.mxu0 %v1215
    %1241 = vmatprep.subr.mxu0 %v1218
    %1242 = vmatpush1.msra.mxu0 %v1217
    %1243 = vmatprep.subr.mxu0 %v1220
    %1244 = vmatpush1.msra.mxu0 %v1219
    %1245 = vmatprep.subr.mxu0 %v1222
    %1246 = vmatpush1.msra.mxu0 %v1221
    %1247 = vmatprep.subr.mxu0 %v1224
    %1248 = vmatpush1.msra.mxu0 %v1223
    %1249 = vmatprep.subr.mxu0 %v1226
    %1250 = vmatpush1.msra.mxu0 %v1225
    %1251 = vmatprep.subr.mxu0 %v1228
    %1252 = vmatpush1.msra.mxu0 %v1227
    %1253 = vmatprep.subr.mxu0 %v1230
    %1254 = vmatpush1.msra.mxu0 %v1229
    %1255 = vmatprep.subr.mxu0 0.0
    %1256 = vmatpush1.msra.mxu0 0.0
    %1257 = vmatprep.subr.mxu0 0.0
    %1258 = vmatpush1.msra.mxu0 0.0
    %1259 = vmatprep.subr.mxu0 0.0
    %1260 = vmatpush1.msra.mxu0 0.0
    %1261 = vmatprep.subr.mxu0 0.0
    %1262 = vmatpush1.msra.mxu0 0.0
    %1263 = vmatprep.subr.mxu0 0.0
    %1264 = vmatpush1.msra.mxu0 0.0
    %1265 = vmatprep.subr.mxu0 0.0
    %1266 = vmatpush1.msra.mxu0 0.0
    %1267 = vmatprep.subr.mxu0 0.0
    %1268 = vmatpush1.msra.mxu0 0.0
    %1269 = vmatprep.subr.mxu0 0.0
    %1270 = vmatpush1.msra.mxu0 0.0
    %1271 = vmatprep.subr.mxu0 0.0
    %1272 = vmatpush1.msra.mxu0 0.0
    %1273 = vmatprep.subr.mxu0 0.0
    %1274 = vmatpush1.msra.mxu0 0.0
    %1275 = vmatprep.subr.mxu0 0.0
    %1276 = vmatpush1.msra.mxu0 0.0
    %1277 = vmatprep.subr.mxu0 0.0
    %1278 = vmatpush1.msra.mxu0 0.0
    %1279 = vmatprep.subr.mxu0 0.0
    %1280 = vmatpush1.msra.mxu0 0.0
    %1281 = vmatprep.subr.mxu0 0.0
    %1282 = vmatpush1.msra.mxu0 0.0
    %1283 = vmatprep.subr.mxu0 0.0
    %1284 = vmatpush1.msra.mxu0 0.0
    %1285 = vmatprep.subr.mxu0 0.0
    %1286 = vmatpush1.msra.mxu0 0.0
    %1287 = vmatprep.subr.mxu0 0.0
    %1288 = vmatpush1.msra.mxu0 0.0
    %1289 = vmatprep.subr.mxu0 0.0
    %1290 = vmatpush1.msra.mxu0 0.0
    %1291 = vmatprep.subr.mxu0 0.0
    %1292 = vmatpush1.msra.mxu0 0.0
    %1293 = vmatprep.subr.mxu0 0.0
    %1294 = vmatpush1.msra.mxu0 0.0
    %1295 = vmatprep.mubr.f32.mxu0 0.0
    %1296 = vmatmul.mubr.f32.gmra.mrb[0].mxu0 %v141
    %v1297 = vpop.f32.mrb[0].mxu0
    %v1298 = vadd.f32 0.0, %v1297
    %v1299 = vpop.f32.mrb[0].mxu0
    %v1300 = vadd.f32 0.0, %v1299
    %1301 = vmatprep.mubr.f32.mxu0 0.0
    %1302 = vmatmul.mubr.f32.gmra.mrb[0].mxu0 %v144
    %v1303 = vpop.f32.mrb[0].mxu0
    %v1304 = vadd.f32 0.0, %v1303
    %v1305 = vpop.f32.mrb[0].mxu0
    %v1306 = vadd.f32 0.0, %v1305
    %1307 = vmatprep.mubr.f32.mxu0 0.0
    %1308 = vmatmul.mubr.f32.gmra.mrb[0].mxu0 %v147
    %v1309 = vpop.f32.mrb[0].mxu0
    %v1310 = vadd.f32 0.0, %v1309
    %v1311 = vpop.f32.mrb[0].mxu0
    %v1312 = vadd.f32 0.0, %v1311
    %1313 = vmatprep.mubr.f32.mxu0 0.0
    %1314 = vmatmul.mubr.f32.gmra.mrb[0].mxu0 %v150
    %v1315 = vpop.f32.mrb[0].mxu0
    %v1316 = vadd.f32 0.0, %v1315
    %v1317 = vpop.f32.mrb[0].mxu0
    %v1318 = vadd.f32 0.0, %v1317
    %1319 = vmatprep.mubr.f32.mxu0 0.0
    %1320 = vmatmul.mubr.f32.gmra.mrb[0].mxu0 %v153
    %v1321 = vpop.f32.mrb[0].mxu0
    %v1322 = vadd.f32 0.0, %v1321
    %v1323 = vpop.f32.mrb[0].mxu0
    %v1324 = vadd.f32 0.0, %v1323
    %1325 = vmatprep.mubr.f32.mxu0 0.0
    %1326 = vmatmul.mubr.f32.gmra.mrb[0].mxu0 %v156
    %v1327 = vpop.f32.mrb[0].mxu0
    %v1328 = vadd.f32 0.0, %v1327
    %v1329 = vpop.f32.mrb[0].mxu0
    %v1330 = vadd.f32 0.0, %v1329
    %1331 = vmatprep.mubr.f32.mxu0 0.0
    %1332 = vmatmul.mubr.f32.gmra.mrb[0].mxu0 %v159
    %v1333 = vpop.f32.mrb[0].mxu0
    %v1334 = vadd.f32 0.0, %v1333
    %v1335 = vpop.f32.mrb[0].mxu0
    %v1336 = vadd.f32 0.0, %v1335
    %1337 = vmatprep.mubr.f32.mxu0 0.0
    %1338 = vmatmul.mubr.f32.gmra.mrb[0].mxu0 %v162
    %v1339 = vpop.f32.mrb[0].mxu0
    %v1340 = vadd.f32 0.0, %v1339
    %v1341 = vpop.f32.mrb[0].mxu0
    %v1342 = vadd.f32 0.0, %v1341
    %1343 = vdwg.mxu0
    %v1345 = vsel %vm277, %v1198, 0
    %v1348 = vsel %vm277, %v1199, 0
    %v1351 = vsel %vm277, %v1200, 0
    %v1354 = vsel %vm277, %v1201, 0
    %v1357 = vsel %vm277, %v1202, 0
    %v1360 = vsel %vm277, %v1203, 0
    %v1363 = vsel %vm277, %v1204, 0
    %v1366 = vsel %vm277, %v1205, 0
    %1368 = vmatprep.subr.mxu0 %v1300
    %1369 = vmatpush1.msra.mxu0 %v1298
    %1370 = vmatprep.subr.mxu0 %v1306
    %1371 = vmatpush1.msra.mxu0 %v1304
    %1372 = vmatprep.subr.mxu0 %v1312
    %1373 = vmatpush1.msra.mxu0 %v1310
    %1374 = vmatprep.subr.mxu0 %v1318
    %1375 = vmatpush1.msra.mxu0 %v1316
    %1376 = vmatprep.subr.mxu0 %v1324
    %1377 = vmatpush1.msra.mxu0 %v1322
    %1378 = vmatprep.subr.mxu0 %v1330
    %1379 = vmatpush1.msra.mxu0 %v1328
    %1380 = vmatprep.subr.mxu0 %v1336
    %1381 = vmatpush1.msra.mxu0 %v1334
    %1382 = vmatprep.subr.mxu0 %v1342
    %1383 = vmatpush1.msra.mxu0 %v1340
    %1384 = vmatprep.subr.mxu0 0.0
    %1385 = vmatpush1.msra.mxu0 0.0
    %1386 = vmatprep.subr.mxu0 0.0
    %1387 = vmatpush1.msra.mxu0 0.0
    %1388 = vmatprep.subr.mxu0 0.0
    %1389 = vmatpush1.msra.mxu0 0.0
    %1390 = vmatprep.subr.mxu0 0.0
    %1391 = vmatpush1.msra.mxu0 0.0
    %1392 = vmatprep.subr.mxu0 0.0
    %1393 = vmatpush1.msra.mxu0 0.0
    %1394 = vmatprep.subr.mxu0 0.0
    %1395 = vmatpush1.msra.mxu0 0.0
    %1396 = vmatprep.subr.mxu0 0.0
    %1397 = vmatpush1.msra.mxu0 0.0
    %1398 = vmatprep.subr.mxu0 0.0
    %1399 = vmatpush1.msra.mxu0 0.0
    %1400 = vmatprep.subr.mxu0 0.0
    %1401 = vmatpush1.msra.mxu0 0.0
    %1402 = vmatprep.subr.mxu0 0.0
    %1403 = vmatpush1.msra.mxu0 0.0
    %1404 = vmatprep.subr.mxu0 0.0
    %1405 = vmatpush1.msra.mxu0 0.0
    %1406 = vmatprep.subr.mxu0 0.0
    %1407 = vmatpush1.msra.mxu0 0.0
    %1408 = vmatprep.subr.mxu0 0.0
    %1409 = vmatpush1.msra.mxu0 0.0
    %1410 = vmatprep.subr.mxu0 0.0
    %1411 = vmatpush1.msra.mxu0 0.0
    %1412 = vmatprep.subr.mxu0 0.0
    %1413 = vmatpush1.msra.mxu0 0.0
    %1414 = vmatprep.subr.mxu0 0.0
    %1415 = vmatpush1.msra.mxu0 0.0
    %1416 = vmatprep.subr.mxu0 0.0
    %1417 = vmatpush1.msra.mxu0 0.0
    %1418 = vmatprep.subr.mxu0 0.0
    %1419 = vmatpush1.msra.mxu0 0.0
    %1420 = vmatprep.subr.mxu0 0.0
    %1421 = vmatpush1.msra.mxu0 0.0
    %1422 = vmatprep.subr.mxu0 0.0
    %1423 = vmatpush1.msra.mxu0 0.0
    %1424 = vmatprep.subr.mxu0 0.0
    %1425 = vmatpush1.msra.mxu0 0.0
    %1426 = vmatprep.subr.mxu0 0.0
    %1427 = vmatpush1.msra.mxu0 0.0
    %1428 = vmatprep.subr.mxu0 0.0
    %1429 = vmatpush1.msra.mxu0 0.0
    %1430 = vmatprep.subr.mxu0 0.0
    %1431 = vmatpush1.msra.mxu0 0.0
    %1432 = vmatprep.mubr.f32.mxu0 0.0
    %1433 = vmatmul.mubr.f32.gmra.mrb[0].mxu0 %v1345
    %v1434 = vpop.f32.mrb[0].mxu0
    %v1435 = vadd.f32 0.0, %v1434
    %v1436 = vpop.f32.mrb[0].mxu0
    %v1437 = vadd.f32 0.0, %v1436
    %1438 = vmatprep.mubr.f32.mxu0 0.0
    %1439 = vmatmul.mubr.f32.gmra.mrb[0].mxu0 %v1348
    %v1440 = vpop.f32.mrb[0].mxu0
    %v1441 = vadd.f32 0.0, %v1440
    %v1442 = vpop.f32.mrb[0].mxu0
    %v1443 = vadd.f32 0.0, %v1442
    %1444 = vmatprep.mubr.f32.mxu0 0.0
    %1445 = vmatmul.mubr.f32.gmra.mrb[0].mxu0 %v1351
    %v1446 = vpop.f32.mrb[0].mxu0
    %v1447 = vadd.f32 0.0, %v1446
    %v1448 = vpop.f32.mrb[0].mxu0
    %v1449 = vadd.f32 0.0, %v1448
    %1450 = vmatprep.mubr.f32.mxu0 0.0
    %1451 = vmatmul.mubr.f32.gmra.mrb[0].mxu0 %v1354
    %v1452 = vpop.f32.mrb[0].mxu0
    %v1453 = vadd.f32 0.0, %v1452
    %v1454 = vpop.f32.mrb[0].mxu0
    %v1455 = vadd.f32 0.0, %v1454
    %1456 = vmatprep.mubr.f32.mxu0 0.0
    %1457 = vmatmul.mubr.f32.gmra.mrb[0].mxu0 %v1357
    %v1458 = vpop.f32.mrb[0].mxu0
    %v1459 = vadd.f32 0.0, %v1458
    %v1460 = vpop.f32.mrb[0].mxu0
    %v1461 = vadd.f32 0.0, %v1460
    %1462 = vmatprep.mubr.f32.mxu0 0.0
    %1463 = vmatmul.mubr.f32.gmra.mrb[0].mxu0 %v1360
    %v1464 = vpop.f32.mrb[0].mxu0
    %v1465 = vadd.f32 0.0, %v1464
    %v1466 = vpop.f32.mrb[0].mxu0
    %v1467 = vadd.f32 0.0, %v1466
    %1468 = vmatprep.mubr.f32.mxu0 0.0
    %1469 = vmatmul.mubr.f32.gmra.mrb[0].mxu0 %v1363
    %v1470 = vpop.f32.mrb[0].mxu0
    %v1471 = vadd.f32 0.0, %v1470
    %v1472 = vpop.f32.mrb[0].mxu0
    %v1473 = vadd.f32 0.0, %v1472
    %1474 = vmatprep.mubr.f32.mxu0 0.0
    %1475 = vmatmul.mubr.f32.gmra.mrb[0].mxu0 %v1366
    %v1476 = vpop.f32.mrb[0].mxu0
    %v1477 = vadd.f32 0.0, %v1476
    %v1478 = vpop.f32.mrb[0].mxu0
    %v1479 = vadd.f32 0.0, %v1478
    %1480 = vdwg.mxu0
    %v1481 = vadd.f32 %v1158, %v1435
    %v1482 = vadd.f32 %v1159, %v1437
    %v1483 = vadd.f32 %v1160, %v1441
    %v1484 = vadd.f32 %v1161, %v1443
    %v1485 = vadd.f32 %v1162, %v1447
    %v1486 = vadd.f32 %v1163, %v1449
    %v1487 = vadd.f32 %v1164, %v1453
    %v1488 = vadd.f32 %v1165, %v1455
    %v1489 = vadd.f32 %v1166, %v1459
    %v1490 = vadd.f32 %v1167, %v1461
    %v1491 = vadd.f32 %v1168, %v1465
    %v1492 = vadd.f32 %v1169, %v1467
    %v1493 = vadd.f32 %v1170, %v1471
    %v1494 = vadd.f32 %v1171, %v1473
    %v1495 = vadd.f32 %v1172, %v1477
    %v1496 = vadd.f32 %v1173, %v1479
    %v1497 = vld [vmem:[%s2] sm:$0x3]
    %v1499 = vlaneseq
    %v1500 = vshrl.u32 %v1499, 7
    %v1501 = vsub.s32 0, %v1500
    %v1502 = vrot.slane %v1497, %v1501
    %v1503 = vlaneseq
    %v1504 = vshrl.u32 %v1503, 7
    %v1505 = vsub.s32 1, %v1504
    %v1506 = vrot.slane %v1497, %v1505
    %v1509 = vadd.f32 %v1481, %v1502
    %v1510 = vadd.f32 %v1482, %v1506
    %v1511 = vadd.f32 %v1483, %v1502
    %v1512 = vadd.f32 %v1484, %v1506
    %v1513 = vadd.f32 %v1485, %v1502
    %v1514 = vadd.f32 %v1486, %v1506
    %v1515 = vadd.f32 %v1487, %v1502
    %v1516 = vadd.f32 %v1488, %v1506
    %v1517 = vadd.f32 %v1489, %v1502
    %v1518 = vadd.f32 %v1490, %v1506
    %v1519 = vadd.f32 %v1491, %v1502
    %v1520 = vadd.f32 %v1492, %v1506
    %v1521 = vadd.f32 %v1493, %v1502
    %v1522 = vadd.f32 %v1494, %v1506
    %v1523 = vadd.f32 %v1495, %v1502
    %v1524 = vadd.f32 %v1496, %v1506
    %v1525 = vmax.f32 %v1509, 0.0
    %v1526 = vmax.f32 %v1510, 0.0
    %v1527 = vmax.f32 %v1511, 0.0
    %v1528 = vmax.f32 %v1512, 0.0
    %v1529 = vmax.f32 %v1513, 0.0
    %v1530 = vmax.f32 %v1514, 0.0
    %v1531 = vmax.f32 %v1515, 0.0
    %v1532 = vmax.f32 %v1516, 0.0
    %v1533 = vmax.f32 %v1517, 0.0
    %v1534 = vmax.f32 %v1518, 0.0
    %v1535 = vmax.f32 %v1519, 0.0
    %v1536 = vmax.f32 %v1520, 0.0
    %v1537 = vmax.f32 %v1521, 0.0
    %v1538 = vmax.f32 %v1522, 0.0
    %v1539 = vmax.f32 %v1523, 0.0
    %v1540 = vmax.f32 %v1524, 0.0
    %v1541 = vadd.s32 %v74, 64
    %v1542 = vadd.s32 %v74, 72
    %v1543 = vadd.s32 %v74, 80
    %v1544 = vadd.s32 %v74, 88
    %v1545 = vadd.s32 %v74, 96
    %v1546 = vadd.s32 %v74, 104
    %v1547 = vadd.s32 %v74, 112
    %v1548 = vadd.s32 %v74, 120
    %v1549 = vadd.s32 %v74, 128
    %v1550 = vadd.s32 %v74, 136
    %v1551 = vadd.s32 %v74, 144
    %v1552 = vadd.s32 %v74, 152
    %v1553 = vadd.s32 %v74, 160
    %v1554 = vadd.s32 %v74, 168
    %v1555 = vadd.s32 %v74, 176
    %v1556 = vadd.s32 %v74, 184
    %v1557 = vadd.s32 %v74, 192
    %v1558 = vadd.s32 %v74, 200
    %v1559 = vadd.s32 %v74, 208
    %v1560 = vadd.s32 %v74, 216
    %v1561 = vadd.s32 %v72, 128
    %v1562 = vadd.s32 %v72, 8
    %v1563 = vadd.s32 %v1561, 8
    %vm1564 = vcmp.eq.s32.totalorder %v74, %v1562
    %vm1565 = vcmp.eq.s32.totalorder %v74, %v1563
    %vm1566 = vcmp.eq.s32.totalorder %v75, %v1562
    %vm1567 = vcmp.eq.s32.totalorder %v75, %v1563
    %vm1568 = vcmp.eq.s32.totalorder %v76, %v1562
    %vm1569 = vcmp.eq.s32.totalorder %v76, %v1563
    %vm1570 = vcmp.eq.s32.totalorder %v77, %v1562
    %vm1571 = vcmp.eq.s32.totalorder %v77, %v1563
    %vm1572 = vcmp.eq.s32.totalorder %v78, %v1562
    %vm1573 = vcmp.eq.s32.totalorder %v78, %v1563
    %vm1574 = vcmp.eq.s32.totalorder %v79, %v1562
    %vm1575 = vcmp.eq.s32.totalorder %v79, %v1563
    %vm1576 = vcmp.eq.s32.totalorder %v80, %v1562
    %vm1577 = vcmp.eq.s32.totalorder %v80, %v1563
    %vm1578 = vcmp.eq.s32.totalorder %v81, %v1562
    %vm1579 = vcmp.eq.s32.totalorder %v81, %v1563
    %vm1580 = vcmp.eq.s32.totalorder %v1541, %v1562
    %vm1581 = vcmp.eq.s32.totalorder %v1541, %v1563
    %vm1582 = vcmp.eq.s32.totalorder %v1542, %v1562
    %vm1583 = vcmp.eq.s32.totalorder %v1542, %v1563
    %vm1584 = vcmp.eq.s32.totalorder %v1543, %v1562
    %vm1585 = vcmp.eq.s32.totalorder %v1543, %v1563
    %vm1586 = vcmp.eq.s32.totalorder %v1544, %v1562
    %vm1587 = vcmp.eq.s32.totalorder %v1544, %v1563
    %vm1588 = vcmp.eq.s32.totalorder %v1545, %v1562
    %vm1589 = vcmp.eq.s32.totalorder %v1545, %v1563
    %vm1590 = vcmp.eq.s32.totalorder %v1546, %v1562
    %vm1591 = vcmp.eq.s32.totalorder %v1546, %v1563
    %vm1592 = vcmp.eq.s32.totalorder %v1547, %v1562
    %vm1593 = vcmp.eq.s32.totalorder %v1547, %v1563
    %vm1594 = vcmp.eq.s32.totalorder %v1548, %v1562
    %vm1595 = vcmp.eq.s32.totalorder %v1548, %v1563
    %vm1596 = vcmp.eq.s32.totalorder %v1549, %v1562
    %vm1597 = vcmp.eq.s32.totalorder %v1549, %v1563
    %vm1598 = vcmp.eq.s32.totalorder %v1550, %v1562
    %vm1599 = vcmp.eq.s32.totalorder %v1550, %v1563
    %vm1600 = vcmp.eq.s32.totalorder %v1551, %v1562
    %vm1601 = vcmp.eq.s32.totalorder %v1551, %v1563
    %vm1602 = vcmp.eq.s32.totalorder %v1552, %v1562
    %vm1603 = vcmp.eq.s32.totalorder %v1552, %v1563
    %vm1604 = vcmp.eq.s32.totalorder %v1553, %v1562
    %vm1605 = vcmp.eq.s32.totalorder %v1553, %v1563
    %vm1606 = vcmp.eq.s32.totalorder %v1554, %v1562
    %vm1607 = vcmp.eq.s32.totalorder %v1554, %v1563
    %vm1608 = vcmp.eq.s32.totalorder %v1555, %v1562
    %vm1609 = vcmp.eq.s32.totalorder %v1555, %v1563
    %vm1610 = vcmp.eq.s32.totalorder %v1556, %v1562
    %vm1611 = vcmp.eq.s32.totalorder %v1556, %v1563
    %vm1612 = vcmp.eq.s32.totalorder %v1557, %v1562
    %vm1613 = vcmp.eq.s32.totalorder %v1557, %v1563
    %vm1614 = vcmp.eq.s32.totalorder %v1558, %v1562
    %vm1615 = vcmp.eq.s32.totalorder %v1558, %v1563
    %vm1616 = vcmp.eq.s32.totalorder %v1559, %v1562
    %vm1617 = vcmp.eq.s32.totalorder %v1559, %v1563
    %vm1618 = vcmp.eq.s32.totalorder %v1560, %v1562
    %vm1619 = vcmp.eq.s32.totalorder %v1560, %v1563
    %v1620 = vsel %vm1564, 1, 0
    %v1621 = vsel %vm1565, 1, 0
    %v1622 = vsel %vm1566, 1, 0
    %v1623 = vsel %vm1567, 1, 0
    %v1624 = vsel %vm1568, 1, 0
    %v1625 = vsel %vm1569, 1, 0
    %v1626 = vsel %vm1570, 1, 0
    %v1627 = vsel %vm1571, 1, 0
    %v1628 = vsel %vm1572, 1, 0
    %v1629 = vsel %vm1573, 1, 0
    %v1630 = vsel %vm1574, 1, 0
    %v1631 = vsel %vm1575, 1, 0
    %v1632 = vsel %vm1576, 1, 0
    %v1633 = vsel %vm1577, 1, 0
    %v1634 = vsel %vm1578, 1, 0
    %v1635 = vsel %vm1579, 1, 0
    %v1636 = vsel %vm1580, 1, 0
    %v1637 = vsel %vm1581, 1, 0
    %v1638 = vsel %vm1582, 1, 0
    %v1639 = vsel %vm1583, 1, 0
    %v1640 = vsel %vm1584, 1, 0
    %v1641 = vsel %vm1585, 1, 0
    %v1642 = vsel %vm1586, 1, 0
    %v1643 = vsel %vm1587, 1, 0
    %v1644 = vsel %vm1588, 1, 0
    %v1645 = vsel %vm1589, 1, 0
    %v1646 = vsel %vm1590, 1, 0
    %v1647 = vsel %vm1591, 1, 0
    %v1648 = vsel %vm1592, 1, 0
    %v1649 = vsel %vm1593, 1, 0
    %v1650 = vsel %vm1594, 1, 0
    %v1651 = vsel %vm1595, 1, 0
    %v1652 = vsel %vm1596, 1, 0
    %v1653 = vsel %vm1597, 1, 0
    %v1654 = vsel %vm1598, 1, 0
    %v1655 = vsel %vm1599, 1, 0
    %v1656 = vsel %vm1600, 1, 0
    %v1657 = vsel %vm1601, 1, 0
    %v1658 = vsel %vm1602, 1, 0
    %v1659 = vsel %vm1603, 1, 0
    %v1660 = vsel %vm1604, 1, 0
    %v1661 = vsel %vm1605, 1, 0
    %v1662 = vsel %vm1606, 1, 0
    %v1663 = vsel %vm1607, 1, 0
    %v1664 = vsel %vm1608, 1, 0
    %v1665 = vsel %vm1609, 1, 0
    %v1666 = vsel %vm1610, 1, 0
    %v1667 = vsel %vm1611, 1, 0
    %v1668 = vsel %vm1612, 1, 0
    %v1669 = vsel %vm1613, 1, 0
    %v1670 = vsel %vm1614, 1, 0
    %v1671 = vsel %vm1615, 1, 0
    %v1672 = vsel %vm1616, 1, 0
    %v1673 = vsel %vm1617, 1, 0
    %v1674 = vsel %vm1618, 1, 0
    %v1675 = vsel %vm1619, 1, 0
    %v1676 = vcvt.s32.f32 %v1620
    %v1677 = vcvt.s32.f32 %v1621
    %v1678 = vcvt.s32.f32 %v1622
    %v1679 = vcvt.s32.f32 %v1623
    %v1680 = vcvt.s32.f32 %v1624
    %v1681 = vcvt.s32.f32 %v1625
    %v1682 = vcvt.s32.f32 %v1626
    %v1683 = vcvt.s32.f32 %v1627
    %v1684 = vcvt.s32.f32 %v1628
    %v1685 = vcvt.s32.f32 %v1629
    %v1686 = vcvt.s32.f32 %v1630
    %v1687 = vcvt.s32.f32 %v1631
    %v1688 = vcvt.s32.f32 %v1632
    %v1689 = vcvt.s32.f32 %v1633
    %v1690 = vcvt.s32.f32 %v1634
    %v1691 = vcvt.s32.f32 %v1635
    %v1692 = vcvt.s32.f32 %v1636
    %v1693 = vcvt.s32.f32 %v1637
    %v1694 = vcvt.s32.f32 %v1638
    %v1695 = vcvt.s32.f32 %v1639
    %v1696 = vcvt.s32.f32 %v1640
    %v1697 = vcvt.s32.f32 %v1641
    %v1698 = vcvt.s32.f32 %v1642
    %v1699 = vcvt.s32.f32 %v1643
    %v1700 = vcvt.s32.f32 %v1644
    %v1701 = vcvt.s32.f32 %v1645
    %v1702 = vcvt.s32.f32 %v1646
    %v1703 = vcvt.s32.f32 %v1647
    %v1704 = vcvt.s32.f32 %v1648
    %v1705 = vcvt.s32.f32 %v1649
    %v1706 = vcvt.s32.f32 %v1650
    %v1707 = vcvt.s32.f32 %v1651
    %v1708 = vcvt.s32.f32 %v1652
    %v1709 = vcvt.s32.f32 %v1653
    %v1710 = vcvt.s32.f32 %v1654
    %v1711 = vcvt.s32.f32 %v1655
    %v1712 = vcvt.s32.f32 %v1656
    %v1713 = vcvt.s32.f32 %v1657
    %v1714 = vcvt.s32.f32 %v1658
    %v1715 = vcvt.s32.f32 %v1659
    %v1716 = vcvt.s32.f32 %v1660
    %v1717 = vcvt.s32.f32 %v1661
    %v1718 = vcvt.s32.f32 %v1662
    %v1719 = vcvt.s32.f32 %v1663
    %v1720 = vcvt.s32.f32 %v1664
    %v1721 = vcvt.s32.f32 %v1665
    %v1722 = vcvt.s32.f32 %v1666
    %v1723 = vcvt.s32.f32 %v1667
    %v1724 = vcvt.s32.f32 %v1668
    %v1725 = vcvt.s32.f32 %v1669
    %v1726 = vcvt.s32.f32 %v1670
    %v1727 = vcvt.s32.f32 %v1671
    %v1728 = vcvt.s32.f32 %v1672
    %v1729 = vcvt.s32.f32 %v1673
    %v1730 = vcvt.s32.f32 %v1674
    %v1731 = vcvt.s32.f32 %v1675
    %v1733 = vsel %vm139, %v1526, 0
    %v1736 = vsel %vm139, %v1528, 0
    %v1739 = vsel %vm139, %v1530, 0
    %v1742 = vsel %vm139, %v1532, 0
    %v1745 = vsel %vm139, %v1534, 0
    %v1748 = vsel %vm139, %v1536, 0
    %v1751 = vsel %vm139, %v1538, 0
    %v1754 = vsel %vm139, %v1540, 0
    %1756 = vmatprep.subr.mxu0 %v1677
    %1757 = vmatpush1.msra.mxu0 %v1676
    %1758 = vmatprep.subr.mxu0 %v1679
    %1759 = vmatpush1.msra.mxu0 %v1678
    %1760 = vmatprep.subr.mxu0 %v1681
    %1761 = vmatpush1.msra.mxu0 %v1680
    %1762 = vmatprep.subr.mxu0 %v1683
    %1763 = vmatpush1.msra.mxu0 %v1682
    %1764 = vmatprep.subr.mxu0 %v1685
    %1765 = vmatpush1.msra.mxu0 %v1684
    %1766 = vmatprep.subr.mxu0 %v1687
    %1767 = vmatpush1.msra.mxu0 %v1686
    %1768 = vmatprep.subr.mxu0 %v1689
    %1769 = vmatpush1.msra.mxu0 %v1688
    %1770 = vmatprep.subr.mxu0 %v1691
    %1771 = vmatpush1.msra.mxu0 %v1690
    %1772 = vmatprep.subr.mxu0 %v1693
    %1773 = vmatpush1.msra.mxu0 %v1692
    %1774 = vmatprep.subr.mxu0 %v1695
    %1775 = vmatpush1.msra.mxu0 %v1694
    %1776 = vmatprep.subr.mxu0 %v1697
    %1777 = vmatpush1.msra.mxu0 %v1696
    %1778 = vmatprep.subr.mxu0 %v1699
    %1779 = vmatpush1.msra.mxu0 %v1698
    %1780 = vmatprep.subr.mxu0 %v1701
    %1781 = vmatpush1.msra.mxu0 %v1700
    %1782 = vmatprep.subr.mxu0 %v1703
    %1783 = vmatpush1.msra.mxu0 %v1702
    %1784 = vmatprep.subr.mxu0 %v1705
    %1785 = vmatpush1.msra.mxu0 %v1704
    %1786 = vmatprep.subr.mxu0 %v1707
    %1787 = vmatpush1.msra.mxu0 %v1706
    %1788 = vmatprep.subr.mxu0 %v1709
    %1789 = vmatpush1.msra.mxu0 %v1708
    %1790 = vmatprep.subr.mxu0 %v1711
    %1791 = vmatpush1.msra.mxu0 %v1710
    %1792 = vmatprep.subr.mxu0 %v1713
    %1793 = vmatpush1.msra.mxu0 %v1712
    %1794 = vmatprep.subr.mxu0 %v1715
    %1795 = vmatpush1.msra.mxu0 %v1714
    %1796 = vmatprep.subr.mxu0 %v1717
    %1797 = vmatpush1.msra.mxu0 %v1716
    %1798 = vmatprep.subr.mxu0 %v1719
    %1799 = vmatpush1.msra.mxu0 %v1718
    %1800 = vmatprep.subr.mxu0 %v1721
    %1801 = vmatpush1.msra.mxu0 %v1720
    %1802 = vmatprep.subr.mxu0 %v1723
    %1803 = vmatpush1.msra.mxu0 %v1722
    %1804 = vmatprep.subr.mxu0 %v1725
    %1805 = vmatpush1.msra.mxu0 %v1724
    %1806 = vmatprep.subr.mxu0 %v1727
    %1807 = vmatpush1.msra.mxu0 %v1726
    %1808 = vmatprep.subr.mxu0 %v1729
    %1809 = vmatpush1.msra.mxu0 %v1728
    %1810 = vmatprep.subr.mxu0 %v1731
    %1811 = vmatpush1.msra.mxu0 %v1730
    %1812 = vmatprep.subr.mxu0 0.0
    %1813 = vmatpush1.msra.mxu0 0.0
    %1814 = vmatprep.subr.mxu0 0.0
    %1815 = vmatpush1.msra.mxu0 0.0
    %1816 = vmatprep.subr.mxu0 0.0
    %1817 = vmatpush1.msra.mxu0 0.0
    %1818 = vmatprep.subr.mxu0 0.0
    %1819 = vmatpush1.msra.mxu0 0.0
    %1820 = vmatprep.mubr.f32.mxu0 %v1733
    %1821 = vmatmul.mubr.f32.gmra.mrb[0].mxu0 %v1525
    %v1822 = vpop.f32.mrb[0].mxu0
    %v1823 = vadd.f32 0.0, %v1822
    %v1824 = vpop.f32.mrb[0].mxu0
    %v1825 = vadd.f32 0.0, %v1824
    %1826 = vmatprep.mubr.f32.mxu0 %v1736
    %1827 = vmatmul.mubr.f32.gmra.mrb[0].mxu0 %v1527
    %v1828 = vpop.f32.mrb[0].mxu0
    %v1829 = vadd.f32 0.0, %v1828
    %v1830 = vpop.f32.mrb[0].mxu0
    %v1831 = vadd.f32 0.0, %v1830
    %1832 = vmatprep.mubr.f32.mxu0 %v1739
    %1833 = vmatmul.mubr.f32.gmra.mrb[0].mxu0 %v1529
    %v1834 = vpop.f32.mrb[0].mxu0
    %v1835 = vadd.f32 0.0, %v1834
    %v1836 = vpop.f32.mrb[0].mxu0
    %v1837 = vadd.f32 0.0, %v1836
    %1838 = vmatprep.mubr.f32.mxu0 %v1742
    %1839 = vmatmul.mubr.f32.gmra.mrb[0].mxu0 %v1531
    %v1840 = vpop.f32.mrb[0].mxu0
    %v1841 = vadd.f32 0.0, %v1840
    %v1842 = vpop.f32.mrb[0].mxu0
    %v1843 = vadd.f32 0.0, %v1842
    %1844 = vmatprep.mubr.f32.mxu0 %v1745
    %1845 = vmatmul.mubr.f32.gmra.mrb[0].mxu0 %v1533
    %v1846 = vpop.f32.mrb[0].mxu0
    %v1847 = vadd.f32 0.0, %v1846
    %v1848 = vpop.f32.mrb[0].mxu0
    %v1849 = vadd.f32 0.0, %v1848
    %1850 = vmatprep.mubr.f32.mxu0 %v1748
    %1851 = vmatmul.mubr.f32.gmra.mrb[0].mxu0 %v1535
    %v1852 = vpop.f32.mrb[0].mxu0
    %v1853 = vadd.f32 0.0, %v1852
    %v1854 = vpop.f32.mrb[0].mxu0
    %v1855 = vadd.f32 0.0, %v1854
    %1856 = vmatprep.mubr.f32.mxu0 %v1751
    %1857 = vmatmul.mubr.f32.gmra.mrb[0].mxu0 %v1537
    %v1858 = vpop.f32.mrb[0].mxu0
    %v1859 = vadd.f32 0.0, %v1858
    %v1860 = vpop.f32.mrb[0].mxu0
    %v1861 = vadd.f32 0.0, %v1860
    %1862 = vmatprep.mubr.f32.mxu0 %v1754
    %1863 = vmatmul.mubr.f32.gmra.mrb[0].mxu0 %v1539
    %v1864 = vpop.f32.mrb[0].mxu0
    %v1865 = vadd.f32 0.0, %v1864
    %v1866 = vpop.f32.mrb[0].mxu0
    %v1867 = vadd.f32 0.0, %v1866
    %1868 = vdwg.mxu0
    %v1869 = vmax.f32 %v1525, %v1823
    %v1870 = vmax.f32 %v1526, %v1825
    %v1871 = vmax.f32 %v1527, %v1829
    %v1872 = vmax.f32 %v1528, %v1831
    %v1873 = vmax.f32 %v1529, %v1835
    %v1874 = vmax.f32 %v1530, %v1837
    %v1875 = vmax.f32 %v1531, %v1841
    %v1876 = vmax.f32 %v1532, %v1843
    %v1877 = vmax.f32 %v1533, %v1847
    %v1878 = vmax.f32 %v1534, %v1849
    %v1879 = vmax.f32 %v1535, %v1853
    %v1880 = vmax.f32 %v1536, %v1855
    %v1881 = vmax.f32 %v1537, %v1859
    %v1882 = vmax.f32 %v1538, %v1861
    %v1883 = vmax.f32 %v1539, %v1865
    %v1884 = vmax.f32 %v1540, %v1867
    %1885 = vmatprep.subr.mxu0 %v1870
    %1886 = vmatpush1.msra.mxu0 %v1869
    %1887 = vmatprep.subr.mxu0 %v1872
    %1888 = vmatpush1.msra.mxu0 %v1871
    %1889 = vmatprep.subr.mxu0 %v1874
    %1890 = vmatpush1.msra.mxu0 %v1873
    %1891 = vmatprep.subr.mxu0 %v1876
    %1892 = vmatpush1.msra.mxu0 %v1875
    %1893 = vmatprep.subr.mxu0 %v1878
    %1894 = vmatpush1.msra.mxu0 %v1877
    %1895 = vmatprep.subr.mxu0 %v1880
    %1896 = vmatpush1.msra.mxu0 %v1879
    %1897 = vmatprep.subr.mxu0 %v1882
    %1898 = vmatpush1.msra.mxu0 %v1881
    %1899 = vmatprep.subr.mxu0 %v1884
    %1900 = vmatpush1.msra.mxu0 %v1883
    %1901 = vmatprep.subr.mxu0 0.0
    %1902 = vmatpush1.msra.mxu0 0.0
    %1903 = vmatprep.subr.mxu0 0.0
    %1904 = vmatpush1.msra.mxu0 0.0
    %1905 = vmatprep.subr.mxu0 0.0
    %1906 = vmatpush1.msra.mxu0 0.0
    %1907 = vmatprep.subr.mxu0 0.0
    %1908 = vmatpush1.msra.mxu0 0.0
    %1909 = vmatprep.subr.mxu0 0.0
    %1910 = vmatpush1.msra.mxu0 0.0
    %1911 = vmatprep.subr.mxu0 0.0
    %1912 = vmatpush1.msra.mxu0 0.0
    %1913 = vmatprep.subr.mxu0 0.0
    %1914 = vmatpush1.msra.mxu0 0.0
    %1915 = vmatprep.subr.mxu0 0.0
    %1916 = vmatpush1.msra.mxu0 0.0
    %1917 = vmatprep.subr.mxu0 0.0
    %1918 = vmatpush1.msra.mxu0 0.0
    %1919 = vmatprep.subr.mxu0 0.0
    %1920 = vmatpush1.msra.mxu0 0.0
    %1921 = vmatprep.subr.mxu0 0.0
    %1922 = vmatpush1.msra.mxu0 0.0
    %1923 = vmatprep.subr.mxu0 0.0
    %1924 = vmatpush1.msra.mxu0 0.0
    %1925 = vmatprep.subr.mxu0 0.0
    %1926 = vmatpush1.msra.mxu0 0.0
    %1927 = vmatprep.subr.mxu0 0.0
    %1928 = vmatpush1.msra.mxu0 0.0
    %1929 = vmatprep.subr.mxu0 0.0
    %1930 = vmatpush1.msra.mxu0 0.0
    %1931 = vmatprep.subr.mxu0 0.0
    %1932 = vmatpush1.msra.mxu0 0.0
    %1933 = vmatprep.subr.mxu0 0.0
    %1934 = vmatpush1.msra.mxu0 0.0
    %1935 = vmatprep.subr.mxu0 0.0
    %1936 = vmatpush1.msra.mxu0 0.0
    %1937 = vmatprep.subr.mxu0 0.0
    %1938 = vmatpush1.msra.mxu0 0.0
    %1939 = vmatprep.subr.mxu0 0.0
    %1940 = vmatpush1.msra.mxu0 0.0
    %1941 = vmatprep.subr.mxu0 0.0
    %1942 = vmatpush1.msra.mxu0 0.0
    %1943 = vmatprep.subr.mxu0 0.0
    %1944 = vmatpush1.msra.mxu0 0.0
    %1945 = vmatprep.subr.mxu0 0.0
    %1946 = vmatpush1.msra.mxu0 0.0
    %1947 = vmatprep.subr.mxu0 0.0
    %1948 = vmatpush1.msra.mxu0 0.0
    %1949 = vmatprep.mubr.f32.mxu0 0.0
    %1950 = vmatmul.mubr.f32.gmra.mrb[0].mxu0 %v279
    %v1951 = vpop.f32.mrb[0].mxu0
    %v1952 = vadd.f32 0.0, %v1951
    %v1953 = vpop.f32.mrb[0].mxu0
    %v1954 = vadd.f32 0.0, %v1953
    %1955 = vmatprep.mubr.f32.mxu0 0.0
    %1956 = vmatmul.mubr.f32.gmra.mrb[0].mxu0 %v282
    %v1957 = vpop.f32.mrb[0].mxu0
    %v1958 = vadd.f32 0.0, %v1957
    %v1959 = vpop.f32.mrb[0].mxu0
    %v1960 = vadd.f32 0.0, %v1959
    %1961 = vmatprep.mubr.f32.mxu0 0.0
    %1962 = vmatmul.mubr.f32.gmra.mrb[0].mxu0 %v285
    %v1963 = vpop.f32.mrb[0].mxu0
    %v1964 = vadd.f32 0.0, %v1963
    %v1965 = vpop.f32.mrb[0].mxu0
    %v1966 = vadd.f32 0.0, %v1965
    %1967 = vmatprep.mubr.f32.mxu0 0.0
    %1968 = vmatmul.mubr.f32.gmra.mrb[0].mxu0 %v288
    %v1969 = vpop.f32.mrb[0].mxu0
    %v1970 = vadd.f32 0.0, %v1969
    %v1971 = vpop.f32.mrb[0].mxu0
    %v1972 = vadd.f32 0.0, %v1971
    %1973 = vmatprep.mubr.f32.mxu0 0.0
    %1974 = vmatmul.mubr.f32.gmra.mrb[0].mxu0 %v291
    %v1975 = vpop.f32.mrb[0].mxu0
    %v1976 = vadd.f32 0.0, %v1975
    %v1977 = vpop.f32.mrb[0].mxu0
    %v1978 = vadd.f32 0.0, %v1977
    %1979 = vmatprep.mubr.f32.mxu0 0.0
    %1980 = vmatmul.mubr.f32.gmra.mrb[0].mxu0 %v294
    %v1981 = vpop.f32.mrb[0].mxu0
    %v1982 = vadd.f32 0.0, %v1981
    %v1983 = vpop.f32.mrb[0].mxu0
    %v1984 = vadd.f32 0.0, %v1983
    %1985 = vmatprep.mubr.f32.mxu0 0.0
    %1986 = vmatmul.mubr.f32.gmra.mrb[0].mxu0 %v297
    %v1987 = vpop.f32.mrb[0].mxu0
    %v1988 = vadd.f32 0.0, %v1987
    %v1989 = vpop.f32.mrb[0].mxu0
    %v1990 = vadd.f32 0.0, %v1989
    %1991 = vmatprep.mubr.f32.mxu0 0.0
    %1992 = vmatmul.mubr.f32.gmra.mrb[0].mxu0 %v300
    %v1993 = vpop.f32.mrb[0].mxu0
    %v1994 = vadd.f32 0.0, %v1993
    %v1995 = vpop.f32.mrb[0].mxu0
    %v1996 = vadd.f32 0.0, %v1995
    %1997 = vdwg.mxu0
    %v1998 = vmax.f32 %v1869, %v1952
    %v1999 = vmax.f32 %v1870, %v1954
    %v2000 = vmax.f32 %v1871, %v1958
    %v2001 = vmax.f32 %v1872, %v1960
    %v2002 = vmax.f32 %v1873, %v1964
    %v2003 = vmax.f32 %v1874, %v1966
    %v2004 = vmax.f32 %v1875, %v1970
    %v2005 = vmax.f32 %v1876, %v1972
    %v2006 = vmax.f32 %v1877, %v1976
    %v2007 = vmax.f32 %v1878, %v1978
    %v2008 = vmax.f32 %v1879, %v1982
    %v2009 = vmax.f32 %v1880, %v1984
    %v2010 = vmax.f32 %v1881, %v1988
    %v2011 = vmax.f32 %v1882, %v1990
    %v2012 = vmax.f32 %v1883, %v1994
    %v2013 = vmax.f32 %v1884, %v1996
    %v2014 = vld [vmem:[%s3] sm:$0xff]
    %v2015 = vld [vmem:[%s3 + $0x8] sm:$0xff]
    %v2016 = vld [vmem:[%s3 + $0x10] sm:$0xff]
    %v2017 = vld [vmem:[%s3 + $0x18] sm:$0xff]
    %v2018 = vld [vmem:[%s3 + $0x20] sm:$0xff]
    %v2019 = vld [vmem:[%s3 + $0x28] sm:$0xff]
    %v2020 = vld [vmem:[%s3 + $0x30] sm:$0xff]
    %v2021 = vld [vmem:[%s3 + $0x38] sm:$0xff]
    %v2022 = vld [vmem:[%s3 + $0x40] sm:$0xff]
    %v2023 = vld [vmem:[%s3 + $0x48] sm:$0xff]
    %v2024 = vld [vmem:[%s3 + $0x50] sm:$0xff]
    %v2025 = vld [vmem:[%s3 + $0x58] sm:$0xff]
    %v2026 = vld [vmem:[%s3 + $0x60] sm:$0xff]
    %v2027 = vld [vmem:[%s3 + $0x68] sm:$0xff]
    %v2028 = vld [vmem:[%s3 + $0x70] sm:$0xff]
    %v2029 = vld [vmem:[%s3 + $0x78] sm:$0xff]
    %v2030 = vld [vmem:[%s3 + $0x80] sm:$0xff]
    %v2031 = vld [vmem:[%s3 + $0x88] sm:$0xff]
    %v2032 = vld [vmem:[%s3 + $0x90] sm:$0xff]
    %v2033 = vld [vmem:[%s3 + $0x98] sm:$0xff]
    %v2034 = vld [vmem:[%s3 + $0xa0] sm:$0xff]
    %v2035 = vld [vmem:[%s3 + $0xa8] sm:$0xff]
    %v2036 = vld [vmem:[%s3 + $0xb0] sm:$0xff]
    %v2037 = vld [vmem:[%s3 + $0xb8] sm:$0xff]
    %v2038 = vld [vmem:[%s3 + $0xc0] sm:$0xff]
    %v2039 = vld [vmem:[%s3 + $0xc8] sm:$0xff]
    %v2040 = vld [vmem:[%s3 + $0xd0] sm:$0xff]
    %v2041 = vld [vmem:[%s3 + $0xd8] sm:$0xff]
    %v2042 = vld [vmem:[%s3 + $0xe0] sm:$0xff]
    %v2043 = vld [vmem:[%s3 + $0xe8] sm:$0xff]
    %v2044 = vld [vmem:[%s3 + $0xf0] sm:$0xff]
    %v2045 = vld [vmem:[%s3 + $0xf8] sm:$0xff]
    %v2046 = vld [vmem:[%s3 + $0x100] sm:$0xff]
    %v2047 = vld [vmem:[%s3 + $0x108] sm:$0xff]
    %v2048 = vld [vmem:[%s3 + $0x110] sm:$0xff]
    %v2049 = vld [vmem:[%s3 + $0x118] sm:$0xff]
    %v2050 = vld [vmem:[%s3 + $0x120] sm:$0xff]
    %v2051 = vld [vmem:[%s3 + $0x128] sm:$0xff]
    %v2052 = vld [vmem:[%s3 + $0x130] sm:$0xff]
    %v2053 = vld [vmem:[%s3 + $0x138] sm:$0xff]
    %v2054 = vld [vmem:[%s3 + $0x140] sm:$0xff]
    %v2055 = vld [vmem:[%s3 + $0x148] sm:$0xff]
    %v2056 = vld [vmem:[%s3 + $0x150] sm:$0xff]
    %v2057 = vld [vmem:[%s3 + $0x158] sm:$0xff]
    %v2058 = vld [vmem:[%s3 + $0x160] sm:$0xff]
    %v2059 = vld [vmem:[%s3 + $0x168] sm:$0xff]
    %v2060 = vld [vmem:[%s3 + $0x170] sm:$0xff]
    %v2061 = vld [vmem:[%s3 + $0x178] sm:$0xff]
    %v2062 = vld [vmem:[%s3 + $0x180] sm:$0xff]
    %v2063 = vld [vmem:[%s3 + $0x188] sm:$0xff]
    %v2064 = vld [vmem:[%s3 + $0x190] sm:$0xff]
    %v2065 = vld [vmem:[%s3 + $0x198] sm:$0xff]
    %v2066 = vld [vmem:[%s3 + $0x1a0] sm:$0xff]
    %v2067 = vld [vmem:[%s3 + $0x1a8] sm:$0xff]
    %v2068 = vld [vmem:[%s3 + $0x1b0] sm:$0xff]
    %v2069 = vld [vmem:[%s3 + $0x1b8] sm:$0xff]
    %s2070 = scalar_lea.vmem %s3, 448
    %v2071 = vld [vmem:[%s2070] sm:$0xff]
    %v2072 = vld [vmem:[%s2070 + $0x8] sm:$0xff]
    %v2073 = vld [vmem:[%s2070 + $0x10] sm:$0xff]
    %v2074 = vld [vmem:[%s2070 + $0x18] sm:$0xff]
    %v2075 = vld [vmem:[%s2070 + $0x20] sm:$0xff]
    %v2076 = vld [vmem:[%s2070 + $0x28] sm:$0xff]
    %v2077 = vld [vmem:[%s2070 + $0x30] sm:$0xff]
    %v2078 = vld [vmem:[%s2070 + $0x38] sm:$0xff]
    %v2079 = vld [vmem:[%s2070 + $0x40] sm:$0xff]
    %v2080 = vld [vmem:[%s2070 + $0x48] sm:$0xff]
    %v2081 = vld [vmem:[%s2070 + $0x50] sm:$0xff]
    %v2082 = vld [vmem:[%s2070 + $0x58] sm:$0xff]
    %v2083 = vld [vmem:[%s2070 + $0x60] sm:$0xff]
    %v2084 = vld [vmem:[%s2070 + $0x68] sm:$0xff]
    %v2085 = vld [vmem:[%s2070 + $0x70] sm:$0xff]
    %v2086 = vld [vmem:[%s2070 + $0x78] sm:$0xff]
    %v2087 = vld [vmem:[%s2070 + $0x80] sm:$0xff]
    %v2088 = vld [vmem:[%s2070 + $0x88] sm:$0xff]
    %v2089 = vld [vmem:[%s2070 + $0x90] sm:$0xff]
    %v2090 = vld [vmem:[%s2070 + $0x98] sm:$0xff]
    %v2091 = vld [vmem:[%s2070 + $0xa0] sm:$0xff]
    %v2092 = vld [vmem:[%s2070 + $0xa8] sm:$0xff]
    %v2093 = vld [vmem:[%s2070 + $0xb0] sm:$0xff]
    %v2094 = vld [vmem:[%s2070 + $0xb8] sm:$0xff]
    %v2095 = vld [vmem:[%s2070 + $0xc0] sm:$0xff]
    %v2096 = vld [vmem:[%s2070 + $0xc8] sm:$0xff]
    %v2097 = vld [vmem:[%s2070 + $0xd0] sm:$0xff]
    %v2098 = vld [vmem:[%s2070 + $0xd8] sm:$0xff]
    %v2099 = vld [vmem:[%s2070 + $0xe0] sm:$0xff]
    %v2100 = vld [vmem:[%s2070 + $0xe8] sm:$0xff]
    %v2101 = vld [vmem:[%s2070 + $0xf0] sm:$0xff]
    %v2102 = vld [vmem:[%s2070 + $0xf8] sm:$0xff]
    %v2103 = vld [vmem:[%s2070 + $0x100] sm:$0xff]
    %v2104 = vld [vmem:[%s2070 + $0x108] sm:$0xff]
    %v2105 = vld [vmem:[%s2070 + $0x110] sm:$0xff]
    %v2106 = vld [vmem:[%s2070 + $0x118] sm:$0xff]
    %v2107 = vld [vmem:[%s2070 + $0x120] sm:$0xff]
    %v2108 = vld [vmem:[%s2070 + $0x128] sm:$0xff]
    %v2109 = vld [vmem:[%s2070 + $0x130] sm:$0xff]
    %v2110 = vld [vmem:[%s2070 + $0x138] sm:$0xff]
    %v2111 = vld [vmem:[%s2070 + $0x140] sm:$0xff]
    %v2112 = vld [vmem:[%s2070 + $0x148] sm:$0xff]
    %v2113 = vld [vmem:[%s2070 + $0x150] sm:$0xff]
    %v2114 = vld [vmem:[%s2070 + $0x158] sm:$0xff]
    %v2115 = vld [vmem:[%s2070 + $0x160] sm:$0xff]
    %v2116 = vld [vmem:[%s2070 + $0x168] sm:$0xff]
    %v2117 = vld [vmem:[%s2070 + $0x170] sm:$0xff]
    %v2118 = vld [vmem:[%s2070 + $0x178] sm:$0xff]
    %v2119 = vld [vmem:[%s2070 + $0x180] sm:$0xff]
    %v2120 = vld [vmem:[%s2070 + $0x188] sm:$0xff]
    %v2121 = vld [vmem:[%s2070 + $0x190] sm:$0xff]
    %v2122 = vld [vmem:[%s2070 + $0x198] sm:$0xff]
    %v2123 = vld [vmem:[%s2070 + $0x1a0] sm:$0xff]
    %v2124 = vld [vmem:[%s2070 + $0x1a8] sm:$0xff]
    %v2125 = vld [vmem:[%s2070 + $0x1b0] sm:$0xff]
    %v2126 = vld [vmem:[%s2070 + $0x1b8] sm:$0xff]
    %v2128 = vsel %vm139, %v1999, 0
    %v2131 = vsel %vm139, %v2001, 0
    %v2134 = vsel %vm139, %v2003, 0
    %v2137 = vsel %vm139, %v2005, 0
    %v2140 = vsel %vm139, %v2007, 0
    %v2143 = vsel %vm139, %v2009, 0
    %v2146 = vsel %vm139, %v2011, 0
    %v2149 = vsel %vm139, %v2013, 0
    %2151 = vmatprep.subr.mxu0 %v2072
    %2152 = vmatpush1.msra.mxu0 %v2071
    %2153 = vmatprep.subr.mxu0 %v2074
    %2154 = vmatpush1.msra.mxu0 %v2073
    %2155 = vmatprep.subr.mxu0 %v2076
    %2156 = vmatpush1.msra.mxu0 %v2075
    %2157 = vmatprep.subr.mxu0 %v2078
    %2158 = vmatpush1.msra.mxu0 %v2077
    %2159 = vmatprep.subr.mxu0 %v2080
    %2160 = vmatpush1.msra.mxu0 %v2079
    %2161 = vmatprep.subr.mxu0 %v2082
    %2162 = vmatpush1.msra.mxu0 %v2081
    %2163 = vmatprep.subr.mxu0 %v2084
    %2164 = vmatpush1.msra.mxu0 %v2083
    %2165 = vmatprep.subr.mxu0 %v2086
    %2166 = vmatpush1.msra.mxu0 %v2085
    %2167 = vmatprep.subr.mxu0 %v2088
    %2168 = vmatpush1.msra.mxu0 %v2087
    %2169 = vmatprep.subr.mxu0 %v2090
    %2170 = vmatpush1.msra.mxu0 %v2089
    %2171 = vmatprep.subr.mxu0 %v2092
    %2172 = vmatpush1.msra.mxu0 %v2091
    %2173 = vmatprep.subr.mxu0 %v2094
    %2174 = vmatpush1.msra.mxu0 %v2093
    %2175 = vmatprep.subr.mxu0 %v2096
    %2176 = vmatpush1.msra.mxu0 %v2095
    %2177 = vmatprep.subr.mxu0 %v2098
    %2178 = vmatpush1.msra.mxu0 %v2097
    %2179 = vmatprep.subr.mxu0 %v2100
    %2180 = vmatpush1.msra.mxu0 %v2099
    %2181 = vmatprep.subr.mxu0 %v2102
    %2182 = vmatpush1.msra.mxu0 %v2101
    %2183 = vmatprep.subr.mxu0 %v2104
    %2184 = vmatpush1.msra.mxu0 %v2103
    %2185 = vmatprep.subr.mxu0 %v2106
    %2186 = vmatpush1.msra.mxu0 %v2105
    %2187 = vmatprep.subr.mxu0 %v2108
    %2188 = vmatpush1.msra.mxu0 %v2107
    %2189 = vmatprep.subr.mxu0 %v2110
    %2190 = vmatpush1.msra.mxu0 %v2109
    %2191 = vmatprep.subr.mxu0 %v2112
    %2192 = vmatpush1.msra.mxu0 %v2111
    %2193 = vmatprep.subr.mxu0 %v2114
    %2194 = vmatpush1.msra.mxu0 %v2113
    %2195 = vmatprep.subr.mxu0 %v2116
    %2196 = vmatpush1.msra.mxu0 %v2115
    %2197 = vmatprep.subr.mxu0 %v2118
    %2198 = vmatpush1.msra.mxu0 %v2117
    %2199 = vmatprep.subr.mxu0 %v2120
    %2200 = vmatpush1.msra.mxu0 %v2119
    %2201 = vmatprep.subr.mxu0 %v2122
    %2202 = vmatpush1.msra.mxu0 %v2121
    %2203 = vmatprep.subr.mxu0 %v2124
    %2204 = vmatpush1.msra.mxu0 %v2123
    %2205 = vmatprep.subr.mxu0 %v2126
    %2206 = vmatpush1.msra.mxu0 %v2125
    %2207 = vmatprep.subr.mxu0 0.0
    %2208 = vmatpush1.msra.mxu0 0.0
    %2209 = vmatprep.subr.mxu0 0.0
    %2210 = vmatpush1.msra.mxu0 0.0
    %2211 = vmatprep.subr.mxu0 0.0
    %2212 = vmatpush1.msra.mxu0 0.0
    %2213 = vmatprep.subr.mxu0 0.0
    %2214 = vmatpush1.msra.mxu0 0.0
    %2215 = vmatprep.mubr.f32.mxu0 %v2128
    %2216 = vmatmul.mubr.f32.gmra.mrb[0].mxu0 %v1998
    %v2217 = vpop.f32.mrb[0].mxu0
    %v2218 = vadd.f32 0.0, %v2217
    %v2219 = vpop.f32.mrb[0].mxu0
    %v2220 = vadd.f32 0.0, %v2219
    %2221 = vmatprep.mubr.f32.mxu0 %v2131
    %2222 = vmatmul.mubr.f32.gmra.mrb[0].mxu0 %v2000
    %v2223 = vpop.f32.mrb[0].mxu0
    %v2224 = vadd.f32 0.0, %v2223
    %v2225 = vpop.f32.mrb[0].mxu0
    %v2226 = vadd.f32 0.0, %v2225
    %2227 = vmatprep.mubr.f32.mxu0 %v2134
    %2228 = vmatmul.mubr.f32.gmra.mrb[0].mxu0 %v2002
    %v2229 = vpop.f32.mrb[0].mxu0
    %v2230 = vadd.f32 0.0, %v2229
    %v2231 = vpop.f32.mrb[0].mxu0
    %v2232 = vadd.f32 0.0, %v2231
    %2233 = vmatprep.mubr.f32.mxu0 %v2137
    %2234 = vmatmul.mubr.f32.gmra.mrb[0].mxu0 %v2004
    %v2235 = vpop.f32.mrb[0].mxu0
    %v2236 = vadd.f32 0.0, %v2235
    %v2237 = vpop.f32.mrb[0].mxu0
    %v2238 = vadd.f32 0.0, %v2237
    %2239 = vmatprep.mubr.f32.mxu0 %v2140
    %2240 = vmatmul.mubr.f32.gmra.mrb[0].mxu0 %v2006
    %v2241 = vpop.f32.mrb[0].mxu0
    %v2242 = vadd.f32 0.0, %v2241
    %v2243 = vpop.f32.mrb[0].mxu0
    %v2244 = vadd.f32 0.0, %v2243
    %2245 = vmatprep.mubr.f32.mxu0 %v2143
    %2246 = vmatmul.mubr.f32.gmra.mrb[0].mxu0 %v2008
    %v2247 = vpop.f32.mrb[0].mxu0
    %v2248 = vadd.f32 0.0, %v2247
    %v2249 = vpop.f32.mrb[0].mxu0
    %v2250 = vadd.f32 0.0, %v2249
    %2251 = vmatprep.mubr.f32.mxu0 %v2146
    %2252 = vmatmul.mubr.f32.gmra.mrb[0].mxu0 %v2010
    %v2253 = vpop.f32.mrb[0].mxu0
    %v2254 = vadd.f32 0.0, %v2253
    %v2255 = vpop.f32.mrb[0].mxu0
    %v2256 = vadd.f32 0.0, %v2255
    %2257 = vmatprep.mubr.f32.mxu0 %v2149
    %2258 = vmatmul.mubr.f32.gmra.mrb[0].mxu0 %v2012
    %v2259 = vpop.f32.mrb[0].mxu0
    %v2260 = vadd.f32 0.0, %v2259
    %v2261 = vpop.f32.mrb[0].mxu0
    %v2262 = vadd.f32 0.0, %v2261
    %2263 = vdwg.mxu0
    %2264 = vmatprep.subr.mxu0 %v2220
    %2265 = vmatpush1.msra.mxu0 %v2218
    %2266 = vmatprep.subr.mxu0 %v2226
    %2267 = vmatpush1.msra.mxu0 %v2224
    %2268 = vmatprep.subr.mxu0 %v2232
    %2269 = vmatpush1.msra.mxu0 %v2230
    %2270 = vmatprep.subr.mxu0 %v2238
    %2271 = vmatpush1.msra.mxu0 %v2236
    %2272 = vmatprep.subr.mxu0 %v2244
    %2273 = vmatpush1.msra.mxu0 %v2242
    %2274 = vmatprep.subr.mxu0 %v2250
    %2275 = vmatpush1.msra.mxu0 %v2248
    %2276 = vmatprep.subr.mxu0 %v2256
    %2277 = vmatpush1.msra.mxu0 %v2254
    %2278 = vmatprep.subr.mxu0 %v2262
    %2279 = vmatpush1.msra.mxu0 %v2260
    %2280 = vmatprep.subr.mxu0 0.0
    %2281 = vmatpush1.msra.mxu0 0.0
    %2282 = vmatprep.subr.mxu0 0.0
    %2283 = vmatpush1.msra.mxu0 0.0
    %2284 = vmatprep.subr.mxu0 0.0
    %2285 = vmatpush1.msra.mxu0 0.0
    %2286 = vmatprep.subr.mxu0 0.0
    %2287 = vmatpush1.msra.mxu0 0.0
    %2288 = vmatprep.subr.mxu0 0.0
    %2289 = vmatpush1.msra.mxu0 0.0
    %2290 = vmatprep.subr.mxu0 0.0
    %2291 = vmatpush1.msra.mxu0 0.0
    %2292 = vmatprep.subr.mxu0 0.0
    %2293 = vmatpush1.msra.mxu0 0.0
    %2294 = vmatprep.subr.mxu0 0.0
    %2295 = vmatpush1.msra.mxu0 0.0
    %2296 = vmatprep.subr.mxu0 0.0
    %2297 = vmatpush1.msra.mxu0 0.0
    %2298 = vmatprep.subr.mxu0 0.0
    %2299 = vmatpush1.msra.mxu0 0.0
    %2300 = vmatprep.subr.mxu0 0.0
    %2301 = vmatpush1.msra.mxu0 0.0
    %2302 = vmatprep.subr.mxu0 0.0
    %2303 = vmatpush1.msra.mxu0 0.0
    %2304 = vmatprep.subr.mxu0 0.0
    %2305 = vmatpush1.msra.mxu0 0.0
    %2306 = vmatprep.subr.mxu0 0.0
    %2307 = vmatpush1.msra.mxu0 0.0
    %2308 = vmatprep.subr.mxu0 0.0
    %2309 = vmatpush1.msra.mxu0 0.0
    %2310 = vmatprep.subr.mxu0 0.0
    %2311 = vmatpush1.msra.mxu0 0.0
    %2312 = vmatprep.subr.mxu0 0.0
    %2313 = vmatpush1.msra.mxu0 0.0
    %2314 = vmatprep.subr.mxu0 0.0
    %2315 = vmatpush1.msra.mxu0 0.0
    %2316 = vmatprep.subr.mxu0 0.0
    %2317 = vmatpush1.msra.mxu0 0.0
    %2318 = vmatprep.subr.mxu0 0.0
    %2319 = vmatpush1.msra.mxu0 0.0
    %2320 = vmatprep.subr.mxu0 0.0
    %2321 = vmatpush1.msra.mxu0 0.0
    %2322 = vmatprep.subr.mxu0 0.0
    %2323 = vmatpush1.msra.mxu0 0.0
    %2324 = vmatprep.subr.mxu0 0.0
    %2325 = vmatpush1.msra.mxu0 0.0
    %2326 = vmatprep.subr.mxu0 0.0
    %2327 = vmatpush1.msra.mxu0 0.0
    %2328 = vmatprep.mubr.f32.mxu0 0.0
    %2329 = vmatmul.mubr.f32.gmra.mrb[0].mxu0 %v699
    %v2330 = vpop.f32.mrb[0].mxu0
    %v2331 = vadd.f32 0.0, %v2330
    %v2332 = vpop.f32.mrb[0].mxu0
    %v2333 = vadd.f32 0.0, %v2332
    %2334 = vmatprep.mubr.f32.mxu0 0.0
    %2335 = vmatmul.mubr.f32.gmra.mrb[0].mxu0 %v702
    %v2336 = vpop.f32.mrb[0].mxu0
    %v2337 = vadd.f32 0.0, %v2336
    %v2338 = vpop.f32.mrb[0].mxu0
    %v2339 = vadd.f32 0.0, %v2338
    %2340 = vmatprep.mubr.f32.mxu0 0.0
    %2341 = vmatmul.mubr.f32.gmra.mrb[0].mxu0 %v705
    %v2342 = vpop.f32.mrb[0].mxu0
    %v2343 = vadd.f32 0.0, %v2342
    %v2344 = vpop.f32.mrb[0].mxu0
    %v2345 = vadd.f32 0.0, %v2344
    %2346 = vmatprep.mubr.f32.mxu0 0.0
    %2347 = vmatmul.mubr.f32.gmra.mrb[0].mxu0 %v708
    %v2348 = vpop.f32.mrb[0].mxu0
    %v2349 = vadd.f32 0.0, %v2348
    %v2350 = vpop.f32.mrb[0].mxu0
    %v2351 = vadd.f32 0.0, %v2350
    %2352 = vmatprep.mubr.f32.mxu0 0.0
    %2353 = vmatmul.mubr.f32.gmra.mrb[0].mxu0 %v711
    %v2354 = vpop.f32.mrb[0].mxu0
    %v2355 = vadd.f32 0.0, %v2354
    %v2356 = vpop.f32.mrb[0].mxu0
    %v2357 = vadd.f32 0.0, %v2356
    %2358 = vmatprep.mubr.f32.mxu0 0.0
    %2359 = vmatmul.mubr.f32.gmra.mrb[0].mxu0 %v714
    %v2360 = vpop.f32.mrb[0].mxu0
    %v2361 = vadd.f32 0.0, %v2360
    %v2362 = vpop.f32.mrb[0].mxu0
    %v2363 = vadd.f32 0.0, %v2362
    %2364 = vmatprep.mubr.f32.mxu0 0.0
    %2365 = vmatmul.mubr.f32.gmra.mrb[0].mxu0 %v717
    %v2366 = vpop.f32.mrb[0].mxu0
    %v2367 = vadd.f32 0.0, %v2366
    %v2368 = vpop.f32.mrb[0].mxu0
    %v2369 = vadd.f32 0.0, %v2368
    %2370 = vmatprep.mubr.f32.mxu0 0.0
    %2371 = vmatmul.mubr.f32.gmra.mrb[0].mxu0 %v720
    %v2372 = vpop.f32.mrb[0].mxu0
    %v2373 = vadd.f32 0.0, %v2372
    %v2374 = vpop.f32.mrb[0].mxu0
    %v2375 = vadd.f32 0.0, %v2374
    %2376 = vdwg.mxu0
    %2377 = vmatprep.subr.mxu0 %v2015
    %2378 = vmatpush1.msra.mxu0 %v2014
    %2379 = vmatprep.subr.mxu0 %v2017
    %2380 = vmatpush1.msra.mxu0 %v2016
    %2381 = vmatprep.subr.mxu0 %v2019
    %2382 = vmatpush1.msra.mxu0 %v2018
    %2383 = vmatprep.subr.mxu0 %v2021
    %2384 = vmatpush1.msra.mxu0 %v2020
    %2385 = vmatprep.subr.mxu0 %v2023
    %2386 = vmatpush1.msra.mxu0 %v2022
    %2387 = vmatprep.subr.mxu0 %v2025
    %2388 = vmatpush1.msra.mxu0 %v2024
    %2389 = vmatprep.subr.mxu0 %v2027
    %2390 = vmatpush1.msra.mxu0 %v2026
    %2391 = vmatprep.subr.mxu0 %v2029
    %2392 = vmatpush1.msra.mxu0 %v2028
    %2393 = vmatprep.subr.mxu0 %v2031
    %2394 = vmatpush1.msra.mxu0 %v2030
    %2395 = vmatprep.subr.mxu0 %v2033
    %2396 = vmatpush1.msra.mxu0 %v2032
    %2397 = vmatprep.subr.mxu0 %v2035
    %2398 = vmatpush1.msra.mxu0 %v2034
    %2399 = vmatprep.subr.mxu0 %v2037
    %2400 = vmatpush1.msra.mxu0 %v2036
    %2401 = vmatprep.subr.mxu0 %v2039
    %2402 = vmatpush1.msra.mxu0 %v2038
    %2403 = vmatprep.subr.mxu0 %v2041
    %2404 = vmatpush1.msra.mxu0 %v2040
    %2405 = vmatprep.subr.mxu0 %v2043
    %2406 = vmatpush1.msra.mxu0 %v2042
    %2407 = vmatprep.subr.mxu0 %v2045
    %2408 = vmatpush1.msra.mxu0 %v2044
    %2409 = vmatprep.subr.mxu0 %v2047
    %2410 = vmatpush1.msra.mxu0 %v2046
    %2411 = vmatprep.subr.mxu0 %v2049
    %2412 = vmatpush1.msra.mxu0 %v2048
    %2413 = vmatprep.subr.mxu0 %v2051
    %2414 = vmatpush1.msra.mxu0 %v2050
    %2415 = vmatprep.subr.mxu0 %v2053
    %2416 = vmatpush1.msra.mxu0 %v2052
    %2417 = vmatprep.subr.mxu0 %v2055
    %2418 = vmatpush1.msra.mxu0 %v2054
    %2419 = vmatprep.subr.mxu0 %v2057
    %2420 = vmatpush1.msra.mxu0 %v2056
    %2421 = vmatprep.subr.mxu0 %v2059
    %2422 = vmatpush1.msra.mxu0 %v2058
    %2423 = vmatprep.subr.mxu0 %v2061
    %2424 = vmatpush1.msra.mxu0 %v2060
    %2425 = vmatprep.subr.mxu0 %v2063
    %2426 = vmatpush1.msra.mxu0 %v2062
    %2427 = vmatprep.subr.mxu0 %v2065
    %2428 = vmatpush1.msra.mxu0 %v2064
    %2429 = vmatprep.subr.mxu0 %v2067
    %2430 = vmatpush1.msra.mxu0 %v2066
    %2431 = vmatprep.subr.mxu0 %v2069
    %2432 = vmatpush1.msra.mxu0 %v2068
    %2433 = vmatprep.subr.mxu0 0.0
    %2434 = vmatpush1.msra.mxu0 0.0
    %2435 = vmatprep.subr.mxu0 0.0
    %2436 = vmatpush1.msra.mxu0 0.0
    %2437 = vmatprep.subr.mxu0 0.0
    %2438 = vmatpush1.msra.mxu0 0.0
    %2439 = vmatprep.subr.mxu0 0.0
    %2440 = vmatpush1.msra.mxu0 0.0
    %2441 = vmatprep.mubr.f32.mxu0 %v2128
    %2442 = vmatmul.mubr.f32.gmra.mrb[0].mxu0 %v1998
    %v2443 = vpop.f32.mrb[0].mxu0
    %v2444 = vadd.f32 %v2331, %v2443
    %v2445 = vpop.f32.mrb[0].mxu0
    %v2446 = vadd.f32 %v2333, %v2445
    %2447 = vmatprep.mubr.f32.mxu0 %v2131
    %2448 = vmatmul.mubr.f32.gmra.mrb[0].mxu0 %v2000
    %v2449 = vpop.f32.mrb[0].mxu0
    %v2450 = vadd.f32 %v2337, %v2449
    %v2451 = vpop.f32.mrb[0].mxu0
    %v2452 = vadd.f32 %v2339, %v2451
    %2453 = vmatprep.mubr.f32.mxu0 %v2134
    %2454 = vmatmul.mubr.f32.gmra.mrb[0].mxu0 %v2002
    %v2455 = vpop.f32.mrb[0].mxu0
    %v2456 = vadd.f32 %v2343, %v2455
    %v2457 = vpop.f32.mrb[0].mxu0
    %v2458 = vadd.f32 %v2345, %v2457
    %2459 = vmatprep.mubr.f32.mxu0 %v2137
    %2460 = vmatmul.mubr.f32.gmra.mrb[0].mxu0 %v2004
    %v2461 = vpop.f32.mrb[0].mxu0
    %v2462 = vadd.f32 %v2349, %v2461
    %v2463 = vpop.f32.mrb[0].mxu0
    %v2464 = vadd.f32 %v2351, %v2463
    %2465 = vmatprep.mubr.f32.mxu0 %v2140
    %2466 = vmatmul.mubr.f32.gmra.mrb[0].mxu0 %v2006
    %v2467 = vpop.f32.mrb[0].mxu0
    %v2468 = vadd.f32 %v2355, %v2467
    %v2469 = vpop.f32.mrb[0].mxu0
    %v2470 = vadd.f32 %v2357, %v2469
    %2471 = vmatprep.mubr.f32.mxu0 %v2143
    %2472 = vmatmul.mubr.f32.gmra.mrb[0].mxu0 %v2008
    %v2473 = vpop.f32.mrb[0].mxu0
    %v2474 = vadd.f32 %v2361, %v2473
    %v2475 = vpop.f32.mrb[0].mxu0
    %v2476 = vadd.f32 %v2363, %v2475
    %2477 = vmatprep.mubr.f32.mxu0 %v2146
    %2478 = vmatmul.mubr.f32.gmra.mrb[0].mxu0 %v2010
    %v2479 = vpop.f32.mrb[0].mxu0
    %v2480 = vadd.f32 %v2367, %v2479
    %v2481 = vpop.f32.mrb[0].mxu0
    %v2482 = vadd.f32 %v2369, %v2481
    %2483 = vmatprep.mubr.f32.mxu0 %v2149
    %2484 = vmatmul.mubr.f32.gmra.mrb[0].mxu0 %v2012
    %v2485 = vpop.f32.mrb[0].mxu0
    %v2486 = vadd.f32 %v2373, %v2485
    %v2487 = vpop.f32.mrb[0].mxu0
    %v2488 = vadd.f32 %v2375, %v2487
    %2489 = vdwg.mxu0
    %s2490 = scalar_lea.vmem %s3, 896
    %v2491 = vld [vmem:[%s2490] sm:$0xff]
    %v2492 = vld [vmem:[%s2490 + $0x8] sm:$0xff]
    %v2493 = vld [vmem:[%s2490 + $0x10] sm:$0xff]
    %v2494 = vld [vmem:[%s2490 + $0x18] sm:$0xff]
    %v2495 = vld [vmem:[%s2490 + $0x20] sm:$0xff]
    %v2496 = vld [vmem:[%s2490 + $0x28] sm:$0xff]
    %v2497 = vld [vmem:[%s2490 + $0x30] sm:$0xff]
    %v2498 = vld [vmem:[%s2490 + $0x38] sm:$0xff]
    %v2499 = vld [vmem:[%s2490 + $0x40] sm:$0xff]
    %v2500 = vld [vmem:[%s2490 + $0x48] sm:$0xff]
    %v2501 = vld [vmem:[%s2490 + $0x50] sm:$0xff]
    %v2502 = vld [vmem:[%s2490 + $0x58] sm:$0xff]
    %v2503 = vld [vmem:[%s2490 + $0x60] sm:$0xff]
    %v2504 = vld [vmem:[%s2490 + $0x68] sm:$0xff]
    %v2505 = vld [vmem:[%s2490 + $0x70] sm:$0xff]
    %v2506 = vld [vmem:[%s2490 + $0x78] sm:$0xff]
    %v2507 = vld [vmem:[%s2490 + $0x80] sm:$0xff]
    %v2508 = vld [vmem:[%s2490 + $0x88] sm:$0xff]
    %v2509 = vld [vmem:[%s2490 + $0x90] sm:$0xff]
    %v2510 = vld [vmem:[%s2490 + $0x98] sm:$0xff]
    %v2511 = vld [vmem:[%s2490 + $0xa0] sm:$0xff]
    %v2512 = vld [vmem:[%s2490 + $0xa8] sm:$0xff]
    %v2513 = vld [vmem:[%s2490 + $0xb0] sm:$0xff]
    %v2514 = vld [vmem:[%s2490 + $0xb8] sm:$0xff]
    %v2515 = vld [vmem:[%s2490 + $0xc0] sm:$0xff]
    %v2516 = vld [vmem:[%s2490 + $0xc8] sm:$0xff]
    %v2517 = vld [vmem:[%s2490 + $0xd0] sm:$0xff]
    %v2518 = vld [vmem:[%s2490 + $0xd8] sm:$0xff]
    %v2519 = vld [vmem:[%s2490 + $0xe0] sm:$0xff]
    %v2520 = vld [vmem:[%s2490 + $0xe8] sm:$0xff]
    %v2521 = vld [vmem:[%s2490 + $0xf0] sm:$0xff]
    %v2522 = vld [vmem:[%s2490 + $0xf8] sm:$0xff]
    %v2523 = vld [vmem:[%s2490 + $0x100] sm:$0xff]
    %v2524 = vld [vmem:[%s2490 + $0x108] sm:$0xff]
    %v2525 = vld [vmem:[%s2490 + $0x110] sm:$0xff]
    %v2526 = vld [vmem:[%s2490 + $0x118] sm:$0xff]
    %v2527 = vld [vmem:[%s2490 + $0x120] sm:$0xff]
    %v2528 = vld [vmem:[%s2490 + $0x128] sm:$0xff]
    %v2529 = vld [vmem:[%s2490 + $0x130] sm:$0xff]
    %v2530 = vld [vmem:[%s2490 + $0x138] sm:$0xff]
    %v2531 = vld [vmem:[%s2490 + $0x140] sm:$0xff]
    %v2532 = vld [vmem:[%s2490 + $0x148] sm:$0xff]
    %v2533 = vld [vmem:[%s2490 + $0x150] sm:$0xff]
    %v2534 = vld [vmem:[%s2490 + $0x158] sm:$0xff]
    %v2535 = vld [vmem:[%s2490 + $0x160] sm:$0xff]
    %v2536 = vld [vmem:[%s2490 + $0x168] sm:$0xff]
    %v2537 = vld [vmem:[%s2490 + $0x170] sm:$0xff]
    %v2538 = vld [vmem:[%s2490 + $0x178] sm:$0xff]
    %v2539 = vld [vmem:[%s2490 + $0x180] sm:$0xff]
    %v2540 = vld [vmem:[%s2490 + $0x188] sm:$0xff]
    %v2541 = vld [vmem:[%s2490 + $0x190] sm:$0xff]
    %v2542 = vld [vmem:[%s2490 + $0x198] sm:$0xff]
    %v2543 = vld [vmem:[%s2490 + $0x1a0] sm:$0xff]
    %v2544 = vld [vmem:[%s2490 + $0x1a8] sm:$0xff]
    %v2545 = vld [vmem:[%s2490 + $0x1b0] sm:$0xff]
    %v2546 = vld [vmem:[%s2490 + $0x1b8] sm:$0xff]
    %2547 = vmatprep.subr.mxu0 %v2492
    %2548 = vmatpush1.msra.mxu0 %v2491
    %2549 = vmatprep.subr.mxu0 %v2494
    %2550 = vmatpush1.msra.mxu0 %v2493
    %2551 = vmatprep.subr.mxu0 %v2496
    %2552 = vmatpush1.msra.mxu0 %v2495
    %2553 = vmatprep.subr.mxu0 %v2498
    %2554 = vmatpush1.msra.mxu0 %v2497
    %2555 = vmatprep.subr.mxu0 %v2500
    %2556 = vmatpush1.msra.mxu0 %v2499
    %2557 = vmatprep.subr.mxu0 %v2502
    %2558 = vmatpush1.msra.mxu0 %v2501
    %2559 = vmatprep.subr.mxu0 %v2504
    %2560 = vmatpush1.msra.mxu0 %v2503
    %2561 = vmatprep.subr.mxu0 %v2506
    %2562 = vmatpush1.msra.mxu0 %v2505
    %2563 = vmatprep.subr.mxu0 %v2508
    %2564 = vmatpush1.msra.mxu0 %v2507
    %2565 = vmatprep.subr.mxu0 %v2510
    %2566 = vmatpush1.msra.mxu0 %v2509
    %2567 = vmatprep.subr.mxu0 %v2512
    %2568 = vmatpush1.msra.mxu0 %v2511
    %2569 = vmatprep.subr.mxu0 %v2514
    %2570 = vmatpush1.msra.mxu0 %v2513
    %2571 = vmatprep.subr.mxu0 %v2516
    %2572 = vmatpush1.msra.mxu0 %v2515
    %2573 = vmatprep.subr.mxu0 %v2518
    %2574 = vmatpush1.msra.mxu0 %v2517
    %2575 = vmatprep.subr.mxu0 %v2520
    %2576 = vmatpush1.msra.mxu0 %v2519
    %2577 = vmatprep.subr.mxu0 %v2522
    %2578 = vmatpush1.msra.mxu0 %v2521
    %2579 = vmatprep.subr.mxu0 %v2524
    %2580 = vmatpush1.msra.mxu0 %v2523
    %2581 = vmatprep.subr.mxu0 %v2526
    %2582 = vmatpush1.msra.mxu0 %v2525
    %2583 = vmatprep.subr.mxu0 %v2528
    %2584 = vmatpush1.msra.mxu0 %v2527
    %2585 = vmatprep.subr.mxu0 %v2530
    %2586 = vmatpush1.msra.mxu0 %v2529
    %2587 = vmatprep.subr.mxu0 %v2532
    %2588 = vmatpush1.msra.mxu0 %v2531
    %2589 = vmatprep.subr.mxu0 %v2534
    %2590 = vmatpush1.msra.mxu0 %v2533
    %2591 = vmatprep.subr.mxu0 %v2536
    %2592 = vmatpush1.msra.mxu0 %v2535
    %2593 = vmatprep.subr.mxu0 %v2538
    %2594 = vmatpush1.msra.mxu0 %v2537
    %2595 = vmatprep.subr.mxu0 %v2540
    %2596 = vmatpush1.msra.mxu0 %v2539
    %2597 = vmatprep.subr.mxu0 %v2542
    %2598 = vmatpush1.msra.mxu0 %v2541
    %2599 = vmatprep.subr.mxu0 %v2544
    %2600 = vmatpush1.msra.mxu0 %v2543
    %2601 = vmatprep.subr.mxu0 %v2546
    %2602 = vmatpush1.msra.mxu0 %v2545
    %2603 = vmatprep.subr.mxu0 0.0
    %2604 = vmatpush1.msra.mxu0 0.0
    %2605 = vmatprep.subr.mxu0 0.0
    %2606 = vmatpush1.msra.mxu0 0.0
    %2607 = vmatprep.subr.mxu0 0.0
    %2608 = vmatpush1.msra.mxu0 0.0
    %2609 = vmatprep.subr.mxu0 0.0
    %2610 = vmatpush1.msra.mxu0 0.0
    %2611 = vmatprep.mubr.f32.mxu0 %v2128
    %2612 = vmatmul.mubr.f32.gmra.mrb[0].mxu0 %v1998
    %v2613 = vpop.f32.mrb[0].mxu0
    %v2614 = vadd.f32 0.0, %v2613
    %v2615 = vpop.f32.mrb[0].mxu0
    %v2616 = vadd.f32 0.0, %v2615
    %2617 = vmatprep.mubr.f32.mxu0 %v2131
    %2618 = vmatmul.mubr.f32.gmra.mrb[0].mxu0 %v2000
    %v2619 = vpop.f32.mrb[0].mxu0
    %v2620 = vadd.f32 0.0, %v2619
    %v2621 = vpop.f32.mrb[0].mxu0
    %v2622 = vadd.f32 0.0, %v2621
    %2623 = vmatprep.mubr.f32.mxu0 %v2134
    %2624 = vmatmul.mubr.f32.gmra.mrb[0].mxu0 %v2002
    %v2625 = vpop.f32.mrb[0].mxu0
    %v2626 = vadd.f32 0.0, %v2625
    %v2627 = vpop.f32.mrb[0].mxu0
    %v2628 = vadd.f32 0.0, %v2627
    %2629 = vmatprep.mubr.f32.mxu0 %v2137
    %2630 = vmatmul.mubr.f32.gmra.mrb[0].mxu0 %v2004
    %v2631 = vpop.f32.mrb[0].mxu0
    %v2632 = vadd.f32 0.0, %v2631
    %v2633 = vpop.f32.mrb[0].mxu0
    %v2634 = vadd.f32 0.0, %v2633
    %2635 = vmatprep.mubr.f32.mxu0 %v2140
    %2636 = vmatmul.mubr.f32.gmra.mrb[0].mxu0 %v2006
    %v2637 = vpop.f32.mrb[0].mxu0
    %v2638 = vadd.f32 0.0, %v2637
    %v2639 = vpop.f32.mrb[0].mxu0
    %v2640 = vadd.f32 0.0, %v2639
    %2641 = vmatprep.mubr.f32.mxu0 %v2143
    %2642 = vmatmul.mubr.f32.gmra.mrb[0].mxu0 %v2008
    %v2643 = vpop.f32.mrb[0].mxu0
    %v2644 = vadd.f32 0.0, %v2643
    %v2645 = vpop.f32.mrb[0].mxu0
    %v2646 = vadd.f32 0.0, %v2645
    %2647 = vmatprep.mubr.f32.mxu0 %v2146
    %2648 = vmatmul.mubr.f32.gmra.mrb[0].mxu0 %v2010
    %v2649 = vpop.f32.mrb[0].mxu0
    %v2650 = vadd.f32 0.0, %v2649
    %v2651 = vpop.f32.mrb[0].mxu0
    %v2652 = vadd.f32 0.0, %v2651
    %2653 = vmatprep.mubr.f32.mxu0 %v2149
    %2654 = vmatmul.mubr.f32.gmra.mrb[0].mxu0 %v2012
    %v2655 = vpop.f32.mrb[0].mxu0
    %v2656 = vadd.f32 0.0, %v2655
    %v2657 = vpop.f32.mrb[0].mxu0
    %v2658 = vadd.f32 0.0, %v2657
    %2659 = vdwg.mxu0
    %2660 = vmatprep.subr.mxu0 %v2616
    %2661 = vmatpush1.msra.mxu0 %v2614
    %2662 = vmatprep.subr.mxu0 %v2622
    %2663 = vmatpush1.msra.mxu0 %v2620
    %2664 = vmatprep.subr.mxu0 %v2628
    %2665 = vmatpush1.msra.mxu0 %v2626
    %2666 = vmatprep.subr.mxu0 %v2634
    %2667 = vmatpush1.msra.mxu0 %v2632
    %2668 = vmatprep.subr.mxu0 %v2640
    %2669 = vmatpush1.msra.mxu0 %v2638
    %2670 = vmatprep.subr.mxu0 %v2646
    %2671 = vmatpush1.msra.mxu0 %v2644
    %2672 = vmatprep.subr.mxu0 %v2652
    %2673 = vmatpush1.msra.mxu0 %v2650
    %2674 = vmatprep.subr.mxu0 %v2658
    %2675 = vmatpush1.msra.mxu0 %v2656
    %2676 = vmatprep.subr.mxu0 0.0
    %2677 = vmatpush1.msra.mxu0 0.0
    %2678 = vmatprep.subr.mxu0 0.0
    %2679 = vmatpush1.msra.mxu0 0.0
    %2680 = vmatprep.subr.mxu0 0.0
    %2681 = vmatpush1.msra.mxu0 0.0
    %2682 = vmatprep.subr.mxu0 0.0
    %2683 = vmatpush1.msra.mxu0 0.0
    %2684 = vmatprep.subr.mxu0 0.0
    %2685 = vmatpush1.msra.mxu0 0.0
    %2686 = vmatprep.subr.mxu0 0.0
    %2687 = vmatpush1.msra.mxu0 0.0
    %2688 = vmatprep.subr.mxu0 0.0
    %2689 = vmatpush1.msra.mxu0 0.0
    %2690 = vmatprep.subr.mxu0 0.0
    %2691 = vmatpush1.msra.mxu0 0.0
    %2692 = vmatprep.subr.mxu0 0.0
    %2693 = vmatpush1.msra.mxu0 0.0
    %2694 = vmatprep.subr.mxu0 0.0
    %2695 = vmatpush1.msra.mxu0 0.0
    %2696 = vmatprep.subr.mxu0 0.0
    %2697 = vmatpush1.msra.mxu0 0.0
    %2698 = vmatprep.subr.mxu0 0.0
    %2699 = vmatpush1.msra.mxu0 0.0
    %2700 = vmatprep.subr.mxu0 0.0
    %2701 = vmatpush1.msra.mxu0 0.0
    %2702 = vmatprep.subr.mxu0 0.0
    %2703 = vmatpush1.msra.mxu0 0.0
    %2704 = vmatprep.subr.mxu0 0.0
    %2705 = vmatpush1.msra.mxu0 0.0
    %2706 = vmatprep.subr.mxu0 0.0
    %2707 = vmatpush1.msra.mxu0 0.0
    %2708 = vmatprep.subr.mxu0 0.0
    %2709 = vmatpush1.msra.mxu0 0.0
    %2710 = vmatprep.subr.mxu0 0.0
    %2711 = vmatpush1.msra.mxu0 0.0
    %2712 = vmatprep.subr.mxu0 0.0
    %2713 = vmatpush1.msra.mxu0 0.0
    %2714 = vmatprep.subr.mxu0 0.0
    %2715 = vmatpush1.msra.mxu0 0.0
    %2716 = vmatprep.subr.mxu0 0.0
    %2717 = vmatpush1.msra.mxu0 0.0
    %2718 = vmatprep.subr.mxu0 0.0
    %2719 = vmatpush1.msra.mxu0 0.0
    %2720 = vmatprep.subr.mxu0 0.0
    %2721 = vmatpush1.msra.mxu0 0.0
    %2722 = vmatprep.subr.mxu0 0.0
    %2723 = vmatpush1.msra.mxu0 0.0
    %2724 = vmatprep.mubr.f32.mxu0 0.0
    %2725 = vmatmul.mubr.f32.gmra.mrb[0].mxu0 %v1345
    %v2726 = vpop.f32.mrb[0].mxu0
    %v2727 = vadd.f32 0.0, %v2726
    %v2728 = vpop.f32.mrb[0].mxu0
    %v2729 = vadd.f32 0.0, %v2728
    %2730 = vmatprep.mubr.f32.mxu0 0.0
    %2731 = vmatmul.mubr.f32.gmra.mrb[0].mxu0 %v1348
    %v2732 = vpop.f32.mrb[0].mxu0
    %v2733 = vadd.f32 0.0, %v2732
    %v2734 = vpop.f32.mrb[0].mxu0
    %v2735 = vadd.f32 0.0, %v2734
    %2736 = vmatprep.mubr.f32.mxu0 0.0
    %2737 = vmatmul.mubr.f32.gmra.mrb[0].mxu0 %v1351
    %v2738 = vpop.f32.mrb[0].mxu0
    %v2739 = vadd.f32 0.0, %v2738
    %v2740 = vpop.f32.mrb[0].mxu0
    %v2741 = vadd.f32 0.0, %v2740
    %2742 = vmatprep.mubr.f32.mxu0 0.0
    %2743 = vmatmul.mubr.f32.gmra.mrb[0].mxu0 %v1354
    %v2744 = vpop.f32.mrb[0].mxu0
    %v2745 = vadd.f32 0.0, %v2744
    %v2746 = vpop.f32.mrb[0].mxu0
    %v2747 = vadd.f32 0.0, %v2746
    %2748 = vmatprep.mubr.f32.mxu0 0.0
    %2749 = vmatmul.mubr.f32.gmra.mrb[0].mxu0 %v1357
    %v2750 = vpop.f32.mrb[0].mxu0
    %v2751 = vadd.f32 0.0, %v2750
    %v2752 = vpop.f32.mrb[0].mxu0
    %v2753 = vadd.f32 0.0, %v2752
    %2754 = vmatprep.mubr.f32.mxu0 0.0
    %2755 = vmatmul.mubr.f32.gmra.mrb[0].mxu0 %v1360
    %v2756 = vpop.f32.mrb[0].mxu0
    %v2757 = vadd.f32 0.0, %v2756
    %v2758 = vpop.f32.mrb[0].mxu0
    %v2759 = vadd.f32 0.0, %v2758
    %2760 = vmatprep.mubr.f32.mxu0 0.0
    %2761 = vmatmul.mubr.f32.gmra.mrb[0].mxu0 %v1363
    %v2762 = vpop.f32.mrb[0].mxu0
    %v2763 = vadd.f32 0.0, %v2762
    %v2764 = vpop.f32.mrb[0].mxu0
    %v2765 = vadd.f32 0.0, %v2764
    %2766 = vmatprep.mubr.f32.mxu0 0.0
    %2767 = vmatmul.mubr.f32.gmra.mrb[0].mxu0 %v1366
    %v2768 = vpop.f32.mrb[0].mxu0
    %v2769 = vadd.f32 0.0, %v2768
    %v2770 = vpop.f32.mrb[0].mxu0
    %v2771 = vadd.f32 0.0, %v2770
    %2772 = vdwg.mxu0
    %v2773 = vadd.f32 %v2444, %v2727
    %v2774 = vadd.f32 %v2446, %v2729
    %v2775 = vadd.f32 %v2450, %v2733
    %v2776 = vadd.f32 %v2452, %v2735
    %v2777 = vadd.f32 %v2456, %v2739
    %v2778 = vadd.f32 %v2458, %v2741
    %v2779 = vadd.f32 %v2462, %v2745
    %v2780 = vadd.f32 %v2464, %v2747
    %v2781 = vadd.f32 %v2468, %v2751
    %v2782 = vadd.f32 %v2470, %v2753
    %v2783 = vadd.f32 %v2474, %v2757
    %v2784 = vadd.f32 %v2476, %v2759
    %v2785 = vadd.f32 %v2480, %v2763
    %v2786 = vadd.f32 %v2482, %v2765
    %v2787 = vadd.f32 %v2486, %v2769
    %v2788 = vadd.f32 %v2488, %v2771
    %v2789 = vadd.s32 %v74, 6
    %v2790 = vadd.s32 %v75, 6
    %v2791 = vadd.s32 %v76, 6
    %v2792 = vadd.s32 %v77, 6
    %v2793 = vadd.s32 %v78, 6
    %v2794 = vadd.s32 %v79, 6
    %v2795 = vadd.s32 %v80, 6
    %v2796 = vadd.s32 %v81, 6
    %vm2797 = vcmp.eq.s32.totalorder %v72, %v2789
    %vm2798 = vcmp.eq.s32.totalorder %v72, %v2790
    %vm2799 = vcmp.eq.s32.totalorder %v72, %v2791
    %vm2800 = vcmp.eq.s32.totalorder %v72, %v2792
    %vm2801 = vcmp.eq.s32.totalorder %v72, %v2793
    %vm2802 = vcmp.eq.s32.totalorder %v72, %v2794
    %vm2803 = vcmp.eq.s32.totalorder %v72, %v2795
    %vm2804 = vcmp.eq.s32.totalorder %v72, %v2796
    %v2805 = vsel %vm2797, 1, 0
    %v2806 = vsel %vm2798, 1, 0
    %v2807 = vsel %vm2799, 1, 0
    %v2808 = vsel %vm2800, 1, 0
    %v2809 = vsel %vm2801, 1, 0
    %v2810 = vsel %vm2802, 1, 0
    %v2811 = vsel %vm2803, 1, 0
    %v2812 = vsel %vm2804, 1, 0
    %v2813 = vcvt.s32.f32 %v2805
    %v2814 = vcvt.s32.f32 %v2806
    %v2815 = vcvt.s32.f32 %v2807
    %v2816 = vcvt.s32.f32 %v2808
    %v2817 = vcvt.s32.f32 %v2809
    %v2818 = vcvt.s32.f32 %v2810
    %v2819 = vcvt.s32.f32 %v2811
    %v2820 = vcvt.s32.f32 %v2812
    %s2821 = scalar_lea.vmem %s3, 1344
    %v2822 = vld [vmem:[%s2821] sm:$0xff]
    %v2823 = vld [vmem:[%s2821 + $0x8] sm:$0xff]
    %v2824 = vld [vmem:[%s2821 + $0x10] sm:$0xff]
    %v2825 = vld [vmem:[%s2821 + $0x18] sm:$0xff]
    %v2826 = vld [vmem:[%s2821 + $0x20] sm:$0xff]
    %v2827 = vld [vmem:[%s2821 + $0x28] sm:$0xff]
    %v2828 = vld [vmem:[%s2821 + $0x30] sm:$0xff]
    %v2829 = vld [vmem:[%s2821 + $0x38] sm:$0xff]
    %v2830 = vld [vmem:[%s2821 + $0x40] sm:$0xff]
    %v2831 = vld [vmem:[%s2821 + $0x48] sm:$0xff]
    %v2832 = vld [vmem:[%s2821 + $0x50] sm:$0xff]
    %v2833 = vld [vmem:[%s2821 + $0x58] sm:$0xff]
    %v2834 = vld [vmem:[%s2821 + $0x60] sm:$0xff]
    %v2835 = vld [vmem:[%s2821 + $0x68] sm:$0xff]
    %v2836 = vld [vmem:[%s2821 + $0x70] sm:$0xff]
    %v2837 = vld [vmem:[%s2821 + $0x78] sm:$0xff]
    %v2838 = vld [vmem:[%s2821 + $0x80] sm:$0xff]
    %v2839 = vld [vmem:[%s2821 + $0x88] sm:$0xff]
    %v2840 = vld [vmem:[%s2821 + $0x90] sm:$0xff]
    %v2841 = vld [vmem:[%s2821 + $0x98] sm:$0xff]
    %v2842 = vld [vmem:[%s2821 + $0xa0] sm:$0xff]
    %v2843 = vld [vmem:[%s2821 + $0xa8] sm:$0xff]
    %v2844 = vld [vmem:[%s2821 + $0xb0] sm:$0xff]
    %v2845 = vld [vmem:[%s2821 + $0xb8] sm:$0xff]
    %v2846 = vld [vmem:[%s2821 + $0xc0] sm:$0xff]
    %v2847 = vld [vmem:[%s2821 + $0xc8] sm:$0xff]
    %v2848 = vld [vmem:[%s2821 + $0xd0] sm:$0xff]
    %v2849 = vld [vmem:[%s2821 + $0xd8] sm:$0xff]
    %v2850 = vld [vmem:[%s2821 + $0xe0] sm:$0xff]
    %v2851 = vld [vmem:[%s2821 + $0xe8] sm:$0xff]
    %v2852 = vld [vmem:[%s2821 + $0xf0] sm:$0xff]
    %v2853 = vld [vmem:[%s2821 + $0xf8] sm:$0xff]
    %v2854 = vld [vmem:[%s2821 + $0x100] sm:$0xff]
    %v2855 = vld [vmem:[%s2821 + $0x108] sm:$0xff]
    %v2856 = vld [vmem:[%s2821 + $0x110] sm:$0xff]
    %v2857 = vld [vmem:[%s2821 + $0x118] sm:$0xff]
    %v2858 = vld [vmem:[%s2821 + $0x120] sm:$0xff]
    %v2859 = vld [vmem:[%s2821 + $0x128] sm:$0xff]
    %v2860 = vld [vmem:[%s2821 + $0x130] sm:$0xff]
    %v2861 = vld [vmem:[%s2821 + $0x138] sm:$0xff]
    %v2862 = vld [vmem:[%s2821 + $0x140] sm:$0xff]
    %v2863 = vld [vmem:[%s2821 + $0x148] sm:$0xff]
    %v2864 = vld [vmem:[%s2821 + $0x150] sm:$0xff]
    %v2865 = vld [vmem:[%s2821 + $0x158] sm:$0xff]
    %v2866 = vld [vmem:[%s2821 + $0x160] sm:$0xff]
    %v2867 = vld [vmem:[%s2821 + $0x168] sm:$0xff]
    %v2868 = vld [vmem:[%s2821 + $0x170] sm:$0xff]
    %v2869 = vld [vmem:[%s2821 + $0x178] sm:$0xff]
    %v2870 = vld [vmem:[%s2821 + $0x180] sm:$0xff]
    %v2871 = vld [vmem:[%s2821 + $0x188] sm:$0xff]
    %v2872 = vld [vmem:[%s2821 + $0x190] sm:$0xff]
    %v2873 = vld [vmem:[%s2821 + $0x198] sm:$0xff]
    %v2874 = vld [vmem:[%s2821 + $0x1a0] sm:$0xff]
    %v2875 = vld [vmem:[%s2821 + $0x1a8] sm:$0xff]
    %v2876 = vld [vmem:[%s2821 + $0x1b0] sm:$0xff]
    %v2877 = vld [vmem:[%s2821 + $0x1b8] sm:$0xff]
    %2878 = vmatprep.subr.mxu0 %v2823
    %2879 = vmatpush1.msra.mxu0 %v2822
    %2880 = vmatprep.subr.mxu0 %v2825
    %2881 = vmatpush1.msra.mxu0 %v2824
    %2882 = vmatprep.subr.mxu0 %v2827
    %2883 = vmatpush1.msra.mxu0 %v2826
    %2884 = vmatprep.subr.mxu0 %v2829
    %2885 = vmatpush1.msra.mxu0 %v2828
    %2886 = vmatprep.subr.mxu0 %v2831
    %2887 = vmatpush1.msra.mxu0 %v2830
    %2888 = vmatprep.subr.mxu0 %v2833
    %2889 = vmatpush1.msra.mxu0 %v2832
    %2890 = vmatprep.subr.mxu0 %v2835
    %2891 = vmatpush1.msra.mxu0 %v2834
    %2892 = vmatprep.subr.mxu0 %v2837
    %2893 = vmatpush1.msra.mxu0 %v2836
    %2894 = vmatprep.subr.mxu0 %v2839
    %2895 = vmatpush1.msra.mxu0 %v2838
    %2896 = vmatprep.subr.mxu0 %v2841
    %2897 = vmatpush1.msra.mxu0 %v2840
    %2898 = vmatprep.subr.mxu0 %v2843
    %2899 = vmatpush1.msra.mxu0 %v2842
    %2900 = vmatprep.subr.mxu0 %v2845
    %2901 = vmatpush1.msra.mxu0 %v2844
    %2902 = vmatprep.subr.mxu0 %v2847
    %2903 = vmatpush1.msra.mxu0 %v2846
    %2904 = vmatprep.subr.mxu0 %v2849
    %2905 = vmatpush1.msra.mxu0 %v2848
    %2906 = vmatprep.subr.mxu0 %v2851
    %2907 = vmatpush1.msra.mxu0 %v2850
    %2908 = vmatprep.subr.mxu0 %v2853
    %2909 = vmatpush1.msra.mxu0 %v2852
    %2910 = vmatprep.subr.mxu0 %v2855
    %2911 = vmatpush1.msra.mxu0 %v2854
    %2912 = vmatprep.subr.mxu0 %v2857
    %2913 = vmatpush1.msra.mxu0 %v2856
    %2914 = vmatprep.subr.mxu0 %v2859
    %2915 = vmatpush1.msra.mxu0 %v2858
    %2916 = vmatprep.subr.mxu0 %v2861
    %2917 = vmatpush1.msra.mxu0 %v2860
    %2918 = vmatprep.subr.mxu0 %v2863
    %2919 = vmatpush1.msra.mxu0 %v2862
    %2920 = vmatprep.subr.mxu0 %v2865
    %2921 = vmatpush1.msra.mxu0 %v2864
    %2922 = vmatprep.subr.mxu0 %v2867
    %2923 = vmatpush1.msra.mxu0 %v2866
    %2924 = vmatprep.subr.mxu0 %v2869
    %2925 = vmatpush1.msra.mxu0 %v2868
    %2926 = vmatprep.subr.mxu0 %v2871
    %2927 = vmatpush1.msra.mxu0 %v2870
    %2928 = vmatprep.subr.mxu0 %v2873
    %2929 = vmatpush1.msra.mxu0 %v2872
    %2930 = vmatprep.subr.mxu0 %v2875
    %2931 = vmatpush1.msra.mxu0 %v2874
    %2932 = vmatprep.subr.mxu0 %v2877
    %2933 = vmatpush1.msra.mxu0 %v2876
    %2934 = vmatprep.subr.mxu0 0.0
    %2935 = vmatpush1.msra.mxu0 0.0
    %2936 = vmatprep.subr.mxu0 0.0
    %2937 = vmatpush1.msra.mxu0 0.0
    %2938 = vmatprep.subr.mxu0 0.0
    %2939 = vmatpush1.msra.mxu0 0.0
    %2940 = vmatprep.subr.mxu0 0.0
    %2941 = vmatpush1.msra.mxu0 0.0
    %2942 = vmatprep.mubr.f32.mxu0 %v2128
    %2943 = vmatmul.mubr.f32.gmra.mrb[0].mxu0 %v1998
    %v2944 = vpop.f32.mrb[0].mxu0
    %v2945 = vadd.f32 0.0, %v2944
    %v2946 = vpop.f32.mrb[0].mxu0
    %v2947 = vadd.f32 0.0, %v2946
    %2948 = vmatprep.mubr.f32.mxu0 %v2131
    %2949 = vmatmul.mubr.f32.gmra.mrb[0].mxu0 %v2000
    %v2950 = vpop.f32.mrb[0].mxu0
    %v2951 = vadd.f32 0.0, %v2950
    %v2952 = vpop.f32.mrb[0].mxu0
    %v2953 = vadd.f32 0.0, %v2952
    %2954 = vmatprep.mubr.f32.mxu0 %v2134
    %2955 = vmatmul.mubr.f32.gmra.mrb[0].mxu0 %v2002
    %v2956 = vpop.f32.mrb[0].mxu0
    %v2957 = vadd.f32 0.0, %v2956
    %v2958 = vpop.f32.mrb[0].mxu0
    %v2959 = vadd.f32 0.0, %v2958
    %2960 = vmatprep.mubr.f32.mxu0 %v2137
    %2961 = vmatmul.mubr.f32.gmra.mrb[0].mxu0 %v2004
    %v2962 = vpop.f32.mrb[0].mxu0
    %v2963 = vadd.f32 0.0, %v2962
    %v2964 = vpop.f32.mrb[0].mxu0
    %v2965 = vadd.f32 0.0, %v2964
    %2966 = vmatprep.mubr.f32.mxu0 %v2140
    %2967 = vmatmul.mubr.f32.gmra.mrb[0].mxu0 %v2006
    %v2968 = vpop.f32.mrb[0].mxu0
    %v2969 = vadd.f32 0.0, %v2968
    %v2970 = vpop.f32.mrb[0].mxu0
    %v2971 = vadd.f32 0.0, %v2970
    %2972 = vmatprep.mubr.f32.mxu0 %v2143
    %2973 = vmatmul.mubr.f32.gmra.mrb[0].mxu0 %v2008
    %v2974 = vpop.f32.mrb[0].mxu0
    %v2975 = vadd.f32 0.0, %v2974
    %v2976 = vpop.f32.mrb[0].mxu0
    %v2977 = vadd.f32 0.0, %v2976
    %2978 = vmatprep.mubr.f32.mxu0 %v2146
    %2979 = vmatmul.mubr.f32.gmra.mrb[0].mxu0 %v2010
    %v2980 = vpop.f32.mrb[0].mxu0
    %v2981 = vadd.f32 0.0, %v2980
    %v2982 = vpop.f32.mrb[0].mxu0
    %v2983 = vadd.f32 0.0, %v2982
    %2984 = vmatprep.mubr.f32.mxu0 %v2149
    %2985 = vmatmul.mubr.f32.gmra.mrb[0].mxu0 %v2012
    %v2986 = vpop.f32.mrb[0].mxu0
    %v2987 = vadd.f32 0.0, %v2986
    %v2988 = vpop.f32.mrb[0].mxu0
    %v2989 = vadd.f32 0.0, %v2988
    %2990 = vdwg.mxu0
    %v2992 = vsel %vm277, %v2813, 0
    %v2995 = vsel %vm277, %v2814, 0
    %v2998 = vsel %vm277, %v2815, 0
    %v3001 = vsel %vm277, %v2816, 0
    %v3004 = vsel %vm277, %v2817, 0
    %v3007 = vsel %vm277, %v2818, 0
    %v3010 = vsel %vm277, %v2819, 0
    %v3013 = vsel %vm277, %v2820, 0
    %3015 = vmatprep.subr.mxu0 %v2947
    %3016 = vmatpush1.msra.mxu0 %v2945
    %3017 = vmatprep.subr.mxu0 %v2953
    %3018 = vmatpush1.msra.mxu0 %v2951
    %3019 = vmatprep.subr.mxu0 %v2959
    %3020 = vmatpush1.msra.mxu0 %v2957
    %3021 = vmatprep.subr.mxu0 %v2965
    %3022 = vmatpush1.msra.mxu0 %v2963
    %3023 = vmatprep.subr.mxu0 %v2971
    %3024 = vmatpush1.msra.mxu0 %v2969
    %3025 = vmatprep.subr.mxu0 %v2977
    %3026 = vmatpush1.msra.mxu0 %v2975
    %3027 = vmatprep.subr.mxu0 %v2983
    %3028 = vmatpush1.msra.mxu0 %v2981
    %3029 = vmatprep.subr.mxu0 %v2989
    %3030 = vmatpush1.msra.mxu0 %v2987
    %3031 = vmatprep.subr.mxu0 0.0
    %3032 = vmatpush1.msra.mxu0 0.0
    %3033 = vmatprep.subr.mxu0 0.0
    %3034 = vmatpush1.msra.mxu0 0.0
    %3035 = vmatprep.subr.mxu0 0.0
    %3036 = vmatpush1.msra.mxu0 0.0
    %3037 = vmatprep.subr.mxu0 0.0
    %3038 = vmatpush1.msra.mxu0 0.0
    %3039 = vmatprep.subr.mxu0 0.0
    %3040 = vmatpush1.msra.mxu0 0.0
    %3041 = vmatprep.subr.mxu0 0.0
    %3042 = vmatpush1.msra.mxu0 0.0
    %3043 = vmatprep.subr.mxu0 0.0
    %3044 = vmatpush1.msra.mxu0 0.0
    %3045 = vmatprep.subr.mxu0 0.0
    %3046 = vmatpush1.msra.mxu0 0.0
    %3047 = vmatprep.subr.mxu0 0.0
    %3048 = vmatpush1.msra.mxu0 0.0
    %3049 = vmatprep.subr.mxu0 0.0
    %3050 = vmatpush1.msra.mxu0 0.0
    %3051 = vmatprep.subr.mxu0 0.0
    %3052 = vmatpush1.msra.mxu0 0.0
    %3053 = vmatprep.subr.mxu0 0.0
    %3054 = vmatpush1.msra.mxu0 0.0
    %3055 = vmatprep.subr.mxu0 0.0
    %3056 = vmatpush1.msra.mxu0 0.0
    %3057 = vmatprep.subr.mxu0 0.0
    %3058 = vmatpush1.msra.mxu0 0.0
    %3059 = vmatprep.subr.mxu0 0.0
    %3060 = vmatpush1.msra.mxu0 0.0
    %3061 = vmatprep.subr.mxu0 0.0
    %3062 = vmatpush1.msra.mxu0 0.0
    %3063 = vmatprep.subr.mxu0 0.0
    %3064 = vmatpush1.msra.mxu0 0.0
    %3065 = vmatprep.subr.mxu0 0.0
    %3066 = vmatpush1.msra.mxu0 0.0
    %3067 = vmatprep.subr.mxu0 0.0
    %3068 = vmatpush1.msra.mxu0 0.0
    %3069 = vmatprep.subr.mxu0 0.0
    %3070 = vmatpush1.msra.mxu0 0.0
    %3071 = vmatprep.subr.mxu0 0.0
    %3072 = vmatpush1.msra.mxu0 0.0
    %3073 = vmatprep.subr.mxu0 0.0
    %3074 = vmatpush1.msra.mxu0 0.0
    %3075 = vmatprep.subr.mxu0 0.0
    %3076 = vmatpush1.msra.mxu0 0.0
    %3077 = vmatprep.subr.mxu0 0.0
    %3078 = vmatpush1.msra.mxu0 0.0
    %3079 = vmatprep.mubr.f32.mxu0 0.0
    %3080 = vmatmul.mubr.f32.gmra.mrb[0].mxu0 %v2992
    %v3081 = vpop.f32.mrb[0].mxu0
    %v3082 = vadd.f32 0.0, %v3081
    %v3083 = vpop.f32.mrb[0].mxu0
    %v3084 = vadd.f32 0.0, %v3083
    %3085 = vmatprep.mubr.f32.mxu0 0.0
    %3086 = vmatmul.mubr.f32.gmra.mrb[0].mxu0 %v2995
    %v3087 = vpop.f32.mrb[0].mxu0
    %v3088 = vadd.f32 0.0, %v3087
    %v3089 = vpop.f32.mrb[0].mxu0
    %v3090 = vadd.f32 0.0, %v3089
    %3091 = vmatprep.mubr.f32.mxu0 0.0
    %3092 = vmatmul.mubr.f32.gmra.mrb[0].mxu0 %v2998
    %v3093 = vpop.f32.mrb[0].mxu0
    %v3094 = vadd.f32 0.0, %v3093
    %v3095 = vpop.f32.mrb[0].mxu0
    %v3096 = vadd.f32 0.0, %v3095
    %3097 = vmatprep.mubr.f32.mxu0 0.0
    %3098 = vmatmul.mubr.f32.gmra.mrb[0].mxu0 %v3001
    %v3099 = vpop.f32.mrb[0].mxu0
    %v3100 = vadd.f32 0.0, %v3099
    %v3101 = vpop.f32.mrb[0].mxu0
    %v3102 = vadd.f32 0.0, %v3101
    %3103 = vmatprep.mubr.f32.mxu0 0.0
    %3104 = vmatmul.mubr.f32.gmra.mrb[0].mxu0 %v3004
    %v3105 = vpop.f32.mrb[0].mxu0
    %v3106 = vadd.f32 0.0, %v3105
    %v3107 = vpop.f32.mrb[0].mxu0
    %v3108 = vadd.f32 0.0, %v3107
    %3109 = vmatprep.mubr.f32.mxu0 0.0
    %3110 = vmatmul.mubr.f32.gmra.mrb[0].mxu0 %v3007
    %v3111 = vpop.f32.mrb[0].mxu0
    %v3112 = vadd.f32 0.0, %v3111
    %v3113 = vpop.f32.mrb[0].mxu0
    %v3114 = vadd.f32 0.0, %v3113
    %3115 = vmatprep.mubr.f32.mxu0 0.0
    %3116 = vmatmul.mubr.f32.gmra.mrb[0].mxu0 %v3010
    %v3117 = vpop.f32.mrb[0].mxu0
    %v3118 = vadd.f32 0.0, %v3117
    %v3119 = vpop.f32.mrb[0].mxu0
    %v3120 = vadd.f32 0.0, %v3119
    %3121 = vmatprep.mubr.f32.mxu0 0.0
    %3122 = vmatmul.mubr.f32.gmra.mrb[0].mxu0 %v3013
    %v3123 = vpop.f32.mrb[0].mxu0
    %v3124 = vadd.f32 0.0, %v3123
    %v3125 = vpop.f32.mrb[0].mxu0
    %v3126 = vadd.f32 0.0, %v3125
    %3127 = vdwg.mxu0
    %v3128 = vadd.f32 %v2773, %v3082
    %v3129 = vadd.f32 %v2774, %v3084
    %v3130 = vadd.f32 %v2775, %v3088
    %v3131 = vadd.f32 %v2776, %v3090
    %v3132 = vadd.f32 %v2777, %v3094
    %v3133 = vadd.f32 %v2778, %v3096
    %v3134 = vadd.f32 %v2779, %v3100
    %v3135 = vadd.f32 %v2780, %v3102
    %v3136 = vadd.f32 %v2781, %v3106
    %v3137 = vadd.f32 %v2782, %v3108
    %v3138 = vadd.f32 %v2783, %v3112
    %v3139 = vadd.f32 %v2784, %v3114
    %v3140 = vadd.f32 %v2785, %v3118
    %v3141 = vadd.f32 %v2786, %v3120
    %v3142 = vadd.f32 %v2787, %v3124
    %v3143 = vadd.f32 %v2788, %v3126
    %v3144 = vadd.s32 %v75, 8
    %v3145 = vadd.s32 %v76, 8
    %v3146 = vadd.s32 %v77, 8
    %v3147 = vadd.s32 %v78, 8
    %v3148 = vadd.s32 %v79, 8
    %v3149 = vadd.s32 %v80, 8
    %v3150 = vadd.s32 %v81, 8
    %vm3151 = vcmp.eq.s32.totalorder %v72, %v75
    %vm3152 = vcmp.eq.s32.totalorder %v72, %v3144
    %vm3153 = vcmp.eq.s32.totalorder %v72, %v3145
    %vm3154 = vcmp.eq.s32.totalorder %v72, %v3146
    %vm3155 = vcmp.eq.s32.totalorder %v72, %v3147
    %vm3156 = vcmp.eq.s32.totalorder %v72, %v3148
    %vm3157 = vcmp.eq.s32.totalorder %v72, %v3149
    %vm3158 = vcmp.eq.s32.totalorder %v72, %v3150
    %v3159 = vsel %vm3151, 1, 0
    %v3160 = vsel %vm3152, 1, 0
    %v3161 = vsel %vm3153, 1, 0
    %v3162 = vsel %vm3154, 1, 0
    %v3163 = vsel %vm3155, 1, 0
    %v3164 = vsel %vm3156, 1, 0
    %v3165 = vsel %vm3157, 1, 0
    %v3166 = vsel %vm3158, 1, 0
    %v3167 = vcvt.s32.f32 %v3159
    %v3168 = vcvt.s32.f32 %v3160
    %v3169 = vcvt.s32.f32 %v3161
    %v3170 = vcvt.s32.f32 %v3162
    %v3171 = vcvt.s32.f32 %v3163
    %v3172 = vcvt.s32.f32 %v3164
    %v3173 = vcvt.s32.f32 %v3165
    %v3174 = vcvt.s32.f32 %v3166
    %s3175 = scalar_lea.vmem %s3, 1792
    %v3176 = vld [vmem:[%s3175] sm:$0xff]
    %v3177 = vld [vmem:[%s3175 + $0x8] sm:$0xff]
    %v3178 = vld [vmem:[%s3175 + $0x10] sm:$0xff]
    %v3179 = vld [vmem:[%s3175 + $0x18] sm:$0xff]
    %v3180 = vld [vmem:[%s3175 + $0x20] sm:$0xff]
    %v3181 = vld [vmem:[%s3175 + $0x28] sm:$0xff]
    %v3182 = vld [vmem:[%s3175 + $0x30] sm:$0xff]
    %v3183 = vld [vmem:[%s3175 + $0x38] sm:$0xff]
    %v3184 = vld [vmem:[%s3175 + $0x40] sm:$0xff]
    %v3185 = vld [vmem:[%s3175 + $0x48] sm:$0xff]
    %v3186 = vld [vmem:[%s3175 + $0x50] sm:$0xff]
    %v3187 = vld [vmem:[%s3175 + $0x58] sm:$0xff]
    %v3188 = vld [vmem:[%s3175 + $0x60] sm:$0xff]
    %v3189 = vld [vmem:[%s3175 + $0x68] sm:$0xff]
    %v3190 = vld [vmem:[%s3175 + $0x70] sm:$0xff]
    %v3191 = vld [vmem:[%s3175 + $0x78] sm:$0xff]
    %v3192 = vld [vmem:[%s3175 + $0x80] sm:$0xff]
    %v3193 = vld [vmem:[%s3175 + $0x88] sm:$0xff]
    %v3194 = vld [vmem:[%s3175 + $0x90] sm:$0xff]
    %v3195 = vld [vmem:[%s3175 + $0x98] sm:$0xff]
    %v3196 = vld [vmem:[%s3175 + $0xa0] sm:$0xff]
    %v3197 = vld [vmem:[%s3175 + $0xa8] sm:$0xff]
    %v3198 = vld [vmem:[%s3175 + $0xb0] sm:$0xff]
    %v3199 = vld [vmem:[%s3175 + $0xb8] sm:$0xff]
    %v3200 = vld [vmem:[%s3175 + $0xc0] sm:$0xff]
    %v3201 = vld [vmem:[%s3175 + $0xc8] sm:$0xff]
    %v3202 = vld [vmem:[%s3175 + $0xd0] sm:$0xff]
    %v3203 = vld [vmem:[%s3175 + $0xd8] sm:$0xff]
    %v3204 = vld [vmem:[%s3175 + $0xe0] sm:$0xff]
    %v3205 = vld [vmem:[%s3175 + $0xe8] sm:$0xff]
    %v3206 = vld [vmem:[%s3175 + $0xf0] sm:$0xff]
    %v3207 = vld [vmem:[%s3175 + $0xf8] sm:$0xff]
    %v3208 = vld [vmem:[%s3175 + $0x100] sm:$0xff]
    %v3209 = vld [vmem:[%s3175 + $0x108] sm:$0xff]
    %v3210 = vld [vmem:[%s3175 + $0x110] sm:$0xff]
    %v3211 = vld [vmem:[%s3175 + $0x118] sm:$0xff]
    %v3212 = vld [vmem:[%s3175 + $0x120] sm:$0xff]
    %v3213 = vld [vmem:[%s3175 + $0x128] sm:$0xff]
    %v3214 = vld [vmem:[%s3175 + $0x130] sm:$0xff]
    %v3215 = vld [vmem:[%s3175 + $0x138] sm:$0xff]
    %v3216 = vld [vmem:[%s3175 + $0x140] sm:$0xff]
    %v3217 = vld [vmem:[%s3175 + $0x148] sm:$0xff]
    %v3218 = vld [vmem:[%s3175 + $0x150] sm:$0xff]
    %v3219 = vld [vmem:[%s3175 + $0x158] sm:$0xff]
    %v3220 = vld [vmem:[%s3175 + $0x160] sm:$0xff]
    %v3221 = vld [vmem:[%s3175 + $0x168] sm:$0xff]
    %v3222 = vld [vmem:[%s3175 + $0x170] sm:$0xff]
    %v3223 = vld [vmem:[%s3175 + $0x178] sm:$0xff]
    %v3224 = vld [vmem:[%s3175 + $0x180] sm:$0xff]
    %v3225 = vld [vmem:[%s3175 + $0x188] sm:$0xff]
    %v3226 = vld [vmem:[%s3175 + $0x190] sm:$0xff]
    %v3227 = vld [vmem:[%s3175 + $0x198] sm:$0xff]
    %v3228 = vld [vmem:[%s3175 + $0x1a0] sm:$0xff]
    %v3229 = vld [vmem:[%s3175 + $0x1a8] sm:$0xff]
    %v3230 = vld [vmem:[%s3175 + $0x1b0] sm:$0xff]
    %v3231 = vld [vmem:[%s3175 + $0x1b8] sm:$0xff]
    %3232 = vmatprep.subr.mxu0 %v3177
    %3233 = vmatpush1.msra.mxu0 %v3176
    %3234 = vmatprep.subr.mxu0 %v3179
    %3235 = vmatpush1.msra.mxu0 %v3178
    %3236 = vmatprep.subr.mxu0 %v3181
    %3237 = vmatpush1.msra.mxu0 %v3180
    %3238 = vmatprep.subr.mxu0 %v3183
    %3239 = vmatpush1.msra.mxu0 %v3182
    %3240 = vmatprep.subr.mxu0 %v3185
    %3241 = vmatpush1.msra.mxu0 %v3184
    %3242 = vmatprep.subr.mxu0 %v3187
    %3243 = vmatpush1.msra.mxu0 %v3186
    %3244 = vmatprep.subr.mxu0 %v3189
    %3245 = vmatpush1.msra.mxu0 %v3188
    %3246 = vmatprep.subr.mxu0 %v3191
    %3247 = vmatpush1.msra.mxu0 %v3190
    %3248 = vmatprep.subr.mxu0 %v3193
    %3249 = vmatpush1.msra.mxu0 %v3192
    %3250 = vmatprep.subr.mxu0 %v3195
    %3251 = vmatpush1.msra.mxu0 %v3194
    %3252 = vmatprep.subr.mxu0 %v3197
    %3253 = vmatpush1.msra.mxu0 %v3196
    %3254 = vmatprep.subr.mxu0 %v3199
    %3255 = vmatpush1.msra.mxu0 %v3198
    %3256 = vmatprep.subr.mxu0 %v3201
    %3257 = vmatpush1.msra.mxu0 %v3200
    %3258 = vmatprep.subr.mxu0 %v3203
    %3259 = vmatpush1.msra.mxu0 %v3202
    %3260 = vmatprep.subr.mxu0 %v3205
    %3261 = vmatpush1.msra.mxu0 %v3204
    %3262 = vmatprep.subr.mxu0 %v3207
    %3263 = vmatpush1.msra.mxu0 %v3206
    %3264 = vmatprep.subr.mxu0 %v3209
    %3265 = vmatpush1.msra.mxu0 %v3208
    %3266 = vmatprep.subr.mxu0 %v3211
    %3267 = vmatpush1.msra.mxu0 %v3210
    %3268 = vmatprep.subr.mxu0 %v3213
    %3269 = vmatpush1.msra.mxu0 %v3212
    %3270 = vmatprep.subr.mxu0 %v3215
    %3271 = vmatpush1.msra.mxu0 %v3214
    %3272 = vmatprep.subr.mxu0 %v3217
    %3273 = vmatpush1.msra.mxu0 %v3216
    %3274 = vmatprep.subr.mxu0 %v3219
    %3275 = vmatpush1.msra.mxu0 %v3218
    %3276 = vmatprep.subr.mxu0 %v3221
    %3277 = vmatpush1.msra.mxu0 %v3220
    %3278 = vmatprep.subr.mxu0 %v3223
    %3279 = vmatpush1.msra.mxu0 %v3222
    %3280 = vmatprep.subr.mxu0 %v3225
    %3281 = vmatpush1.msra.mxu0 %v3224
    %3282 = vmatprep.subr.mxu0 %v3227
    %3283 = vmatpush1.msra.mxu0 %v3226
    %3284 = vmatprep.subr.mxu0 %v3229
    %3285 = vmatpush1.msra.mxu0 %v3228
    %3286 = vmatprep.subr.mxu0 %v3231
    %3287 = vmatpush1.msra.mxu0 %v3230
    %3288 = vmatprep.subr.mxu0 0.0
    %3289 = vmatpush1.msra.mxu0 0.0
    %3290 = vmatprep.subr.mxu0 0.0
    %3291 = vmatpush1.msra.mxu0 0.0
    %3292 = vmatprep.subr.mxu0 0.0
    %3293 = vmatpush1.msra.mxu0 0.0
    %3294 = vmatprep.subr.mxu0 0.0
    %3295 = vmatpush1.msra.mxu0 0.0
    %3296 = vmatprep.mubr.f32.mxu0 %v2128
    %3297 = vmatmul.mubr.f32.gmra.mrb[0].mxu0 %v1998
    %v3298 = vpop.f32.mrb[0].mxu0
    %v3299 = vadd.f32 0.0, %v3298
    %v3300 = vpop.f32.mrb[0].mxu0
    %v3301 = vadd.f32 0.0, %v3300
    %3302 = vmatprep.mubr.f32.mxu0 %v2131
    %3303 = vmatmul.mubr.f32.gmra.mrb[0].mxu0 %v2000
    %v3304 = vpop.f32.mrb[0].mxu0
    %v3305 = vadd.f32 0.0, %v3304
    %v3306 = vpop.f32.mrb[0].mxu0
    %v3307 = vadd.f32 0.0, %v3306
    %3308 = vmatprep.mubr.f32.mxu0 %v2134
    %3309 = vmatmul.mubr.f32.gmra.mrb[0].mxu0 %v2002
    %v3310 = vpop.f32.mrb[0].mxu0
    %v3311 = vadd.f32 0.0, %v3310
    %v3312 = vpop.f32.mrb[0].mxu0
    %v3313 = vadd.f32 0.0, %v3312
    %3314 = vmatprep.mubr.f32.mxu0 %v2137
    %3315 = vmatmul.mubr.f32.gmra.mrb[0].mxu0 %v2004
    %v3316 = vpop.f32.mrb[0].mxu0
    %v3317 = vadd.f32 0.0, %v3316
    %v3318 = vpop.f32.mrb[0].mxu0
    %v3319 = vadd.f32 0.0, %v3318
    %3320 = vmatprep.mubr.f32.mxu0 %v2140
    %3321 = vmatmul.mubr.f32.gmra.mrb[0].mxu0 %v2006
    %v3322 = vpop.f32.mrb[0].mxu0
    %v3323 = vadd.f32 0.0, %v3322
    %v3324 = vpop.f32.mrb[0].mxu0
    %v3325 = vadd.f32 0.0, %v3324
    %3326 = vmatprep.mubr.f32.mxu0 %v2143
    %3327 = vmatmul.mubr.f32.gmra.mrb[0].mxu0 %v2008
    %v3328 = vpop.f32.mrb[0].mxu0
    %v3329 = vadd.f32 0.0, %v3328
    %v3330 = vpop.f32.mrb[0].mxu0
    %v3331 = vadd.f32 0.0, %v3330
    %3332 = vmatprep.mubr.f32.mxu0 %v2146
    %3333 = vmatmul.mubr.f32.gmra.mrb[0].mxu0 %v2010
    %v3334 = vpop.f32.mrb[0].mxu0
    %v3335 = vadd.f32 0.0, %v3334
    %v3336 = vpop.f32.mrb[0].mxu0
    %v3337 = vadd.f32 0.0, %v3336
    %3338 = vmatprep.mubr.f32.mxu0 %v2149
    %3339 = vmatmul.mubr.f32.gmra.mrb[0].mxu0 %v2012
    %v3340 = vpop.f32.mrb[0].mxu0
    %v3341 = vadd.f32 0.0, %v3340
    %v3342 = vpop.f32.mrb[0].mxu0
    %v3343 = vadd.f32 0.0, %v3342
    %3344 = vdwg.mxu0
    %v3346 = vsel %vm277, %v3167, 0
    %v3349 = vsel %vm277, %v3168, 0
    %v3352 = vsel %vm277, %v3169, 0
    %v3355 = vsel %vm277, %v3170, 0
    %v3358 = vsel %vm277, %v3171, 0
    %v3361 = vsel %vm277, %v3172, 0
    %v3364 = vsel %vm277, %v3173, 0
    %v3367 = vsel %vm277, %v3174, 0
    %3369 = vmatprep.subr.mxu0 %v3301
    %3370 = vmatpush1.msra.mxu0 %v3299
    %3371 = vmatprep.subr.mxu0 %v3307
    %3372 = vmatpush1.msra.mxu0 %v3305
    %3373 = vmatprep.subr.mxu0 %v3313
    %3374 = vmatpush1.msra.mxu0 %v3311
    %3375 = vmatprep.subr.mxu0 %v3319
    %3376 = vmatpush1.msra.mxu0 %v3317
    %3377 = vmatprep.subr.mxu0 %v3325
    %3378 = vmatpush1.msra.mxu0 %v3323
    %3379 = vmatprep.subr.mxu0 %v3331
    %3380 = vmatpush1.msra.mxu0 %v3329
    %3381 = vmatprep.subr.mxu0 %v3337
    %3382 = vmatpush1.msra.mxu0 %v3335
    %3383 = vmatprep.subr.mxu0 %v3343
    %3384 = vmatpush1.msra.mxu0 %v3341
    %3385 = vmatprep.subr.mxu0 0.0
    %3386 = vmatpush1.msra.mxu0 0.0
    %3387 = vmatprep.subr.mxu0 0.0
    %3388 = vmatpush1.msra.mxu0 0.0
    %3389 = vmatprep.subr.mxu0 0.0
    %3390 = vmatpush1.msra.mxu0 0.0
    %3391 = vmatprep.subr.mxu0 0.0
    %3392 = vmatpush1.msra.mxu0 0.0
    %3393 = vmatprep.subr.mxu0 0.0
    %3394 = vmatpush1.msra.mxu0 0.0
    %3395 = vmatprep.subr.mxu0 0.0
    %3396 = vmatpush1.msra.mxu0 0.0
    %3397 = vmatprep.subr.mxu0 0.0
    %3398 = vmatpush1.msra.mxu0 0.0
    %3399 = vmatprep.subr.mxu0 0.0
    %3400 = vmatpush1.msra.mxu0 0.0
    %3401 = vmatprep.subr.mxu0 0.0
    %3402 = vmatpush1.msra.mxu0 0.0
    %3403 = vmatprep.subr.mxu0 0.0
    %3404 = vmatpush1.msra.mxu0 0.0
    %3405 = vmatprep.subr.mxu0 0.0
    %3406 = vmatpush1.msra.mxu0 0.0
    %3407 = vmatprep.subr.mxu0 0.0
    %3408 = vmatpush1.msra.mxu0 0.0
    %3409 = vmatprep.subr.mxu0 0.0
    %3410 = vmatpush1.msra.mxu0 0.0
    %3411 = vmatprep.subr.mxu0 0.0
    %3412 = vmatpush1.msra.mxu0 0.0
    %3413 = vmatprep.subr.mxu0 0.0
    %3414 = vmatpush1.msra.mxu0 0.0
    %3415 = vmatprep.subr.mxu0 0.0
    %3416 = vmatpush1.msra.mxu0 0.0
    %3417 = vmatprep.subr.mxu0 0.0
    %3418 = vmatpush1.msra.mxu0 0.0
    %3419 = vmatprep.subr.mxu0 0.0
    %3420 = vmatpush1.msra.mxu0 0.0
    %3421 = vmatprep.subr.mxu0 0.0
    %3422 = vmatpush1.msra.mxu0 0.0
    %3423 = vmatprep.subr.mxu0 0.0
    %3424 = vmatpush1.msra.mxu0 0.0
    %3425 = vmatprep.subr.mxu0 0.0
    %3426 = vmatpush1.msra.mxu0 0.0
    %3427 = vmatprep.subr.mxu0 0.0
    %3428 = vmatpush1.msra.mxu0 0.0
    %3429 = vmatprep.subr.mxu0 0.0
    %3430 = vmatpush1.msra.mxu0 0.0
    %3431 = vmatprep.subr.mxu0 0.0
    %3432 = vmatpush1.msra.mxu0 0.0
    %3433 = vmatprep.mubr.f32.mxu0 0.0
    %3434 = vmatmul.mubr.f32.gmra.mrb[0].mxu0 %v3346
    %v3435 = vpop.f32.mrb[0].mxu0
    %v3436 = vadd.f32 0.0, %v3435
    %v3437 = vpop.f32.mrb[0].mxu0
    %v3438 = vadd.f32 0.0, %v3437
    %3439 = vmatprep.mubr.f32.mxu0 0.0
    %3440 = vmatmul.mubr.f32.gmra.mrb[0].mxu0 %v3349
    %v3441 = vpop.f32.mrb[0].mxu0
    %v3442 = vadd.f32 0.0, %v3441
    %v3443 = vpop.f32.mrb[0].mxu0
    %v3444 = vadd.f32 0.0, %v3443
    %3445 = vmatprep.mubr.f32.mxu0 0.0
    %3446 = vmatmul.mubr.f32.gmra.mrb[0].mxu0 %v3352
    %v3447 = vpop.f32.mrb[0].mxu0
    %v3448 = vadd.f32 0.0, %v3447
    %v3449 = vpop.f32.mrb[0].mxu0
    %v3450 = vadd.f32 0.0, %v3449
    %3451 = vmatprep.mubr.f32.mxu0 0.0
    %3452 = vmatmul.mubr.f32.gmra.mrb[0].mxu0 %v3355
    %v3453 = vpop.f32.mrb[0].mxu0
    %v3454 = vadd.f32 0.0, %v3453
    %v3455 = vpop.f32.mrb[0].mxu0
    %v3456 = vadd.f32 0.0, %v3455
    %3457 = vmatprep.mubr.f32.mxu0 0.0
    %3458 = vmatmul.mubr.f32.gmra.mrb[0].mxu0 %v3358
    %v3459 = vpop.f32.mrb[0].mxu0
    %v3460 = vadd.f32 0.0, %v3459
    %v3461 = vpop.f32.mrb[0].mxu0
    %v3462 = vadd.f32 0.0, %v3461
    %3463 = vmatprep.mubr.f32.mxu0 0.0
    %3464 = vmatmul.mubr.f32.gmra.mrb[0].mxu0 %v3361
    %v3465 = vpop.f32.mrb[0].mxu0
    %v3466 = vadd.f32 0.0, %v3465
    %v3467 = vpop.f32.mrb[0].mxu0
    %v3468 = vadd.f32 0.0, %v3467
    %3469 = vmatprep.mubr.f32.mxu0 0.0
    %3470 = vmatmul.mubr.f32.gmra.mrb[0].mxu0 %v3364
    %v3471 = vpop.f32.mrb[0].mxu0
    %v3472 = vadd.f32 0.0, %v3471
    %v3473 = vpop.f32.mrb[0].mxu0
    %v3474 = vadd.f32 0.0, %v3473
    %3475 = vmatprep.mubr.f32.mxu0 0.0
    %3476 = vmatmul.mubr.f32.gmra.mrb[0].mxu0 %v3367
    %v3477 = vpop.f32.mrb[0].mxu0
    %v3478 = vadd.f32 0.0, %v3477
    %v3479 = vpop.f32.mrb[0].mxu0
    %v3480 = vadd.f32 0.0, %v3479
    %3481 = vdwg.mxu0
    %v3482 = vadd.f32 %v3128, %v3436
    %v3483 = vadd.f32 %v3129, %v3438
    %v3484 = vadd.f32 %v3130, %v3442
    %v3485 = vadd.f32 %v3131, %v3444
    %v3486 = vadd.f32 %v3132, %v3448
    %v3487 = vadd.f32 %v3133, %v3450
    %v3488 = vadd.f32 %v3134, %v3454
    %v3489 = vadd.f32 %v3135, %v3456
    %v3490 = vadd.f32 %v3136, %v3460
    %v3491 = vadd.f32 %v3137, %v3462
    %v3492 = vadd.f32 %v3138, %v3466
    %v3493 = vadd.f32 %v3139, %v3468
    %v3494 = vadd.f32 %v3140, %v3472
    %v3495 = vadd.f32 %v3141, %v3474
    %v3496 = vadd.f32 %v3142, %v3478
    %v3497 = vadd.f32 %v3143, %v3480
    %v3498 = vld [vmem:[%s4] sm:$0x3]
    %v3500 = vlaneseq
    %v3501 = vshrl.u32 %v3500, 7
    %v3502 = vsub.s32 0, %v3501
    %v3503 = vrot.slane %v3498, %v3502
    %v3504 = vlaneseq
    %v3505 = vshrl.u32 %v3504, 7
    %v3506 = vsub.s32 1, %v3505
    %v3507 = vrot.slane %v3498, %v3506
    %v3510 = vadd.f32 %v3482, %v3503
    %v3511 = vadd.f32 %v3483, %v3507
    %v3512 = vadd.f32 %v3484, %v3503
    %v3513 = vadd.f32 %v3485, %v3507
    %v3514 = vadd.f32 %v3486, %v3503
    %v3515 = vadd.f32 %v3487, %v3507
    %v3516 = vadd.f32 %v3488, %v3503
    %v3517 = vadd.f32 %v3489, %v3507
    %v3518 = vadd.f32 %v3490, %v3503
    %v3519 = vadd.f32 %v3491, %v3507
    %v3520 = vadd.f32 %v3492, %v3503
    %v3521 = vadd.f32 %v3493, %v3507
    %v3522 = vadd.f32 %v3494, %v3503
    %v3523 = vadd.f32 %v3495, %v3507
    %v3524 = vadd.f32 %v3496, %v3503
    %v3525 = vadd.f32 %v3497, %v3507
    %v3526 = vmax.f32 %v3510, 0.0
    %v3527 = vmax.f32 %v3511, 0.0
    %v3528 = vmax.f32 %v3512, 0.0
    %v3529 = vmax.f32 %v3513, 0.0
    %v3530 = vmax.f32 %v3514, 0.0
    %v3531 = vmax.f32 %v3515, 0.0
    %v3532 = vmax.f32 %v3516, 0.0
    %v3533 = vmax.f32 %v3517, 0.0
    %v3534 = vmax.f32 %v3518, 0.0
    %v3535 = vmax.f32 %v3519, 0.0
    %v3536 = vmax.f32 %v3520, 0.0
    %v3537 = vmax.f32 %v3521, 0.0
    %v3538 = vmax.f32 %v3522, 0.0
    %v3539 = vmax.f32 %v3523, 0.0
    %v3540 = vmax.f32 %v3524, 0.0
    %v3541 = vmax.f32 %v3525, 0.0
    %v3542 = vadd.s32 %v72, 16
    %v3543 = vadd.s32 %v1561, 16
    %vm3544 = vcmp.eq.s32.totalorder %v74, %v3542
    %vm3545 = vcmp.eq.s32.totalorder %v74, %v3543
    %vm3546 = vcmp.eq.s32.totalorder %v75, %v3542
    %vm3547 = vcmp.eq.s32.totalorder %v75, %v3543
    %vm3548 = vcmp.eq.s32.totalorder %v76, %v3542
    %vm3549 = vcmp.eq.s32.totalorder %v76, %v3543
    %vm3550 = vcmp.eq.s32.totalorder %v77, %v3542
    %vm3551 = vcmp.eq.s32.totalorder %v77, %v3543
    %vm3552 = vcmp.eq.s32.totalorder %v78, %v3542
    %vm3553 = vcmp.eq.s32.totalorder %v78, %v3543
    %vm3554 = vcmp.eq.s32.totalorder %v79, %v3542
    %vm3555 = vcmp.eq.s32.totalorder %v79, %v3543
    %vm3556 = vcmp.eq.s32.totalorder %v80, %v3542
    %vm3557 = vcmp.eq.s32.totalorder %v80, %v3543
    %vm3558 = vcmp.eq.s32.totalorder %v81, %v3542
    %vm3559 = vcmp.eq.s32.totalorder %v81, %v3543
    %vm3560 = vcmp.eq.s32.totalorder %v1541, %v3542
    %vm3561 = vcmp.eq.s32.totalorder %v1541, %v3543
    %vm3562 = vcmp.eq.s32.totalorder %v1542, %v3542
    %vm3563 = vcmp.eq.s32.totalorder %v1542, %v3543
    %vm3564 = vcmp.eq.s32.totalorder %v1543, %v3542
    %vm3565 = vcmp.eq.s32.totalorder %v1543, %v3543
    %vm3566 = vcmp.eq.s32.totalorder %v1544, %v3542
    %vm3567 = vcmp.eq.s32.totalorder %v1544, %v3543
    %vm3568 = vcmp.eq.s32.totalorder %v1545, %v3542
    %vm3569 = vcmp.eq.s32.totalorder %v1545, %v3543
    %vm3570 = vcmp.eq.s32.totalorder %v1546, %v3542
    %vm3571 = vcmp.eq.s32.totalorder %v1546, %v3543
    %vm3572 = vcmp.eq.s32.totalorder %v1547, %v3542
    %vm3573 = vcmp.eq.s32.totalorder %v1547, %v3543
    %vm3574 = vcmp.eq.s32.totalorder %v1548, %v3542
    %vm3575 = vcmp.eq.s32.totalorder %v1548, %v3543
    %vm3576 = vcmp.eq.s32.totalorder %v1549, %v3542
    %vm3577 = vcmp.eq.s32.totalorder %v1549, %v3543
    %vm3578 = vcmp.eq.s32.totalorder %v1550, %v3542
    %vm3579 = vcmp.eq.s32.totalorder %v1550, %v3543
    %vm3580 = vcmp.eq.s32.totalorder %v1551, %v3542
    %vm3581 = vcmp.eq.s32.totalorder %v1551, %v3543
    %vm3582 = vcmp.eq.s32.totalorder %v1552, %v3542
    %vm3583 = vcmp.eq.s32.totalorder %v1552, %v3543
    %v3584 = vsel %vm3544, 1, 0
    %v3585 = vsel %vm3545, 1, 0
    %v3586 = vsel %vm3546, 1, 0
    %v3587 = vsel %vm3547, 1, 0
    %v3588 = vsel %vm3548, 1, 0
    %v3589 = vsel %vm3549, 1, 0
    %v3590 = vsel %vm3550, 1, 0
    %v3591 = vsel %vm3551, 1, 0
    %v3592 = vsel %vm3552, 1, 0
    %v3593 = vsel %vm3553, 1, 0
    %v3594 = vsel %vm3554, 1, 0
    %v3595 = vsel %vm3555, 1, 0
    %v3596 = vsel %vm3556, 1, 0
    %v3597 = vsel %vm3557, 1, 0
    %v3598 = vsel %vm3558, 1, 0
    %v3599 = vsel %vm3559, 1, 0
    %v3600 = vsel %vm3560, 1, 0
    %v3601 = vsel %vm3561, 1, 0
    %v3602 = vsel %vm3562, 1, 0
    %v3603 = vsel %vm3563, 1, 0
    %v3604 = vsel %vm3564, 1, 0
    %v3605 = vsel %vm3565, 1, 0
    %v3606 = vsel %vm3566, 1, 0
    %v3607 = vsel %vm3567, 1, 0
    %v3608 = vsel %vm3568, 1, 0
    %v3609 = vsel %vm3569, 1, 0
    %v3610 = vsel %vm3570, 1, 0
    %v3611 = vsel %vm3571, 1, 0
    %v3612 = vsel %vm3572, 1, 0
    %v3613 = vsel %vm3573, 1, 0
    %v3614 = vsel %vm3574, 1, 0
    %v3615 = vsel %vm3575, 1, 0
    %v3616 = vsel %vm3576, 1, 0
    %v3617 = vsel %vm3577, 1, 0
    %v3618 = vsel %vm3578, 1, 0
    %v3619 = vsel %vm3579, 1, 0
    %v3620 = vsel %vm3580, 1, 0
    %v3621 = vsel %vm3581, 1, 0
    %v3622 = vsel %vm3582, 1, 0
    %v3623 = vsel %vm3583, 1, 0
    %v3624 = vcvt.s32.f32 %v3584
    %v3625 = vcvt.s32.f32 %v3585
    %v3626 = vcvt.s32.f32 %v3586
    %v3627 = vcvt.s32.f32 %v3587
    %v3628 = vcvt.s32.f32 %v3588
    %v3629 = vcvt.s32.f32 %v3589
    %v3630 = vcvt.s32.f32 %v3590
    %v3631 = vcvt.s32.f32 %v3591
    %v3632 = vcvt.s32.f32 %v3592
    %v3633 = vcvt.s32.f32 %v3593
    %v3634 = vcvt.s32.f32 %v3594
    %v3635 = vcvt.s32.f32 %v3595
    %v3636 = vcvt.s32.f32 %v3596
    %v3637 = vcvt.s32.f32 %v3597
    %v3638 = vcvt.s32.f32 %v3598
    %v3639 = vcvt.s32.f32 %v3599
    %v3640 = vcvt.s32.f32 %v3600
    %v3641 = vcvt.s32.f32 %v3601
    %v3642 = vcvt.s32.f32 %v3602
    %v3643 = vcvt.s32.f32 %v3603
    %v3644 = vcvt.s32.f32 %v3604
    %v3645 = vcvt.s32.f32 %v3605
    %v3646 = vcvt.s32.f32 %v3606
    %v3647 = vcvt.s32.f32 %v3607
    %v3648 = vcvt.s32.f32 %v3608
    %v3649 = vcvt.s32.f32 %v3609
    %v3650 = vcvt.s32.f32 %v3610
    %v3651 = vcvt.s32.f32 %v3611
    %v3652 = vcvt.s32.f32 %v3612
    %v3653 = vcvt.s32.f32 %v3613
    %v3654 = vcvt.s32.f32 %v3614
    %v3655 = vcvt.s32.f32 %v3615
    %v3656 = vcvt.s32.f32 %v3616
    %v3657 = vcvt.s32.f32 %v3617
    %v3658 = vcvt.s32.f32 %v3618
    %v3659 = vcvt.s32.f32 %v3619
    %v3660 = vcvt.s32.f32 %v3620
    %v3661 = vcvt.s32.f32 %v3621
    %v3662 = vcvt.s32.f32 %v3622
    %v3663 = vcvt.s32.f32 %v3623
    %vm3664 = vcmask 261120
    %v3666 = vsel %vm3664, %v3527, 0
    %v3669 = vsel %vm3664, %v3529, 0
    %v3672 = vsel %vm3664, %v3531, 0
    %v3675 = vsel %vm3664, %v3533, 0
    %v3678 = vsel %vm3664, %v3535, 0
    %v3681 = vsel %vm3664, %v3537, 0
    %v3684 = vsel %vm3664, %v3539, 0
    %v3687 = vsel %vm3664, %v3541, 0
    %3689 = vmatprep.subr.mxu0 %v3625
    %3690 = vmatpush1.msra.mxu0 %v3624
    %3691 = vmatprep.subr.mxu0 %v3627
    %3692 = vmatpush1.msra.mxu0 %v3626
    %3693 = vmatprep.subr.mxu0 %v3629
    %3694 = vmatpush1.msra.mxu0 %v3628
    %3695 = vmatprep.subr.mxu0 %v3631
    %3696 = vmatpush1.msra.mxu0 %v3630
    %3697 = vmatprep.subr.mxu0 %v3633
    %3698 = vmatpush1.msra.mxu0 %v3632
    %3699 = vmatprep.subr.mxu0 %v3635
    %3700 = vmatpush1.msra.mxu0 %v3634
    %3701 = vmatprep.subr.mxu0 %v3637
    %3702 = vmatpush1.msra.mxu0 %v3636
    %3703 = vmatprep.subr.mxu0 %v3639
    %3704 = vmatpush1.msra.mxu0 %v3638
    %3705 = vmatprep.subr.mxu0 %v3641
    %3706 = vmatpush1.msra.mxu0 %v3640
    %3707 = vmatprep.subr.mxu0 %v3643
    %3708 = vmatpush1.msra.mxu0 %v3642
    %3709 = vmatprep.subr.mxu0 %v3645
    %3710 = vmatpush1.msra.mxu0 %v3644
    %3711 = vmatprep.subr.mxu0 %v3647
    %3712 = vmatpush1.msra.mxu0 %v3646
    %3713 = vmatprep.subr.mxu0 %v3649
    %3714 = vmatpush1.msra.mxu0 %v3648
    %3715 = vmatprep.subr.mxu0 %v3651
    %3716 = vmatpush1.msra.mxu0 %v3650
    %3717 = vmatprep.subr.mxu0 %v3653
    %3718 = vmatpush1.msra.mxu0 %v3652
    %3719 = vmatprep.subr.mxu0 %v3655
    %3720 = vmatpush1.msra.mxu0 %v3654
    %3721 = vmatprep.subr.mxu0 %v3657
    %3722 = vmatpush1.msra.mxu0 %v3656
    %3723 = vmatprep.subr.mxu0 %v3659
    %3724 = vmatpush1.msra.mxu0 %v3658
    %3725 = vmatprep.subr.mxu0 %v3661
    %3726 = vmatpush1.msra.mxu0 %v3660
    %3727 = vmatprep.subr.mxu0 %v3663
    %3728 = vmatpush1.msra.mxu0 %v3662
    %3729 = vmatprep.subr.mxu0 0.0
    %3730 = vmatpush1.msra.mxu0 0.0
    %3731 = vmatprep.subr.mxu0 0.0
    %3732 = vmatpush1.msra.mxu0 0.0
    %3733 = vmatprep.subr.mxu0 0.0
    %3734 = vmatpush1.msra.mxu0 0.0
    %3735 = vmatprep.subr.mxu0 0.0
    %3736 = vmatpush1.msra.mxu0 0.0
    %3737 = vmatprep.subr.mxu0 0.0
    %3738 = vmatpush1.msra.mxu0 0.0
    %3739 = vmatprep.subr.mxu0 0.0
    %3740 = vmatpush1.msra.mxu0 0.0
    %3741 = vmatprep.subr.mxu0 0.0
    %3742 = vmatpush1.msra.mxu0 0.0
    %3743 = vmatprep.subr.mxu0 0.0
    %3744 = vmatpush1.msra.mxu0 0.0
    %3745 = vmatprep.subr.mxu0 0.0
    %3746 = vmatpush1.msra.mxu0 0.0
    %3747 = vmatprep.subr.mxu0 0.0
    %3748 = vmatpush1.msra.mxu0 0.0
    %3749 = vmatprep.subr.mxu0 0.0
    %3750 = vmatpush1.msra.mxu0 0.0
    %3751 = vmatprep.subr.mxu0 0.0
    %3752 = vmatpush1.msra.mxu0 0.0
    %3753 = vmatprep.mubr.f32.mxu0 %v3666
    %3754 = vmatmul.mubr.f32.gmra.mrb[0].mxu0 %v3526
    %v3755 = vpop.f32.mrb[0].mxu0
    %v3756 = vadd.f32 0.0, %v3755
    %v3757 = vpop.f32.mrb[0].mxu0
    %v3758 = vadd.f32 0.0, %v3757
    %3759 = vmatprep.mubr.f32.mxu0 %v3669
    %3760 = vmatmul.mubr.f32.gmra.mrb[0].mxu0 %v3528
    %v3761 = vpop.f32.mrb[0].mxu0
    %v3762 = vadd.f32 0.0, %v3761
    %v3763 = vpop.f32.mrb[0].mxu0
    %v3764 = vadd.f32 0.0, %v3763
    %3765 = vmatprep.mubr.f32.mxu0 %v3672
    %3766 = vmatmul.mubr.f32.gmra.mrb[0].mxu0 %v3530
    %v3767 = vpop.f32.mrb[0].mxu0
    %v3768 = vadd.f32 0.0, %v3767
    %v3769 = vpop.f32.mrb[0].mxu0
    %v3770 = vadd.f32 0.0, %v3769
    %3771 = vmatprep.mubr.f32.mxu0 %v3675
    %3772 = vmatmul.mubr.f32.gmra.mrb[0].mxu0 %v3532
    %v3773 = vpop.f32.mrb[0].mxu0
    %v3774 = vadd.f32 0.0, %v3773
    %v3775 = vpop.f32.mrb[0].mxu0
    %v3776 = vadd.f32 0.0, %v3775
    %3777 = vmatprep.mubr.f32.mxu0 %v3678
    %3778 = vmatmul.mubr.f32.gmra.mrb[0].mxu0 %v3534
    %v3779 = vpop.f32.mrb[0].mxu0
    %v3780 = vadd.f32 0.0, %v3779
    %v3781 = vpop.f32.mrb[0].mxu0
    %v3782 = vadd.f32 0.0, %v3781
    %3783 = vmatprep.mubr.f32.mxu0 %v3681
    %3784 = vmatmul.mubr.f32.gmra.mrb[0].mxu0 %v3536
    %v3785 = vpop.f32.mrb[0].mxu0
    %v3786 = vadd.f32 0.0, %v3785
    %v3787 = vpop.f32.mrb[0].mxu0
    %v3788 = vadd.f32 0.0, %v3787
    %3789 = vmatprep.mubr.f32.mxu0 %v3684
    %3790 = vmatmul.mubr.f32.gmra.mrb[0].mxu0 %v3538
    %v3791 = vpop.f32.mrb[0].mxu0
    %v3792 = vadd.f32 0.0, %v3791
    %v3793 = vpop.f32.mrb[0].mxu0
    %v3794 = vadd.f32 0.0, %v3793
    %3795 = vmatprep.mubr.f32.mxu0 %v3687
    %3796 = vmatmul.mubr.f32.gmra.mrb[0].mxu0 %v3540
    %v3797 = vpop.f32.mrb[0].mxu0
    %v3798 = vadd.f32 0.0, %v3797
    %v3799 = vpop.f32.mrb[0].mxu0
    %v3800 = vadd.f32 0.0, %v3799
    %3801 = vdwg.mxu0
    %v3802 = vmax.f32 %v3526, %v3756
    %v3803 = vmax.f32 %v3527, %v3758
    %v3804 = vmax.f32 %v3528, %v3762
    %v3805 = vmax.f32 %v3529, %v3764
    %v3806 = vmax.f32 %v3530, %v3768
    %v3807 = vmax.f32 %v3531, %v3770
    %v3808 = vmax.f32 %v3532, %v3774
    %v3809 = vmax.f32 %v3533, %v3776
    %v3810 = vmax.f32 %v3534, %v3780
    %v3811 = vmax.f32 %v3535, %v3782
    %v3812 = vmax.f32 %v3536, %v3786
    %v3813 = vmax.f32 %v3537, %v3788
    %v3814 = vmax.f32 %v3538, %v3792
    %v3815 = vmax.f32 %v3539, %v3794
    %v3816 = vmax.f32 %v3540, %v3798
    %v3817 = vmax.f32 %v3541, %v3800
    %3818 = vmatprep.subr.mxu0 %v3803
    %3819 = vmatpush1.msra.mxu0 %v3802
    %3820 = vmatprep.subr.mxu0 %v3805
    %3821 = vmatpush1.msra.mxu0 %v3804
    %3822 = vmatprep.subr.mxu0 %v3807
    %3823 = vmatpush1.msra.mxu0 %v3806
    %3824 = vmatprep.subr.mxu0 %v3809
    %3825 = vmatpush1.msra.mxu0 %v3808
    %3826 = vmatprep.subr.mxu0 %v3811
    %3827 = vmatpush1.msra.mxu0 %v3810
    %3828 = vmatprep.subr.mxu0 %v3813
    %3829 = vmatpush1.msra.mxu0 %v3812
    %3830 = vmatprep.subr.mxu0 %v3815
    %3831 = vmatpush1.msra.mxu0 %v3814
    %3832 = vmatprep.subr.mxu0 %v3817
    %3833 = vmatpush1.msra.mxu0 %v3816
    %3834 = vmatprep.subr.mxu0 0.0
    %3835 = vmatpush1.msra.mxu0 0.0
    %3836 = vmatprep.subr.mxu0 0.0
    %3837 = vmatpush1.msra.mxu0 0.0
    %3838 = vmatprep.subr.mxu0 0.0
    %3839 = vmatpush1.msra.mxu0 0.0
    %3840 = vmatprep.subr.mxu0 0.0
    %3841 = vmatpush1.msra.mxu0 0.0
    %3842 = vmatprep.subr.mxu0 0.0
    %3843 = vmatpush1.msra.mxu0 0.0
    %3844 = vmatprep.subr.mxu0 0.0
    %3845 = vmatpush1.msra.mxu0 0.0
    %3846 = vmatprep.subr.mxu0 0.0
    %3847 = vmatpush1.msra.mxu0 0.0
    %3848 = vmatprep.subr.mxu0 0.0
    %3849 = vmatpush1.msra.mxu0 0.0
    %3850 = vmatprep.subr.mxu0 0.0
    %3851 = vmatpush1.msra.mxu0 0.0
    %3852 = vmatprep.subr.mxu0 0.0
    %3853 = vmatpush1.msra.mxu0 0.0
    %3854 = vmatprep.subr.mxu0 0.0
    %3855 = vmatpush1.msra.mxu0 0.0
    %3856 = vmatprep.subr.mxu0 0.0
    %3857 = vmatpush1.msra.mxu0 0.0
    %3858 = vmatprep.subr.mxu0 0.0
    %3859 = vmatpush1.msra.mxu0 0.0
    %3860 = vmatprep.subr.mxu0 0.0
    %3861 = vmatpush1.msra.mxu0 0.0
    %3862 = vmatprep.subr.mxu0 0.0
    %3863 = vmatpush1.msra.mxu0 0.0
    %3864 = vmatprep.subr.mxu0 0.0
    %3865 = vmatpush1.msra.mxu0 0.0
    %3866 = vmatprep.subr.mxu0 0.0
    %3867 = vmatpush1.msra.mxu0 0.0
    %3868 = vmatprep.subr.mxu0 0.0
    %3869 = vmatpush1.msra.mxu0 0.0
    %3870 = vmatprep.subr.mxu0 0.0
    %3871 = vmatpush1.msra.mxu0 0.0
    %3872 = vmatprep.subr.mxu0 0.0
    %3873 = vmatpush1.msra.mxu0 0.0
    %3874 = vmatprep.subr.mxu0 0.0
    %3875 = vmatpush1.msra.mxu0 0.0
    %3876 = vmatprep.subr.mxu0 0.0
    %3877 = vmatpush1.msra.mxu0 0.0
    %3878 = vmatprep.subr.mxu0 0.0
    %3879 = vmatpush1.msra.mxu0 0.0
    %3880 = vmatprep.subr.mxu0 0.0
    %3881 = vmatpush1.msra.mxu0 0.0
    %3882 = vmatprep.mubr.f32.mxu0 0.0
    %3883 = vmatmul.mubr.f32.gmra.mrb[0].mxu0 %v699
    %v3884 = vpop.f32.mrb[0].mxu0
    %v3885 = vadd.f32 0.0, %v3884
    %v3886 = vpop.f32.mrb[0].mxu0
    %v3887 = vadd.f32 0.0, %v3886
    %3888 = vmatprep.mubr.f32.mxu0 0.0
    %3889 = vmatmul.mubr.f32.gmra.mrb[0].mxu0 %v702
    %v3890 = vpop.f32.mrb[0].mxu0
    %v3891 = vadd.f32 0.0, %v3890
    %v3892 = vpop.f32.mrb[0].mxu0
    %v3893 = vadd.f32 0.0, %v3892
    %3894 = vmatprep.mubr.f32.mxu0 0.0
    %3895 = vmatmul.mubr.f32.gmra.mrb[0].mxu0 %v705
    %v3896 = vpop.f32.mrb[0].mxu0
    %v3897 = vadd.f32 0.0, %v3896
    %v3898 = vpop.f32.mrb[0].mxu0
    %v3899 = vadd.f32 0.0, %v3898
    %3900 = vmatprep.mubr.f32.mxu0 0.0
    %3901 = vmatmul.mubr.f32.gmra.mrb[0].mxu0 %v708
    %v3902 = vpop.f32.mrb[0].mxu0
    %v3903 = vadd.f32 0.0, %v3902
    %v3904 = vpop.f32.mrb[0].mxu0
    %v3905 = vadd.f32 0.0, %v3904
    %3906 = vmatprep.mubr.f32.mxu0 0.0
    %3907 = vmatmul.mubr.f32.gmra.mrb[0].mxu0 %v711
    %v3908 = vpop.f32.mrb[0].mxu0
    %v3909 = vadd.f32 0.0, %v3908
    %v3910 = vpop.f32.mrb[0].mxu0
    %v3911 = vadd.f32 0.0, %v3910
    %3912 = vmatprep.mubr.f32.mxu0 0.0
    %3913 = vmatmul.mubr.f32.gmra.mrb[0].mxu0 %v714
    %v3914 = vpop.f32.mrb[0].mxu0
    %v3915 = vadd.f32 0.0, %v3914
    %v3916 = vpop.f32.mrb[0].mxu0
    %v3917 = vadd.f32 0.0, %v3916
    %3918 = vmatprep.mubr.f32.mxu0 0.0
    %3919 = vmatmul.mubr.f32.gmra.mrb[0].mxu0 %v717
    %v3920 = vpop.f32.mrb[0].mxu0
    %v3921 = vadd.f32 0.0, %v3920
    %v3922 = vpop.f32.mrb[0].mxu0
    %v3923 = vadd.f32 0.0, %v3922
    %3924 = vmatprep.mubr.f32.mxu0 0.0
    %3925 = vmatmul.mubr.f32.gmra.mrb[0].mxu0 %v720
    %v3926 = vpop.f32.mrb[0].mxu0
    %v3927 = vadd.f32 0.0, %v3926
    %v3928 = vpop.f32.mrb[0].mxu0
    %v3929 = vadd.f32 0.0, %v3928
    %3930 = vdwg.mxu0
    %v3931 = vmax.f32 %v3802, %v3885
    %v3932 = vmax.f32 %v3803, %v3887
    %v3933 = vmax.f32 %v3804, %v3891
    %v3934 = vmax.f32 %v3805, %v3893
    %v3935 = vmax.f32 %v3806, %v3897
    %v3936 = vmax.f32 %v3807, %v3899
    %v3937 = vmax.f32 %v3808, %v3903
    %v3938 = vmax.f32 %v3809, %v3905
    %v3939 = vmax.f32 %v3810, %v3909
    %v3940 = vmax.f32 %v3811, %v3911
    %v3941 = vmax.f32 %v3812, %v3915
    %v3942 = vmax.f32 %v3813, %v3917
    %v3943 = vmax.f32 %v3814, %v3921
    %v3944 = vmax.f32 %v3815, %v3923
    %v3945 = vmax.f32 %v3816, %v3927
    %v3946 = vmax.f32 %v3817, %v3929
    %v3947 = vmul.u32 %v74, 32
    %vm3948 = vcmp.eq.s32.totalorder %v72, %v3947
    %v3949 = vsel %vm3948, 1, 0
    %v3950 = vcvt.s32.f32 %v3949
    %v3952 = vsel %vm277, %v3950, 0
    %3954 = vmatprep.subr.mxu0 %v3932
    %3955 = vmatpush1.msra.mxu0 %v3931
    %3956 = vmatprep.subr.mxu0 %v3934
    %3957 = vmatpush1.msra.mxu0 %v3933
    %3958 = vmatprep.subr.mxu0 %v3936
    %3959 = vmatpush1.msra.mxu0 %v3935
    %3960 = vmatprep.subr.mxu0 %v3938
    %3961 = vmatpush1.msra.mxu0 %v3937
    %3962 = vmatprep.subr.mxu0 %v3940
    %3963 = vmatpush1.msra.mxu0 %v3939
    %3964 = vmatprep.subr.mxu0 %v3942
    %3965 = vmatpush1.msra.mxu0 %v3941
    %3966 = vmatprep.subr.mxu0 %v3944
    %3967 = vmatpush1.msra.mxu0 %v3943
    %3968 = vmatprep.subr.mxu0 %v3946
    %3969 = vmatpush1.msra.mxu0 %v3945
    %3970 = vmatprep.subr.mxu0 0.0
    %3971 = vmatpush1.msra.mxu0 0.0
    %3972 = vmatprep.subr.mxu0 0.0
    %3973 = vmatpush1.msra.mxu0 0.0
    %3974 = vmatprep.subr.mxu0 0.0
    %3975 = vmatpush1.msra.mxu0 0.0
    %3976 = vmatprep.subr.mxu0 0.0
    %3977 = vmatpush1.msra.mxu0 0.0
    %3978 = vmatprep.subr.mxu0 0.0
    %3979 = vmatpush1.msra.mxu0 0.0
    %3980 = vmatprep.subr.mxu0 0.0
    %3981 = vmatpush1.msra.mxu0 0.0
    %3982 = vmatprep.subr.mxu0 0.0
    %3983 = vmatpush1.msra.mxu0 0.0
    %3984 = vmatprep.subr.mxu0 0.0
    %3985 = vmatpush1.msra.mxu0 0.0
    %3986 = vmatprep.subr.mxu0 0.0
    %3987 = vmatpush1.msra.mxu0 0.0
    %3988 = vmatprep.subr.mxu0 0.0
    %3989 = vmatpush1.msra.mxu0 0.0
    %3990 = vmatprep.subr.mxu0 0.0
    %3991 = vmatpush1.msra.mxu0 0.0
    %3992 = vmatprep.subr.mxu0 0.0
    %3993 = vmatpush1.msra.mxu0 0.0
    %3994 = vmatprep.subr.mxu0 0.0
    %3995 = vmatpush1.msra.mxu0 0.0
    %3996 = vmatprep.subr.mxu0 0.0
    %3997 = vmatpush1.msra.mxu0 0.0
    %3998 = vmatprep.subr.mxu0 0.0
    %3999 = vmatpush1.msra.mxu0 0.0
    %4000 = vmatprep.subr.mxu0 0.0
    %4001 = vmatpush1.msra.mxu0 0.0
    %4002 = vmatprep.subr.mxu0 0.0
    %4003 = vmatpush1.msra.mxu0 0.0
    %4004 = vmatprep.subr.mxu0 0.0
    %4005 = vmatpush1.msra.mxu0 0.0
    %4006 = vmatprep.subr.mxu0 0.0
    %4007 = vmatpush1.msra.mxu0 0.0
    %4008 = vmatprep.subr.mxu0 0.0
    %4009 = vmatpush1.msra.mxu0 0.0
    %4010 = vmatprep.subr.mxu0 0.0
    %4011 = vmatpush1.msra.mxu0 0.0
    %4012 = vmatprep.subr.mxu0 0.0
    %4013 = vmatpush1.msra.mxu0 0.0
    %4014 = vmatprep.subr.mxu0 0.0
    %4015 = vmatpush1.msra.mxu0 0.0
    %4016 = vmatprep.subr.mxu0 0.0
    %4017 = vmatpush1.msra.mxu0 0.0
    %4018 = vmatprep.mubr.f32.mxu0 0.0
    %4019 = vmatmul.mubr.f32.gmra.mrb[0].mxu0 %v3952
    %v4020 = vpop.f32.mrb[0].mxu0
    %v4021 = vadd.f32 0.0, %v4020
    %v4022 = vpop.f32.mrb[0].mxu0
    %v4023 = vadd.f32 0.0, %v4022
    %4024 = vdwg.mxu0
    %v4025 = vld [vmem:[%s5] sm:$0xff]
    %v4026 = vld [vmem:[%s5 + $0x8] sm:$0xff]
    %v4027 = vld [vmem:[%s5 + $0x10] sm:$0xff]
    %v4028 = vld [vmem:[%s5 + $0x18] sm:$0xff]
    %v4029 = vld [vmem:[%s5 + $0x20] sm:$0xff]
    %v4030 = vld [vmem:[%s5 + $0x28] sm:$0xff]
    %v4031 = vld [vmem:[%s5 + $0x30] sm:$0xff]
    %v4032 = vld [vmem:[%s5 + $0x38] sm:$0xff]
    %v4033 = vld [vmem:[%s5 + $0x40] sm:$0xff]
    %v4034 = vld [vmem:[%s5 + $0x48] sm:$0xff]
    %v4035 = vld [vmem:[%s5 + $0x50] sm:$0xff]
    %v4036 = vld [vmem:[%s5 + $0x58] sm:$0xff]
    %v4037 = vld [vmem:[%s5 + $0x60] sm:$0xff]
    %v4038 = vld [vmem:[%s5 + $0x68] sm:$0xff]
    %v4039 = vld [vmem:[%s5 + $0x70] sm:$0xff]
    %v4040 = vld [vmem:[%s5 + $0x78] sm:$0xff]
    %v4041 = vld [vmem:[%s5 + $0x80] sm:$0xff]
    %v4042 = vld [vmem:[%s5 + $0x88] sm:$0xff]
    %v4043 = vld [vmem:[%s5 + $0x90] sm:$0xff]
    %v4044 = vld [vmem:[%s5 + $0x98] sm:$0xff]
    %v4045 = vadd.s32 %v3947, 4
    %vm4046 = vcmp.eq.s32.totalorder %v72, %v4045
    %v4047 = vsel %vm4046, 1, 0
    %v4048 = vcvt.s32.f32 %v4047
    %v4050 = vsel %vm277, %v4048, 0
    %4052 = vmatprep.subr.mxu0 %v3932
    %4053 = vmatpush1.msra.mxu0 %v3931
    %4054 = vmatprep.subr.mxu0 %v3934
    %4055 = vmatpush1.msra.mxu0 %v3933
    %4056 = vmatprep.subr.mxu0 %v3936
    %4057 = vmatpush1.msra.mxu0 %v3935
    %4058 = vmatprep.subr.mxu0 %v3938
    %4059 = vmatpush1.msra.mxu0 %v3937
    %4060 = vmatprep.subr.mxu0 %v3940
    %4061 = vmatpush1.msra.mxu0 %v3939
    %4062 = vmatprep.subr.mxu0 %v3942
    %4063 = vmatpush1.msra.mxu0 %v3941
    %4064 = vmatprep.subr.mxu0 %v3944
    %4065 = vmatpush1.msra.mxu0 %v3943
    %4066 = vmatprep.subr.mxu0 %v3946
    %4067 = vmatpush1.msra.mxu0 %v3945
    %4068 = vmatprep.subr.mxu0 0.0
    %4069 = vmatpush1.msra.mxu0 0.0
    %4070 = vmatprep.subr.mxu0 0.0
    %4071 = vmatpush1.msra.mxu0 0.0
    %4072 = vmatprep.subr.mxu0 0.0
    %4073 = vmatpush1.msra.mxu0 0.0
    %4074 = vmatprep.subr.mxu0 0.0
    %4075 = vmatpush1.msra.mxu0 0.0
    %4076 = vmatprep.subr.mxu0 0.0
    %4077 = vmatpush1.msra.mxu0 0.0
    %4078 = vmatprep.subr.mxu0 0.0
    %4079 = vmatpush1.msra.mxu0 0.0
    %4080 = vmatprep.subr.mxu0 0.0
    %4081 = vmatpush1.msra.mxu0 0.0
    %4082 = vmatprep.subr.mxu0 0.0
    %4083 = vmatpush1.msra.mxu0 0.0
    %4084 = vmatprep.subr.mxu0 0.0
    %4085 = vmatpush1.msra.mxu0 0.0
    %4086 = vmatprep.subr.mxu0 0.0
    %4087 = vmatpush1.msra.mxu0 0.0
    %4088 = vmatprep.subr.mxu0 0.0
    %4089 = vmatpush1.msra.mxu0 0.0
    %4090 = vmatprep.subr.mxu0 0.0
    %4091 = vmatpush1.msra.mxu0 0.0
    %4092 = vmatprep.subr.mxu0 0.0
    %4093 = vmatpush1.msra.mxu0 0.0
    %4094 = vmatprep.subr.mxu0 0.0
    %4095 = vmatpush1.msra.mxu0 0.0
    %4096 = vmatprep.subr.mxu0 0.0
    %4097 = vmatpush1.msra.mxu0 0.0
    %4098 = vmatprep.subr.mxu0 0.0
    %4099 = vmatpush1.msra.mxu0 0.0
    %4100 = vmatprep.subr.mxu0 0.0
    %4101 = vmatpush1.msra.mxu0 0.0
    %4102 = vmatprep.subr.mxu0 0.0
    %4103 = vmatpush1.msra.mxu0 0.0
    %4104 = vmatprep.subr.mxu0 0.0
    %4105 = vmatpush1.msra.mxu0 0.0
    %4106 = vmatprep.subr.mxu0 0.0
    %4107 = vmatpush1.msra.mxu0 0.0
    %4108 = vmatprep.subr.mxu0 0.0
    %4109 = vmatpush1.msra.mxu0 0.0
    %4110 = vmatprep.subr.mxu0 0.0
    %4111 = vmatpush1.msra.mxu0 0.0
    %4112 = vmatprep.subr.mxu0 0.0
    %4113 = vmatpush1.msra.mxu0 0.0
    %4114 = vmatprep.subr.mxu0 0.0
    %4115 = vmatpush1.msra.mxu0 0.0
    %4116 = vmatprep.mubr.f32.mxu0 0.0
    %4117 = vmatmul.mubr.f32.gmra.mrb[0].mxu0 %v4050
    %v4118 = vpop.f32.mrb[0].mxu0
    %v4119 = vadd.f32 0.0, %v4118
    %v4120 = vpop.f32.mrb[0].mxu0
    %v4121 = vadd.f32 0.0, %v4120
    %4122 = vdwg.mxu0
    %s4123 = scalar_lea.vmem %s5, 160
    %v4124 = vld [vmem:[%s4123] sm:$0xff]
    %v4125 = vld [vmem:[%s4123 + $0x8] sm:$0xff]
    %v4126 = vld [vmem:[%s4123 + $0x10] sm:$0xff]
    %v4127 = vld [vmem:[%s4123 + $0x18] sm:$0xff]
    %v4128 = vld [vmem:[%s4123 + $0x20] sm:$0xff]
    %v4129 = vld [vmem:[%s4123 + $0x28] sm:$0xff]
    %v4130 = vld [vmem:[%s4123 + $0x30] sm:$0xff]
    %v4131 = vld [vmem:[%s4123 + $0x38] sm:$0xff]
    %v4132 = vld [vmem:[%s4123 + $0x40] sm:$0xff]
    %v4133 = vld [vmem:[%s4123 + $0x48] sm:$0xff]
    %v4134 = vld [vmem:[%s4123 + $0x50] sm:$0xff]
    %v4135 = vld [vmem:[%s4123 + $0x58] sm:$0xff]
    %v4136 = vld [vmem:[%s4123 + $0x60] sm:$0xff]
    %v4137 = vld [vmem:[%s4123 + $0x68] sm:$0xff]
    %v4138 = vld [vmem:[%s4123 + $0x70] sm:$0xff]
    %v4139 = vld [vmem:[%s4123 + $0x78] sm:$0xff]
    %v4140 = vld [vmem:[%s4123 + $0x80] sm:$0xff]
    %v4141 = vld [vmem:[%s4123 + $0x88] sm:$0xff]
    %v4142 = vld [vmem:[%s4123 + $0x90] sm:$0xff]
    %v4143 = vld [vmem:[%s4123 + $0x98] sm:$0xff]
    %v4145 = vsel %vm3664, %v4121, 0
    %4147 = vmatprep.subr.mxu0 0.0
    %4148 = vmatpush1.msra.mxu0 %v4124
    %4149 = vmatprep.subr.mxu0 0.0
    %4150 = vmatpush1.msra.mxu0 %v4125
    %4151 = vmatprep.subr.mxu0 0.0
    %4152 = vmatpush1.msra.mxu0 %v4126
    %4153 = vmatprep.subr.mxu0 0.0
    %4154 = vmatpush1.msra.mxu0 %v4127
    %4155 = vmatprep.subr.mxu0 0.0
    %4156 = vmatpush1.msra.mxu0 %v4128
    %4157 = vmatprep.subr.mxu0 0.0
    %4158 = vmatpush1.msra.mxu0 %v4129
    %4159 = vmatprep.subr.mxu0 0.0
    %4160 = vmatpush1.msra.mxu0 %v4130
    %4161 = vmatprep.subr.mxu0 0.0
    %4162 = vmatpush1.msra.mxu0 %v4131
    %4163 = vmatprep.subr.mxu0 0.0
    %4164 = vmatpush1.msra.mxu0 %v4132
    %4165 = vmatprep.subr.mxu0 0.0
    %4166 = vmatpush1.msra.mxu0 %v4133
    %4167 = vmatprep.subr.mxu0 0.0
    %4168 = vmatpush1.msra.mxu0 %v4134
    %4169 = vmatprep.subr.mxu0 0.0
    %4170 = vmatpush1.msra.mxu0 %v4135
    %4171 = vmatprep.subr.mxu0 0.0
    %4172 = vmatpush1.msra.mxu0 %v4136
    %4173 = vmatprep.subr.mxu0 0.0
    %4174 = vmatpush1.msra.mxu0 %v4137
    %4175 = vmatprep.subr.mxu0 0.0
    %4176 = vmatpush1.msra.mxu0 %v4138
    %4177 = vmatprep.subr.mxu0 0.0
    %4178 = vmatpush1.msra.mxu0 %v4139
    %4179 = vmatprep.subr.mxu0 0.0
    %4180 = vmatpush1.msra.mxu0 %v4140
    %4181 = vmatprep.subr.mxu0 0.0
    %4182 = vmatpush1.msra.mxu0 %v4141
    %4183 = vmatprep.subr.mxu0 0.0
    %4184 = vmatpush1.msra.mxu0 %v4142
    %4185 = vmatprep.subr.mxu0 0.0
    %4186 = vmatpush1.msra.mxu0 %v4143
    %4187 = vmatprep.subr.mxu0 0.0
    %4188 = vmatpush1.msra.mxu0 0.0
    %4189 = vmatprep.subr.mxu0 0.0
    %4190 = vmatpush1.msra.mxu0 0.0
    %4191 = vmatprep.subr.mxu0 0.0
    %4192 = vmatpush1.msra.mxu0 0.0
    %4193 = vmatprep.subr.mxu0 0.0
    %4194 = vmatpush1.msra.mxu0 0.0
    %4195 = vmatprep.subr.mxu0 0.0
    %4196 = vmatpush1.msra.mxu0 0.0
    %4197 = vmatprep.subr.mxu0 0.0
    %4198 = vmatpush1.msra.mxu0 0.0
    %4199 = vmatprep.subr.mxu0 0.0
    %4200 = vmatpush1.msra.mxu0 0.0
    %4201 = vmatprep.subr.mxu0 0.0
    %4202 = vmatpush1.msra.mxu0 0.0
    %4203 = vmatprep.subr.mxu0 0.0
    %4204 = vmatpush1.msra.mxu0 0.0
    %4205 = vmatprep.subr.mxu0 0.0
    %4206 = vmatpush1.msra.mxu0 0.0
    %4207 = vmatprep.subr.mxu0 0.0
    %4208 = vmatpush1.msra.mxu0 0.0
    %4209 = vmatprep.subr.mxu0 0.0
    %4210 = vmatpush1.msra.mxu0 0.0
    %4211 = vmatprep.mubr.f32.mxu0 %v4145
    %4212 = vmatmul.mubr.f32.gmra.mrb[0].mxu0 %v4119
    %v4213 = vpop.f32.mrb[0].mxu0
    %v4214 = vadd.f32 0.0, %v4213
    %v4215 = vpop.f32.mrb[0].mxu0
    %4216 = vdwg.mxu0
    %v4218 = vsel %vm3664, %v4023, 0
    %4220 = vmatprep.subr.mxu0 0.0
    %4221 = vmatpush1.msra.mxu0 %v4025
    %4222 = vmatprep.subr.mxu0 0.0
    %4223 = vmatpush1.msra.mxu0 %v4026
    %4224 = vmatprep.subr.mxu0 0.0
    %4225 = vmatpush1.msra.mxu0 %v4027
    %4226 = vmatprep.subr.mxu0 0.0
    %4227 = vmatpush1.msra.mxu0 %v4028
    %4228 = vmatprep.subr.mxu0 0.0
    %4229 = vmatpush1.msra.mxu0 %v4029
    %4230 = vmatprep.subr.mxu0 0.0
    %4231 = vmatpush1.msra.mxu0 %v4030
    %4232 = vmatprep.subr.mxu0 0.0
    %4233 = vmatpush1.msra.mxu0 %v4031
    %4234 = vmatprep.subr.mxu0 0.0
    %4235 = vmatpush1.msra.mxu0 %v4032
    %4236 = vmatprep.subr.mxu0 0.0
    %4237 = vmatpush1.msra.mxu0 %v4033
    %4238 = vmatprep.subr.mxu0 0.0
    %4239 = vmatpush1.msra.mxu0 %v4034
    %4240 = vmatprep.subr.mxu0 0.0
    %4241 = vmatpush1.msra.mxu0 %v4035
    %4242 = vmatprep.subr.mxu0 0.0
    %4243 = vmatpush1.msra.mxu0 %v4036
    %4244 = vmatprep.subr.mxu0 0.0
    %4245 = vmatpush1.msra.mxu0 %v4037
    %4246 = vmatprep.subr.mxu0 0.0
    %4247 = vmatpush1.msra.mxu0 %v4038
    %4248 = vmatprep.subr.mxu0 0.0
    %4249 = vmatpush1.msra.mxu0 %v4039
    %4250 = vmatprep.subr.mxu0 0.0
    %4251 = vmatpush1.msra.mxu0 %v4040
    %4252 = vmatprep.subr.mxu0 0.0
    %4253 = vmatpush1.msra.mxu0 %v4041
    %4254 = vmatprep.subr.mxu0 0.0
    %4255 = vmatpush1.msra.mxu0 %v4042
    %4256 = vmatprep.subr.mxu0 0.0
    %4257 = vmatpush1.msra.mxu0 %v4043
    %4258 = vmatprep.subr.mxu0 0.0
    %4259 = vmatpush1.msra.mxu0 %v4044
    %4260 = vmatprep.subr.mxu0 0.0
    %4261 = vmatpush1.msra.mxu0 0.0
    %4262 = vmatprep.subr.mxu0 0.0
    %4263 = vmatpush1.msra.mxu0 0.0
    %4264 = vmatprep.subr.mxu0 0.0
    %4265 = vmatpush1.msra.mxu0 0.0
    %4266 = vmatprep.subr.mxu0 0.0
    %4267 = vmatpush1.msra.mxu0 0.0
    %4268 = vmatprep.subr.mxu0 0.0
    %4269 = vmatpush1.msra.mxu0 0.0
    %4270 = vmatprep.subr.mxu0 0.0
    %4271 = vmatpush1.msra.mxu0 0.0
    %4272 = vmatprep.subr.mxu0 0.0
    %4273 = vmatpush1.msra.mxu0 0.0
    %4274 = vmatprep.subr.mxu0 0.0
    %4275 = vmatpush1.msra.mxu0 0.0
    %4276 = vmatprep.subr.mxu0 0.0
    %4277 = vmatpush1.msra.mxu0 0.0
    %4278 = vmatprep.subr.mxu0 0.0
    %4279 = vmatpush1.msra.mxu0 0.0
    %4280 = vmatprep.subr.mxu0 0.0
    %4281 = vmatpush1.msra.mxu0 0.0
    %4282 = vmatprep.subr.mxu0 0.0
    %4283 = vmatpush1.msra.mxu0 0.0
    %4284 = vmatprep.mubr.f32.mxu0 %v4218
    %4285 = vmatmul.mubr.f32.gmra.mrb[0].mxu0 %v4021
    %v4286 = vpop.f32.mrb[0].mxu0
    %v4287 = vadd.f32 %v4214, %v4286
    %v4288 = vpop.f32.mrb[0].mxu0
    %4289 = vdwg.mxu0
    %v4290 = vadd.s32 %v3947, 8
    %vm4291 = vcmp.eq.s32.totalorder %v72, %v4290
    %v4292 = vsel %vm4291, 1, 0
    %v4293 = vcvt.s32.f32 %v4292
    %v4295 = vsel %vm277, %v4293, 0
    %4297 = vmatprep.subr.mxu0 %v3932
    %4298 = vmatpush1.msra.mxu0 %v3931
    %4299 = vmatprep.subr.mxu0 %v3934
    %4300 = vmatpush1.msra.mxu0 %v3933
    %4301 = vmatprep.subr.mxu0 %v3936
    %4302 = vmatpush1.msra.mxu0 %v3935
    %4303 = vmatprep.subr.mxu0 %v3938
    %4304 = vmatpush1.msra.mxu0 %v3937
    %4305 = vmatprep.subr.mxu0 %v3940
    %4306 = vmatpush1.msra.mxu0 %v3939
    %4307 = vmatprep.subr.mxu0 %v3942
    %4308 = vmatpush1.msra.mxu0 %v3941
    %4309 = vmatprep.subr.mxu0 %v3944
    %4310 = vmatpush1.msra.mxu0 %v3943
    %4311 = vmatprep.subr.mxu0 %v3946
    %4312 = vmatpush1.msra.mxu0 %v3945
    %4313 = vmatprep.subr.mxu0 0.0
    %4314 = vmatpush1.msra.mxu0 0.0
    %4315 = vmatprep.subr.mxu0 0.0
    %4316 = vmatpush1.msra.mxu0 0.0
    %4317 = vmatprep.subr.mxu0 0.0
    %4318 = vmatpush1.msra.mxu0 0.0
    %4319 = vmatprep.subr.mxu0 0.0
    %4320 = vmatpush1.msra.mxu0 0.0
    %4321 = vmatprep.subr.mxu0 0.0
    %4322 = vmatpush1.msra.mxu0 0.0
    %4323 = vmatprep.subr.mxu0 0.0
    %4324 = vmatpush1.msra.mxu0 0.0
    %4325 = vmatprep.subr.mxu0 0.0
    %4326 = vmatpush1.msra.mxu0 0.0
    %4327 = vmatprep.subr.mxu0 0.0
    %4328 = vmatpush1.msra.mxu0 0.0
    %4329 = vmatprep.subr.mxu0 0.0
    %4330 = vmatpush1.msra.mxu0 0.0
    %4331 = vmatprep.subr.mxu0 0.0
    %4332 = vmatpush1.msra.mxu0 0.0
    %4333 = vmatprep.subr.mxu0 0.0
    %4334 = vmatpush1.msra.mxu0 0.0
    %4335 = vmatprep.subr.mxu0 0.0
    %4336 = vmatpush1.msra.mxu0 0.0
    %4337 = vmatprep.subr.mxu0 0.0
    %4338 = vmatpush1.msra.mxu0 0.0
    %4339 = vmatprep.subr.mxu0 0.0
    %4340 = vmatpush1.msra.mxu0 0.0
    %4341 = vmatprep.subr.mxu0 0.0
    %4342 = vmatpush1.msra.mxu0 0.0
    %4343 = vmatprep.subr.mxu0 0.0
    %4344 = vmatpush1.msra.mxu0 0.0
    %4345 = vmatprep.subr.mxu0 0.0
    %4346 = vmatpush1.msra.mxu0 0.0
    %4347 = vmatprep.subr.mxu0 0.0
    %4348 = vmatpush1.msra.mxu0 0.0
    %4349 = vmatprep.subr.mxu0 0.0
    %4350 = vmatpush1.msra.mxu0 0.0
    %4351 = vmatprep.subr.mxu0 0.0
    %4352 = vmatpush1.msra.mxu0 0.0
    %4353 = vmatprep.subr.mxu0 0.0
    %4354 = vmatpush1.msra.mxu0 0.0
    %4355 = vmatprep.subr.mxu0 0.0
    %4356 = vmatpush1.msra.mxu0 0.0
    %4357 = vmatprep.subr.mxu0 0.0
    %4358 = vmatpush1.msra.mxu0 0.0
    %4359 = vmatprep.subr.mxu0 0.0
    %4360 = vmatpush1.msra.mxu0 0.0
    %4361 = vmatprep.mubr.f32.mxu0 0.0
    %4362 = vmatmul.mubr.f32.gmra.mrb[0].mxu0 %v4295
    %v4363 = vpop.f32.mrb[0].mxu0
    %v4364 = vadd.f32 0.0, %v4363
    %v4365 = vpop.f32.mrb[0].mxu0
    %v4366 = vadd.f32 0.0, %v4365
    %4367 = vdwg.mxu0
    %s4368 = scalar_lea.vmem %s5, 320
    %v4369 = vld [vmem:[%s4368] sm:$0xff]
    %v4370 = vld [vmem:[%s4368 + $0x8] sm:$0xff]
    %v4371 = vld [vmem:[%s4368 + $0x10] sm:$0xff]
    %v4372 = vld [vmem:[%s4368 + $0x18] sm:$0xff]
    %v4373 = vld [vmem:[%s4368 + $0x20] sm:$0xff]
    %v4374 = vld [vmem:[%s4368 + $0x28] sm:$0xff]
    %v4375 = vld [vmem:[%s4368 + $0x30] sm:$0xff]
    %v4376 = vld [vmem:[%s4368 + $0x38] sm:$0xff]
    %v4377 = vld [vmem:[%s4368 + $0x40] sm:$0xff]
    %v4378 = vld [vmem:[%s4368 + $0x48] sm:$0xff]
    %v4379 = vld [vmem:[%s4368 + $0x50] sm:$0xff]
    %v4380 = vld [vmem:[%s4368 + $0x58] sm:$0xff]
    %v4381 = vld [vmem:[%s4368 + $0x60] sm:$0xff]
    %v4382 = vld [vmem:[%s4368 + $0x68] sm:$0xff]
    %v4383 = vld [vmem:[%s4368 + $0x70] sm:$0xff]
    %v4384 = vld [vmem:[%s4368 + $0x78] sm:$0xff]
    %v4385 = vld [vmem:[%s4368 + $0x80] sm:$0xff]
    %v4386 = vld [vmem:[%s4368 + $0x88] sm:$0xff]
    %v4387 = vld [vmem:[%s4368 + $0x90] sm:$0xff]
    %v4388 = vld [vmem:[%s4368 + $0x98] sm:$0xff]
    %v4390 = vsel %vm3664, %v4366, 0
    %4392 = vmatprep.subr.mxu0 0.0
    %4393 = vmatpush1.msra.mxu0 %v4369
    %4394 = vmatprep.subr.mxu0 0.0
    %4395 = vmatpush1.msra.mxu0 %v4370
    %4396 = vmatprep.subr.mxu0 0.0
    %4397 = vmatpush1.msra.mxu0 %v4371
    %4398 = vmatprep.subr.mxu0 0.0
    %4399 = vmatpush1.msra.mxu0 %v4372
    %4400 = vmatprep.subr.mxu0 0.0
    %4401 = vmatpush1.msra.mxu0 %v4373
    %4402 = vmatprep.subr.mxu0 0.0
    %4403 = vmatpush1.msra.mxu0 %v4374
    %4404 = vmatprep.subr.mxu0 0.0
    %4405 = vmatpush1.msra.mxu0 %v4375
    %4406 = vmatprep.subr.mxu0 0.0
    %4407 = vmatpush1.msra.mxu0 %v4376
    %4408 = vmatprep.subr.mxu0 0.0
    %4409 = vmatpush1.msra.mxu0 %v4377
    %4410 = vmatprep.subr.mxu0 0.0
    %4411 = vmatpush1.msra.mxu0 %v4378
    %4412 = vmatprep.subr.mxu0 0.0
    %4413 = vmatpush1.msra.mxu0 %v4379
    %4414 = vmatprep.subr.mxu0 0.0
    %4415 = vmatpush1.msra.mxu0 %v4380
    %4416 = vmatprep.subr.mxu0 0.0
    %4417 = vmatpush1.msra.mxu0 %v4381
    %4418 = vmatprep.subr.mxu0 0.0
    %4419 = vmatpush1.msra.mxu0 %v4382
    %4420 = vmatprep.subr.mxu0 0.0
    %4421 = vmatpush1.msra.mxu0 %v4383
    %4422 = vmatprep.subr.mxu0 0.0
    %4423 = vmatpush1.msra.mxu0 %v4384
    %4424 = vmatprep.subr.mxu0 0.0
    %4425 = vmatpush1.msra.mxu0 %v4385
    %4426 = vmatprep.subr.mxu0 0.0
    %4427 = vmatpush1.msra.mxu0 %v4386
    %4428 = vmatprep.subr.mxu0 0.0
    %4429 = vmatpush1.msra.mxu0 %v4387
    %4430 = vmatprep.subr.mxu0 0.0
    %4431 = vmatpush1.msra.mxu0 %v4388
    %4432 = vmatprep.subr.mxu0 0.0
    %4433 = vmatpush1.msra.mxu0 0.0
    %4434 = vmatprep.subr.mxu0 0.0
    %4435 = vmatpush1.msra.mxu0 0.0
    %4436 = vmatprep.subr.mxu0 0.0
    %4437 = vmatpush1.msra.mxu0 0.0
    %4438 = vmatprep.subr.mxu0 0.0
    %4439 = vmatpush1.msra.mxu0 0.0
    %4440 = vmatprep.subr.mxu0 0.0
    %4441 = vmatpush1.msra.mxu0 0.0
    %4442 = vmatprep.subr.mxu0 0.0
    %4443 = vmatpush1.msra.mxu0 0.0
    %4444 = vmatprep.subr.mxu0 0.0
    %4445 = vmatpush1.msra.mxu0 0.0
    %4446 = vmatprep.subr.mxu0 0.0
    %4447 = vmatpush1.msra.mxu0 0.0
    %4448 = vmatprep.subr.mxu0 0.0
    %4449 = vmatpush1.msra.mxu0 0.0
    %4450 = vmatprep.subr.mxu0 0.0
    %4451 = vmatpush1.msra.mxu0 0.0
    %4452 = vmatprep.subr.mxu0 0.0
    %4453 = vmatpush1.msra.mxu0 0.0
    %4454 = vmatprep.subr.mxu0 0.0
    %4455 = vmatpush1.msra.mxu0 0.0
    %4456 = vmatprep.mubr.f32.mxu0 %v4390
    %4457 = vmatmul.mubr.f32.gmra.mrb[0].mxu0 %v4364
    %v4458 = vpop.f32.mrb[0].mxu0
    %v4459 = vadd.f32 0.0, %v4458
    %v4460 = vpop.f32.mrb[0].mxu0
    %4461 = vdwg.mxu0
    %v4462 = vadd.f32 %v4287, %v4459
    %v4463 = vadd.s32 %v3947, 12
    %vm4464 = vcmp.eq.s32.totalorder %v72, %v4463
    %v4465 = vsel %vm4464, 1, 0
    %v4466 = vcvt.s32.f32 %v4465
    %v4468 = vsel %vm277, %v4466, 0
    %4470 = vmatprep.subr.mxu0 %v3932
    %4471 = vmatpush1.msra.mxu0 %v3931
    %4472 = vmatprep.subr.mxu0 %v3934
    %4473 = vmatpush1.msra.mxu0 %v3933
    %4474 = vmatprep.subr.mxu0 %v3936
    %4475 = vmatpush1.msra.mxu0 %v3935
    %4476 = vmatprep.subr.mxu0 %v3938
    %4477 = vmatpush1.msra.mxu0 %v3937
    %4478 = vmatprep.subr.mxu0 %v3940
    %4479 = vmatpush1.msra.mxu0 %v3939
    %4480 = vmatprep.subr.mxu0 %v3942
    %4481 = vmatpush1.msra.mxu0 %v3941
    %4482 = vmatprep.subr.mxu0 %v3944
    %4483 = vmatpush1.msra.mxu0 %v3943
    %4484 = vmatprep.subr.mxu0 %v3946
    %4485 = vmatpush1.msra.mxu0 %v3945
    %4486 = vmatprep.subr.mxu0 0.0
    %4487 = vmatpush1.msra.mxu0 0.0
    %4488 = vmatprep.subr.mxu0 0.0
    %4489 = vmatpush1.msra.mxu0 0.0
    %4490 = vmatprep.subr.mxu0 0.0
    %4491 = vmatpush1.msra.mxu0 0.0
    %4492 = vmatprep.subr.mxu0 0.0
    %4493 = vmatpush1.msra.mxu0 0.0
    %4494 = vmatprep.subr.mxu0 0.0
    %4495 = vmatpush1.msra.mxu0 0.0
    %4496 = vmatprep.subr.mxu0 0.0
    %4497 = vmatpush1.msra.mxu0 0.0
    %4498 = vmatprep.subr.mxu0 0.0
    %4499 = vmatpush1.msra.mxu0 0.0
    %4500 = vmatprep.subr.mxu0 0.0
    %4501 = vmatpush1.msra.mxu0 0.0
    %4502 = vmatprep.subr.mxu0 0.0
    %4503 = vmatpush1.msra.mxu0 0.0
    %4504 = vmatprep.subr.mxu0 0.0
    %4505 = vmatpush1.msra.mxu0 0.0
    %4506 = vmatprep.subr.mxu0 0.0
    %4507 = vmatpush1.msra.mxu0 0.0
    %4508 = vmatprep.subr.mxu0 0.0
    %4509 = vmatpush1.msra.mxu0 0.0
    %4510 = vmatprep.subr.mxu0 0.0
    %4511 = vmatpush1.msra.mxu0 0.0
    %4512 = vmatprep.subr.mxu0 0.0
    %4513 = vmatpush1.msra.mxu0 0.0
    %4514 = vmatprep.subr.mxu0 0.0
    %4515 = vmatpush1.msra.mxu0 0.0
    %4516 = vmatprep.subr.mxu0 0.0
    %4517 = vmatpush1.msra.mxu0 0.0
    %4518 = vmatprep.subr.mxu0 0.0
    %4519 = vmatpush1.msra.mxu0 0.0
    %4520 = vmatprep.subr.mxu0 0.0
    %4521 = vmatpush1.msra.mxu0 0.0
    %4522 = vmatprep.subr.mxu0 0.0
    %4523 = vmatpush1.msra.mxu0 0.0
    %4524 = vmatprep.subr.mxu0 0.0
    %4525 = vmatpush1.msra.mxu0 0.0
    %4526 = vmatprep.subr.mxu0 0.0
    %4527 = vmatpush1.msra.mxu0 0.0
    %4528 = vmatprep.subr.mxu0 0.0
    %4529 = vmatpush1.msra.mxu0 0.0
    %4530 = vmatprep.subr.mxu0 0.0
    %4531 = vmatpush1.msra.mxu0 0.0
    %4532 = vmatprep.subr.mxu0 0.0
    %4533 = vmatpush1.msra.mxu0 0.0
    %4534 = vmatprep.mubr.f32.mxu0 0.0
    %4535 = vmatmul.mubr.f32.gmra.mrb[0].mxu0 %v4468
    %v4536 = vpop.f32.mrb[0].mxu0
    %v4537 = vadd.f32 0.0, %v4536
    %v4538 = vpop.f32.mrb[0].mxu0
    %v4539 = vadd.f32 0.0, %v4538
    %4540 = vdwg.mxu0
    %s4541 = scalar_lea.vmem %s5, 480
    %v4542 = vld [vmem:[%s4541] sm:$0xff]
    %v4543 = vld [vmem:[%s4541 + $0x8] sm:$0xff]
    %v4544 = vld [vmem:[%s4541 + $0x10] sm:$0xff]
    %v4545 = vld [vmem:[%s4541 + $0x18] sm:$0xff]
    %v4546 = vld [vmem:[%s4541 + $0x20] sm:$0xff]
    %v4547 = vld [vmem:[%s4541 + $0x28] sm:$0xff]
    %v4548 = vld [vmem:[%s4541 + $0x30] sm:$0xff]
    %v4549 = vld [vmem:[%s4541 + $0x38] sm:$0xff]
    %v4550 = vld [vmem:[%s4541 + $0x40] sm:$0xff]
    %v4551 = vld [vmem:[%s4541 + $0x48] sm:$0xff]
    %v4552 = vld [vmem:[%s4541 + $0x50] sm:$0xff]
    %v4553 = vld [vmem:[%s4541 + $0x58] sm:$0xff]
    %v4554 = vld [vmem:[%s4541 + $0x60] sm:$0xff]
    %v4555 = vld [vmem:[%s4541 + $0x68] sm:$0xff]
    %v4556 = vld [vmem:[%s4541 + $0x70] sm:$0xff]
    %v4557 = vld [vmem:[%s4541 + $0x78] sm:$0xff]
    %v4558 = vld [vmem:[%s4541 + $0x80] sm:$0xff]
    %v4559 = vld [vmem:[%s4541 + $0x88] sm:$0xff]
    %v4560 = vld [vmem:[%s4541 + $0x90] sm:$0xff]
    %v4561 = vld [vmem:[%s4541 + $0x98] sm:$0xff]
    %v4563 = vsel %vm3664, %v4539, 0
    %4565 = vmatprep.subr.mxu0 0.0
    %4566 = vmatpush1.msra.mxu0 %v4542
    %4567 = vmatprep.subr.mxu0 0.0
    %4568 = vmatpush1.msra.mxu0 %v4543
    %4569 = vmatprep.subr.mxu0 0.0
    %4570 = vmatpush1.msra.mxu0 %v4544
    %4571 = vmatprep.subr.mxu0 0.0
    %4572 = vmatpush1.msra.mxu0 %v4545
    %4573 = vmatprep.subr.mxu0 0.0
    %4574 = vmatpush1.msra.mxu0 %v4546
    %4575 = vmatprep.subr.mxu0 0.0
    %4576 = vmatpush1.msra.mxu0 %v4547
    %4577 = vmatprep.subr.mxu0 0.0
    %4578 = vmatpush1.msra.mxu0 %v4548
    %4579 = vmatprep.subr.mxu0 0.0
    %4580 = vmatpush1.msra.mxu0 %v4549
    %4581 = vmatprep.subr.mxu0 0.0
    %4582 = vmatpush1.msra.mxu0 %v4550
    %4583 = vmatprep.subr.mxu0 0.0
    %4584 = vmatpush1.msra.mxu0 %v4551
    %4585 = vmatprep.subr.mxu0 0.0
    %4586 = vmatpush1.msra.mxu0 %v4552
    %4587 = vmatprep.subr.mxu0 0.0
    %4588 = vmatpush1.msra.mxu0 %v4553
    %4589 = vmatprep.subr.mxu0 0.0
    %4590 = vmatpush1.msra.mxu0 %v4554
    %4591 = vmatprep.subr.mxu0 0.0
    %4592 = vmatpush1.msra.mxu0 %v4555
    %4593 = vmatprep.subr.mxu0 0.0
    %4594 = vmatpush1.msra.mxu0 %v4556
    %4595 = vmatprep.subr.mxu0 0.0
    %4596 = vmatpush1.msra.mxu0 %v4557
    %4597 = vmatprep.subr.mxu0 0.0
    %4598 = vmatpush1.msra.mxu0 %v4558
    %4599 = vmatprep.subr.mxu0 0.0
    %4600 = vmatpush1.msra.mxu0 %v4559
    %4601 = vmatprep.subr.mxu0 0.0
    %4602 = vmatpush1.msra.mxu0 %v4560
    %4603 = vmatprep.subr.mxu0 0.0
    %4604 = vmatpush1.msra.mxu0 %v4561
    %4605 = vmatprep.subr.mxu0 0.0
    %4606 = vmatpush1.msra.mxu0 0.0
    %4607 = vmatprep.subr.mxu0 0.0
    %4608 = vmatpush1.msra.mxu0 0.0
    %4609 = vmatprep.subr.mxu0 0.0
    %4610 = vmatpush1.msra.mxu0 0.0
    %4611 = vmatprep.subr.mxu0 0.0
    %4612 = vmatpush1.msra.mxu0 0.0
    %4613 = vmatprep.subr.mxu0 0.0
    %4614 = vmatpush1.msra.mxu0 0.0
    %4615 = vmatprep.subr.mxu0 0.0
    %4616 = vmatpush1.msra.mxu0 0.0
    %4617 = vmatprep.subr.mxu0 0.0
    %4618 = vmatpush1.msra.mxu0 0.0
    %4619 = vmatprep.subr.mxu0 0.0
    %4620 = vmatpush1.msra.mxu0 0.0
    %4621 = vmatprep.subr.mxu0 0.0
    %4622 = vmatpush1.msra.mxu0 0.0
    %4623 = vmatprep.subr.mxu0 0.0
    %4624 = vmatpush1.msra.mxu0 0.0
    %4625 = vmatprep.subr.mxu0 0.0
    %4626 = vmatpush1.msra.mxu0 0.0
    %4627 = vmatprep.subr.mxu0 0.0
    %4628 = vmatpush1.msra.mxu0 0.0
    %4629 = vmatprep.mubr.f32.mxu0 %v4563
    %4630 = vmatmul.mubr.f32.gmra.mrb[0].mxu0 %v4537
    %v4631 = vpop.f32.mrb[0].mxu0
    %v4632 = vadd.f32 0.0, %v4631
    %v4633 = vpop.f32.mrb[0].mxu0
    %4634 = vdwg.mxu0
    %v4635 = vadd.f32 %v4462, %v4632
    %v4636 = vadd.s32 %v3947, 16
    %vm4637 = vcmp.eq.s32.totalorder %v72, %v4636
    %v4638 = vsel %vm4637, 1, 0
    %v4639 = vcvt.s32.f32 %v4638
    %v4641 = vsel %vm277, %v4639, 0
    %4643 = vmatprep.subr.mxu0 %v3932
    %4644 = vmatpush1.msra.mxu0 %v3931
    %4645 = vmatprep.subr.mxu0 %v3934
    %4646 = vmatpush1.msra.mxu0 %v3933
    %4647 = vmatprep.subr.mxu0 %v3936
    %4648 = vmatpush1.msra.mxu0 %v3935
    %4649 = vmatprep.subr.mxu0 %v3938
    %4650 = vmatpush1.msra.mxu0 %v3937
    %4651 = vmatprep.subr.mxu0 %v3940
    %4652 = vmatpush1.msra.mxu0 %v3939
    %4653 = vmatprep.subr.mxu0 %v3942
    %4654 = vmatpush1.msra.mxu0 %v3941
    %4655 = vmatprep.subr.mxu0 %v3944
    %4656 = vmatpush1.msra.mxu0 %v3943
    %4657 = vmatprep.subr.mxu0 %v3946
    %4658 = vmatpush1.msra.mxu0 %v3945
    %4659 = vmatprep.subr.mxu0 0.0
    %4660 = vmatpush1.msra.mxu0 0.0
    %4661 = vmatprep.subr.mxu0 0.0
    %4662 = vmatpush1.msra.mxu0 0.0
    %4663 = vmatprep.subr.mxu0 0.0
    %4664 = vmatpush1.msra.mxu0 0.0
    %4665 = vmatprep.subr.mxu0 0.0
    %4666 = vmatpush1.msra.mxu0 0.0
    %4667 = vmatprep.subr.mxu0 0.0
    %4668 = vmatpush1.msra.mxu0 0.0
    %4669 = vmatprep.subr.mxu0 0.0
    %4670 = vmatpush1.msra.mxu0 0.0
    %4671 = vmatprep.subr.mxu0 0.0
    %4672 = vmatpush1.msra.mxu0 0.0
    %4673 = vmatprep.subr.mxu0 0.0
    %4674 = vmatpush1.msra.mxu0 0.0
    %4675 = vmatprep.subr.mxu0 0.0
    %4676 = vmatpush1.msra.mxu0 0.0
    %4677 = vmatprep.subr.mxu0 0.0
    %4678 = vmatpush1.msra.mxu0 0.0
    %4679 = vmatprep.subr.mxu0 0.0
    %4680 = vmatpush1.msra.mxu0 0.0
    %4681 = vmatprep.subr.mxu0 0.0
    %4682 = vmatpush1.msra.mxu0 0.0
    %4683 = vmatprep.subr.mxu0 0.0
    %4684 = vmatpush1.msra.mxu0 0.0
    %4685 = vmatprep.subr.mxu0 0.0
    %4686 = vmatpush1.msra.mxu0 0.0
    %4687 = vmatprep.subr.mxu0 0.0
    %4688 = vmatpush1.msra.mxu0 0.0
    %4689 = vmatprep.subr.mxu0 0.0
    %4690 = vmatpush1.msra.mxu0 0.0
    %4691 = vmatprep.subr.mxu0 0.0
    %4692 = vmatpush1.msra.mxu0 0.0
    %4693 = vmatprep.subr.mxu0 0.0
    %4694 = vmatpush1.msra.mxu0 0.0
    %4695 = vmatprep.subr.mxu0 0.0
    %4696 = vmatpush1.msra.mxu0 0.0
    %4697 = vmatprep.subr.mxu0 0.0
    %4698 = vmatpush1.msra.mxu0 0.0
    %4699 = vmatprep.subr.mxu0 0.0
    %4700 = vmatpush1.msra.mxu0 0.0
    %4701 = vmatprep.subr.mxu0 0.0
    %4702 = vmatpush1.msra.mxu0 0.0
    %4703 = vmatprep.subr.mxu0 0.0
    %4704 = vmatpush1.msra.mxu0 0.0
    %4705 = vmatprep.subr.mxu0 0.0
    %4706 = vmatpush1.msra.mxu0 0.0
    %4707 = vmatprep.mubr.f32.mxu0 0.0
    %4708 = vmatmul.mubr.f32.gmra.mrb[0].mxu0 %v4641
    %v4709 = vpop.f32.mrb[0].mxu0
    %v4710 = vadd.f32 0.0, %v4709
    %v4711 = vpop.f32.mrb[0].mxu0
    %v4712 = vadd.f32 0.0, %v4711
    %4713 = vdwg.mxu0
    %s4714 = scalar_lea.vmem %s5, 640
    %v4715 = vld [vmem:[%s4714] sm:$0xff]
    %v4716 = vld [vmem:[%s4714 + $0x8] sm:$0xff]
    %v4717 = vld [vmem:[%s4714 + $0x10] sm:$0xff]
    %v4718 = vld [vmem:[%s4714 + $0x18] sm:$0xff]
    %v4719 = vld [vmem:[%s4714 + $0x20] sm:$0xff]
    %v4720 = vld [vmem:[%s4714 + $0x28] sm:$0xff]
    %v4721 = vld [vmem:[%s4714 + $0x30] sm:$0xff]
    %v4722 = vld [vmem:[%s4714 + $0x38] sm:$0xff]
    %v4723 = vld [vmem:[%s4714 + $0x40] sm:$0xff]
    %v4724 = vld [vmem:[%s4714 + $0x48] sm:$0xff]
    %v4725 = vld [vmem:[%s4714 + $0x50] sm:$0xff]
    %v4726 = vld [vmem:[%s4714 + $0x58] sm:$0xff]
    %v4727 = vld [vmem:[%s4714 + $0x60] sm:$0xff]
    %v4728 = vld [vmem:[%s4714 + $0x68] sm:$0xff]
    %v4729 = vld [vmem:[%s4714 + $0x70] sm:$0xff]
    %v4730 = vld [vmem:[%s4714 + $0x78] sm:$0xff]
    %v4731 = vld [vmem:[%s4714 + $0x80] sm:$0xff]
    %v4732 = vld [vmem:[%s4714 + $0x88] sm:$0xff]
    %v4733 = vld [vmem:[%s4714 + $0x90] sm:$0xff]
    %v4734 = vld [vmem:[%s4714 + $0x98] sm:$0xff]
    %v4736 = vsel %vm3664, %v4712, 0
    %4738 = vmatprep.subr.mxu0 0.0
    %4739 = vmatpush1.msra.mxu0 %v4715
    %4740 = vmatprep.subr.mxu0 0.0
    %4741 = vmatpush1.msra.mxu0 %v4716
    %4742 = vmatprep.subr.mxu0 0.0
    %4743 = vmatpush1.msra.mxu0 %v4717
    %4744 = vmatprep.subr.mxu0 0.0
    %4745 = vmatpush1.msra.mxu0 %v4718
    %4746 = vmatprep.subr.mxu0 0.0
    %4747 = vmatpush1.msra.mxu0 %v4719
    %4748 = vmatprep.subr.mxu0 0.0
    %4749 = vmatpush1.msra.mxu0 %v4720
    %4750 = vmatprep.subr.mxu0 0.0
    %4751 = vmatpush1.msra.mxu0 %v4721
    %4752 = vmatprep.subr.mxu0 0.0
    %4753 = vmatpush1.msra.mxu0 %v4722
    %4754 = vmatprep.subr.mxu0 0.0
    %4755 = vmatpush1.msra.mxu0 %v4723
    %4756 = vmatprep.subr.mxu0 0.0
    %4757 = vmatpush1.msra.mxu0 %v4724
    %4758 = vmatprep.subr.mxu0 0.0
    %4759 = vmatpush1.msra.mxu0 %v4725
    %4760 = vmatprep.subr.mxu0 0.0
    %4761 = vmatpush1.msra.mxu0 %v4726
    %4762 = vmatprep.subr.mxu0 0.0
    %4763 = vmatpush1.msra.mxu0 %v4727
    %4764 = vmatprep.subr.mxu0 0.0
    %4765 = vmatpush1.msra.mxu0 %v4728
    %4766 = vmatprep.subr.mxu0 0.0
    %4767 = vmatpush1.msra.mxu0 %v4729
    %4768 = vmatprep.subr.mxu0 0.0
    %4769 = vmatpush1.msra.mxu0 %v4730
    %4770 = vmatprep.subr.mxu0 0.0
    %4771 = vmatpush1.msra.mxu0 %v4731
    %4772 = vmatprep.subr.mxu0 0.0
    %4773 = vmatpush1.msra.mxu0 %v4732
    %4774 = vmatprep.subr.mxu0 0.0
    %4775 = vmatpush1.msra.mxu0 %v4733
    %4776 = vmatprep.subr.mxu0 0.0
    %4777 = vmatpush1.msra.mxu0 %v4734
    %4778 = vmatprep.subr.mxu0 0.0
    %4779 = vmatpush1.msra.mxu0 0.0
    %4780 = vmatprep.subr.mxu0 0.0
    %4781 = vmatpush1.msra.mxu0 0.0
    %4782 = vmatprep.subr.mxu0 0.0
    %4783 = vmatpush1.msra.mxu0 0.0
    %4784 = vmatprep.subr.mxu0 0.0
    %4785 = vmatpush1.msra.mxu0 0.0
    %4786 = vmatprep.subr.mxu0 0.0
    %4787 = vmatpush1.msra.mxu0 0.0
    %4788 = vmatprep.subr.mxu0 0.0
    %4789 = vmatpush1.msra.mxu0 0.0
    %4790 = vmatprep.subr.mxu0 0.0
    %4791 = vmatpush1.msra.mxu0 0.0
    %4792 = vmatprep.subr.mxu0 0.0
    %4793 = vmatpush1.msra.mxu0 0.0
    %4794 = vmatprep.subr.mxu0 0.0
    %4795 = vmatpush1.msra.mxu0 0.0
    %4796 = vmatprep.subr.mxu0 0.0
    %4797 = vmatpush1.msra.mxu0 0.0
    %4798 = vmatprep.subr.mxu0 0.0
    %4799 = vmatpush1.msra.mxu0 0.0
    %4800 = vmatprep.subr.mxu0 0.0
    %4801 = vmatpush1.msra.mxu0 0.0
    %4802 = vmatprep.mubr.f32.mxu0 %v4736
    %4803 = vmatmul.mubr.f32.gmra.mrb[0].mxu0 %v4710
    %v4804 = vpop.f32.mrb[0].mxu0
    %v4805 = vadd.f32 0.0, %v4804
    %v4806 = vpop.f32.mrb[0].mxu0
    %4807 = vdwg.mxu0
    %v4808 = vadd.f32 %v4635, %v4805
    %v4809 = vld [vmem:[%s6] sm:$0x1]
    %v4811 = vlaneseq
    %v4812 = vshrl.u32 %v4811, 7
    %v4813 = vsub.s32 0, %v4812
    %v4814 = vrot.slane %v4809, %v4813
    %v4816 = vadd.f32 %v4808, %v4814
    %v4817 = vmax.f32 %v4816, 0.0
    %v4818 = vld [vmem:[%s7] sm:$0xff]
    %v4819 = vld [vmem:[%s7 + $0x8] sm:$0xff]
    %v4820 = vld [vmem:[%s7 + $0x10] sm:$0xff]
    %v4821 = vld [vmem:[%s7 + $0x18] sm:$0xff]
    %v4822 = vld [vmem:[%s7 + $0x20] sm:$0xff]
    %v4823 = vld [vmem:[%s7 + $0x28] sm:$0xff]
    %v4824 = vld [vmem:[%s7 + $0x30] sm:$0xff]
    %v4825 = vld [vmem:[%s7 + $0x38] sm:$0xff]
    %v4826 = vld [vmem:[%s7 + $0x40] sm:$0xff]
    %v4827 = vld [vmem:[%s7 + $0x48] sm:$0xff]
    %v4828 = vld [vmem:[%s7 + $0x50] sm:$0xff]
    %v4829 = vld [vmem:[%s7 + $0x58] sm:$0xff]
    %v4830 = vld [vmem:[%s7 + $0x60] sm:$0xff]
    %v4831 = vld [vmem:[%s7 + $0x68] sm:$0xff]
    %v4832 = vld [vmem:[%s7 + $0x70] sm:$0xff]
    %v4833 = vld [vmem:[%s7 + $0x78] sm:$0xff]
    %v4834 = vld [vmem:[%s8] sm:$0x1]
    %v4836 = vlaneseq
    %v4837 = vshrl.u32 %v4836, 7
    %v4838 = vsub.s32 0, %v4837
    %v4839 = vrot.slane %v4834, %v4838
    %4841 = vmatprep.subr.mxu0 0.0
    %4842 = vmatpush1.msra.mxu0 %v4818
    %4843 = vmatprep.subr.mxu0 0.0
    %4844 = vmatpush1.msra.mxu0 %v4819
    %4845 = vmatprep.subr.mxu0 0.0
    %4846 = vmatpush1.msra.mxu0 %v4820
    %4847 = vmatprep.subr.mxu0 0.0
    %4848 = vmatpush1.msra.mxu0 %v4821
    %4849 = vmatprep.subr.mxu0 0.0
    %4850 = vmatpush1.msra.mxu0 %v4822
    %4851 = vmatprep.subr.mxu0 0.0
    %4852 = vmatpush1.msra.mxu0 %v4823
    %4853 = vmatprep.subr.mxu0 0.0
    %4854 = vmatpush1.msra.mxu0 %v4824
    %4855 = vmatprep.subr.mxu0 0.0
    %4856 = vmatpush1.msra.mxu0 %v4825
    %4857 = vmatprep.subr.mxu0 0.0
    %4858 = vmatpush1.msra.mxu0 %v4826
    %4859 = vmatprep.subr.mxu0 0.0
    %4860 = vmatpush1.msra.mxu0 %v4827
    %4861 = vmatprep.subr.mxu0 0.0
    %4862 = vmatpush1.msra.mxu0 %v4828
    %4863 = vmatprep.subr.mxu0 0.0
    %4864 = vmatpush1.msra.mxu0 %v4829
    %4865 = vmatprep.subr.mxu0 0.0
    %4866 = vmatpush1.msra.mxu0 %v4830
    %4867 = vmatprep.subr.mxu0 0.0
    %4868 = vmatpush1.msra.mxu0 %v4831
    %4869 = vmatprep.subr.mxu0 0.0
    %4870 = vmatpush1.msra.mxu0 %v4832
    %4871 = vmatprep.subr.mxu0 0.0
    %4872 = vmatpush1.msra.mxu0 %v4833
    %4873 = vmatprep.subr.mxu0 0.0
    %4874 = vmatpush1.msra.mxu0 0.0
    %4875 = vmatprep.subr.mxu0 0.0
    %4876 = vmatpush1.msra.mxu0 0.0
    %4877 = vmatprep.subr.mxu0 0.0
    %4878 = vmatpush1.msra.mxu0 0.0
    %4879 = vmatprep.subr.mxu0 0.0
    %4880 = vmatpush1.msra.mxu0 0.0
    %4881 = vmatprep.subr.mxu0 0.0
    %4882 = vmatpush1.msra.mxu0 0.0
    %4883 = vmatprep.subr.mxu0 0.0
    %4884 = vmatpush1.msra.mxu0 0.0
    %4885 = vmatprep.subr.mxu0 0.0
    %4886 = vmatpush1.msra.mxu0 0.0
    %4887 = vmatprep.subr.mxu0 0.0
    %4888 = vmatpush1.msra.mxu0 0.0
    %4889 = vmatprep.subr.mxu0 0.0
    %4890 = vmatpush1.msra.mxu0 0.0
    %4891 = vmatprep.subr.mxu0 0.0
    %4892 = vmatpush1.msra.mxu0 0.0
    %4893 = vmatprep.subr.mxu0 0.0
    %4894 = vmatpush1.msra.mxu0 0.0
    %4895 = vmatprep.subr.mxu0 0.0
    %4896 = vmatpush1.msra.mxu0 0.0
    %4897 = vmatprep.subr.mxu0 0.0
    %4898 = vmatpush1.msra.mxu0 0.0
    %4899 = vmatprep.subr.mxu0 0.0
    %4900 = vmatpush1.msra.mxu0 0.0
    %4901 = vmatprep.subr.mxu0 0.0
    %4902 = vmatpush1.msra.mxu0 0.0
    %4903 = vmatprep.subr.mxu0 0.0
    %4904 = vmatpush1.msra.mxu0 0.0
    %4905 = vmatprep.mubr.f32.mxu0 0.0
    %4906 = vmatmul.mubr.f32.gmra.mrb[0].mxu0 %v4817
    %v4907 = vpop.f32.mrb[0].mxu0
    %v4908 = vadd.f32 %v4839, %v4907
    %v4909 = vpop.f32.mrb[0].mxu0
    %4910 = vdwg.mxu0
    %v4911 = vmax.f32 %v4908, 0.0
    %v4912 = vld [vmem:[%s9] sm:$0xff]
    %v4913 = vld [vmem:[%s9 + $0x8] sm:$0xff]
    %v4914 = vld [vmem:[%s9 + $0x10] sm:$0xff]
    %v4915 = vld [vmem:[%s9 + $0x18] sm:$0xff]
    %v4916 = vld [vmem:[%s9 + $0x20] sm:$0xff]
    %v4917 = vld [vmem:[%s9 + $0x28] sm:$0xff]
    %v4918 = vld [vmem:[%s9 + $0x30] sm:$0xff]
    %v4919 = vld [vmem:[%s9 + $0x38] sm:$0xff]
    %v4920 = vld [vmem:[%s9 + $0x40] sm:$0xff]
    %v4921 = vld [vmem:[%s9 + $0x48] sm:$0xff]
    %v4922 = vld [vmem:[%s9 + $0x50] sm:$0xff]
    %v4923 = vld [vmem:[%s9 + $0x58] sm:$0xff]
    %v4924 = vld [vmem:[%s9 + $0x60] sm:$0xff]
    %v4925 = vld [vmem:[%s9 + $0x68] sm:$0xff]
    %v4926 = vld [vmem:[%s9 + $0x70] sm:$0xff]
    %v4927 = vld [vmem:[%s9 + $0x78] sm:$0xff]
    %v4928 = vld [vmem:[%s10] sm:$0x1]
    %v4930 = vlaneseq
    %v4931 = vshrl.u32 %v4930, 7
    %v4932 = vsub.s32 0, %v4931
    %v4933 = vrot.slane %v4928, %v4932
    %4935 = vmatprep.subr.mxu0 0.0
    %4936 = vmatpush1.msra.mxu0 %v4912
    %4937 = vmatprep.subr.mxu0 0.0
    %4938 = vmatpush1.msra.mxu0 %v4913
    %4939 = vmatprep.subr.mxu0 0.0
    %4940 = vmatpush1.msra.mxu0 %v4914
    %4941 = vmatprep.subr.mxu0 0.0
    %4942 = vmatpush1.msra.mxu0 %v4915
    %4943 = vmatprep.subr.mxu0 0.0
    %4944 = vmatpush1.msra.mxu0 %v4916
    %4945 = vmatprep.subr.mxu0 0.0
    %4946 = vmatpush1.msra.mxu0 %v4917
    %4947 = vmatprep.subr.mxu0 0.0
    %4948 = vmatpush1.msra.mxu0 %v4918
    %4949 = vmatprep.subr.mxu0 0.0
    %4950 = vmatpush1.msra.mxu0 %v4919
    %4951 = vmatprep.subr.mxu0 0.0
    %4952 = vmatpush1.msra.mxu0 %v4920
    %4953 = vmatprep.subr.mxu0 0.0
    %4954 = vmatpush1.msra.mxu0 %v4921
    %4955 = vmatprep.subr.mxu0 0.0
    %4956 = vmatpush1.msra.mxu0 %v4922
    %4957 = vmatprep.subr.mxu0 0.0
    %4958 = vmatpush1.msra.mxu0 %v4923
    %4959 = vmatprep.subr.mxu0 0.0
    %4960 = vmatpush1.msra.mxu0 %v4924
    %4961 = vmatprep.subr.mxu0 0.0
    %4962 = vmatpush1.msra.mxu0 %v4925
    %4963 = vmatprep.subr.mxu0 0.0
    %4964 = vmatpush1.msra.mxu0 %v4926
    %4965 = vmatprep.subr.mxu0 0.0
    %4966 = vmatpush1.msra.mxu0 %v4927
    %4967 = vmatprep.subr.mxu0 0.0
    %4968 = vmatpush1.msra.mxu0 0.0
    %4969 = vmatprep.subr.mxu0 0.0
    %4970 = vmatpush1.msra.mxu0 0.0
    %4971 = vmatprep.subr.mxu0 0.0
    %4972 = vmatpush1.msra.mxu0 0.0
    %4973 = vmatprep.subr.mxu0 0.0
    %4974 = vmatpush1.msra.mxu0 0.0
    %4975 = vmatprep.subr.mxu0 0.0
    %4976 = vmatpush1.msra.mxu0 0.0
    %4977 = vmatprep.subr.mxu0 0.0
    %4978 = vmatpush1.msra.mxu0 0.0
    %4979 = vmatprep.subr.mxu0 0.0
    %4980 = vmatpush1.msra.mxu0 0.0
    %4981 = vmatprep.subr.mxu0 0.0
    %4982 = vmatpush1.msra.mxu0 0.0
    %4983 = vmatprep.subr.mxu0 0.0
    %4984 = vmatpush1.msra.mxu0 0.0
    %4985 = vmatprep.subr.mxu0 0.0
    %4986 = vmatpush1.msra.mxu0 0.0
    %4987 = vmatprep.subr.mxu0 0.0
    %4988 = vmatpush1.msra.mxu0 0.0
    %4989 = vmatprep.subr.mxu0 0.0
    %4990 = vmatpush1.msra.mxu0 0.0
    %4991 = vmatprep.subr.mxu0 0.0
    %4992 = vmatpush1.msra.mxu0 0.0
    %4993 = vmatprep.subr.mxu0 0.0
    %4994 = vmatpush1.msra.mxu0 0.0
    %4995 = vmatprep.subr.mxu0 0.0
    %4996 = vmatpush1.msra.mxu0 0.0
    %4997 = vmatprep.subr.mxu0 0.0
    %4998 = vmatpush1.msra.mxu0 0.0
    %4999 = vmatprep.mubr.f32.mxu0 0.0
    %5000 = vmatmul.mubr.f32.gmra.mrb[0].mxu0 %v4911
    %v5001 = vpop.f32.mrb[0].mxu0
    %v5002 = vadd.f32 %v4933, %v5001
    %v5003 = vpop.f32.mrb[0].mxu0
    %5004 = vdwg.mxu0
    %v5007 = vunpack.c.l.s4 1966171168
    %v5008 = vunpack.c.0.s8 %v5007
    %v5009 = vlaneseq
    %v5010 = vshrl.u32 %v5009, 7
    %v5011 = vsub.s32 %v5008, %v5010
    %v5012 = vrot.slane %v5002, %v5011
    %v5013 = vcombine.high %v5012, %v5012
    %v5015 = vunpack.c.l.s4 1966171168
    %v5016 = vunpack.c.0.s8 %v5015
    %v5017 = vlaneseq
    %v5018 = vshrl.u32 %v5017, 7
    %v5019 = vsub.s32 %v5016, %v5018
    %v5020 = vrot.slane %v5012, %v5019
    %v5022 = vunpack.c.l.s4 1966171168
    %v5023 = vunpack.c.0.s8 %v5022
    %v5024 = vlaneseq
    %v5025 = vshrl.u32 %v5024, 7
    %v5026 = vsub.s32 %v5023, %v5025
    %v5027 = vrot.slane %v5013, %v5026
    %5030 = vst [vmem:[#allocation2] sm:$0x1] %v5020
    %5031 = vst [vmem:[#allocation2 + $0x1] sm:$0x1] %v5027
    // Predicated region
    $region46: #{cnn_cifar_forward.1} parent=1 // pred_check
      _
    $region47: #{cnn_cifar_forward.1} parent=1 // pred_check_branch
      %5033 = sbr.rel (0) target = $region49
    $region48: #{cnn_cifar_forward.1} parent=1 // pred_region
      %s5035 = ssub.s32 32, 32
      %5036 = vsyncadd [#allocation3], %s5035
      %s5037 = sshll.u32 [#allocation2], 4
      %s5038 = int_to_ptr.vmem [resolvable:$true] %s5037
      %5043 = dma.vmem_to_hbm [thread:$0]  %s5038, 32, %s11, [#allocation3], 16, 16, 1
    $region49: #{cnn_cifar_forward.1} parent=1 // pred_fallthru
      _
    // Predicated region
    $region50: #{cnn_cifar_forward.1} parent=1 // pred_check
      _
    $region51: #{cnn_cifar_forward.1} parent=1 // pred_check_branch
      %5045 = sbr.rel (0) target = $region53
    $region52: #{cnn_cifar_forward.1} parent=1 // pred_region
      %5046 = dma.done [#allocation3], 32
    $region53: #{cnn_cifar_forward.1} parent=1 // pred_fallthru
      _
    %5047 = vsyncpa [#allocation3], 1

</llo_original>
